<compile_context>
chip_gen: v5e
topology: v5e:2x2
jax: 0.10.0
libtpu: 0.0.40
codegen_flags: <defaults>
</compile_context>

<pallas_src>
import jax
import jax.numpy as jnp
from jax.experimental import pallas as pl
from jax.experimental.pallas import tpu as pltpu


def _round_up(x, m):
    return (x + m - 1) // m * m


def _conv3x3_im2col(src_ref, w_flat, bias, H, W, C):
    """3x3 conv over a zero-padded (H+2, W+2, C) VMEM tile as ONE deep-K matmul.

    src_ref: Ref (H+2, W+2, C)  zero-padded activation tile (VMEM)
    w_flat : (9*C, Cout)        HWIO weights flattened row-major over (dy, dx, ci)
    bias   : (1, Cout)
    returns (H*W, Cout) float32 after bias + ReLU.
    """
    cols = []
    for dy in range(3):
        for dx in range(3):
            tap = src_ref[pl.ds(dy, H), pl.ds(dx, W), :]        # (H, W, C)
            cols.append(tap.reshape(H * W, C))
    patch = jnp.concatenate(cols, axis=-1)                       # (H*W, 9*C)
    acc = jnp.dot(patch, w_flat, preferred_element_type=jnp.float32)
    acc = acc + bias
    return jnp.maximum(acc, 0.0)


def _double_conv_kernel(x_ref, w1_ref, b1_ref, w2_ref, b2_ref, o_ref,
                        xpad_ref, mid_ref):
    """Fused (conv3x3 + ReLU) x2 for one batch element.

    x_ref   : (1, H, W, Cin)     unpadded input tile (channels lane-padded)
    w1_ref  : (9*Cin, Cmid)      flattened conv1 weights
    b1_ref  : (1, Cmid)
    w2_ref  : (9*Cmid, Cout)     flattened conv2 weights
    b2_ref  : (1, Cout)
    o_ref   : (1, H, W, Cout)
    xpad_ref: VMEM (H+2, W+2, Cin)   scratch: in-kernel SAME padding of the input
    mid_ref : VMEM (H+2, W+2, Cmid)  scratch: padded intermediate (never hits HBM)
    """
    _, H, W, Cout = o_ref.shape
    Cin = x_ref.shape[-1]
    Cmid = mid_ref.shape[-1]

    # ---- in-kernel zero padding of the input (replaces jnp.pad HBM pass) ----
    xpad_ref[...] = jnp.zeros_like(xpad_ref)
    xpad_ref[pl.ds(1, H), pl.ds(1, W), :] = x_ref[0].astype(xpad_ref.dtype)

    # ---- conv1 + ReLU : single im2col matmul, K = 9*Cin ----
    h1 = _conv3x3_im2col(xpad_ref, w1_ref[...], b1_ref[...], H, W, Cin)

    # Intermediate stays in VMEM: write it into the interior of a pre-zeroed
    # padded scratch so conv2 gets SAME padding for free.
    mid_ref[...] = jnp.zeros_like(mid_ref)
    mid_ref[pl.ds(1, H), pl.ds(1, W), :] = h1.reshape(H, W, Cmid).astype(mid_ref.dtype)

    # ---- conv2 + ReLU : single im2col matmul, K = 9*Cmid ----
    h2 = _conv3x3_im2col(mid_ref, w2_ref[...], b2_ref[...], H, W, Cmid)
    o_ref[0] = h2.reshape(H, W, Cout).astype(o_ref.dtype)


def double_conv(x_nchw, params):
    """Forward pass of DoubleConv. x_nchw: (N, Cin, H, W), like the PyTorch module."""
    w1, b1, w2, b2 = params                      # HWIO weights, 1-D biases
    N, Cin, H, W = x_nchw.shape
    Cout = w1.shape[-1]

    LANE = 128
    cin_p = _round_up(Cin, LANE)                 # lane-dense channel padding
    cmid_p = _round_up(Cout, LANE)
    cout_p = cmid_p

    # NCHW -> NHWC, pad channels with zeros (zero channels x zero weights == no-op).
    x = jnp.transpose(x_nchw, (0, 2, 3, 1))
    x = jnp.pad(x, ((0, 0), (0, 0), (0, 0), (0, cin_p - Cin)))

    # Pad + flatten weights: HWIO (3,3,Ci,Co) -> (9*Ci_p, Co_p), row-major over
    # (dy, dx, ci) which matches the im2col column order in the kernel.
    w1p = jnp.pad(w1, ((0, 0), (0, 0), (0, cin_p - Cin), (0, cmid_p - Cout)))
    w1f = w1p.reshape(9 * cin_p, cmid_p)
    b1p = jnp.pad(b1, (0, cmid_p - Cout)).reshape(1, cmid_p)
    w2p = jnp.pad(w2, ((0, 0), (0, 0), (0, cmid_p - Cout), (0, cout_p - Cout)))
    w2f = w2p.reshape(9 * cmid_p, cout_p)
    b2p = jnp.pad(b2, (0, cout_p - Cout)).reshape(1, cout_p)

    out = pl.pallas_call(
        _double_conv_kernel,
        out_shape=jax.ShapeDtypeStruct((N, H, W, cout_p), x.dtype),
        grid=(N,),
        in_specs=[
            pl.BlockSpec((1, H, W, cin_p), lambda n: (n, 0, 0, 0)),
            pl.BlockSpec((9 * cin_p, cmid_p), lambda n: (0, 0)),
            pl.BlockSpec((1, cmid_p), lambda n: (0, 0)),
            pl.BlockSpec((9 * cmid_p, cout_p), lambda n: (0, 0)),
            pl.BlockSpec((1, cout_p), lambda n: (0, 0)),
        ],
        out_specs=pl.BlockSpec((1, H, W, cout_p), lambda n: (n, 0, 0, 0)),
        scratch_shapes=[
            pltpu.VMEM((H + 2, W + 2, cin_p), jnp.float32),
            pltpu.VMEM((H + 2, W + 2, cmid_p), jnp.float32),
        ],
        compiler_params=pltpu.CompilerParams(
            dimension_semantics=("parallel",),
            vmem_limit_bytes=48 * 1024 * 1024),
    )(x, w1f, b1p, w2f, b2p)

    # Drop channel padding, back to NCHW to match the PyTorch module.
    out = out[..., :Cout]
    return jnp.transpose(out, (0, 3, 1, 2))


def init_params(key, in_channel, out_channel, dtype=jnp.float32):
    """Deterministic synthetic init (PyTorch-like uniform fan-in scaling), HWIO."""
    k1, k2, k3, k4 = jax.random.split(key, 4)
    bound1 = 1.0 / (in_channel * 9) ** 0.5
    bound2 = 1.0 / (out_channel * 9) ** 0.5
    w1 = jax.random.uniform(k1, (3, 3, in_channel, out_channel),
                            dtype, minval=-bound1, maxval=bound1)
    b1 = jax.random.uniform(k2, (out_channel,), dtype,
                            minval=-bound1, maxval=bound1)
    w2 = jax.random.uniform(k3, (3, 3, out_channel, out_channel),
                            dtype, minval=-bound2, maxval=bound2)
    b2 = jax.random.uniform(k4, (out_channel,), dtype,
                            minval=-bound2, maxval=bound2)
    return (w1, b1, w2, b2)


def _reference(x_nchw, params):
    """Pure-JAX reference (lax conv) for correctness check."""
    w1, b1, w2, b2 = params

    def conv(x, w, b):
        y = jax.lax.conv_general_dilated(
            x, w, window_strides=(1, 1), padding="SAME",
            dimension_numbers=("NCHW", "HWIO", "NCHW"))
        return jnp.maximum(y + b[None, :, None, None], 0.0)

    return conv(conv(x_nchw, w1, b1), w2, b2)


if __name__ == "__main__":
    key = jax.random.PRNGKey(0)
    kx, kp = jax.random.split(key)

    N, Cin, Cout, H, W = 2, 4, 8, 16, 16
    x = jax.random.normal(kx, (N, Cin, H, W), jnp.float32)
    params = init_params(kp, Cin, Cout)

    out = jax.block_until_ready(double_conv(x, params))

    ref = _reference(x, params)
    assert out.shape == (N, Cout, H, W), out.shape
    assert jnp.allclose(out, ref, atol=1e-5, rtol=1e-5), "mismatch vs reference"

    print("KERNEL_OK")
</pallas_src>

<mosaic_0001>
module attributes {stable_mosaic.version = 11 : i64} {
  func.func @_double_conv_kernel(%arg0: i32, %arg1: memref<1x16x16x128xf32, #tpu.memory_space<vmem>>, %arg2: memref<1152x128xf32, #tpu.memory_space<vmem>>, %arg3: memref<1x128xf32, #tpu.memory_space<vmem>>, %arg4: memref<1152x128xf32, #tpu.memory_space<vmem>>, %arg5: memref<1x128xf32, #tpu.memory_space<vmem>>, %arg6: memref<1x16x16x128xf32, #tpu.memory_space<vmem>>, %arg7: memref<18x18x128xf32, #tpu.memory_space<vmem>>, %arg8: memref<18x18x128xf32, #tpu.memory_space<vmem>>) attributes {dimension_semantics = [#tpu.dimension_semantics<parallel>], iteration_bounds = array<i64: 2>, scalar_prefetch = 0 : i64, scratch_operands = 2 : i64, tpu.core_type = #tpu.core_type<tc>, window_params = [{transform_indices = @transform_0, window_bounds = array<i64: 1, 16, 16, 128>}, {pipeline_mode = #tpu.pipeline_mode<synchronous>, transform_indices = @transform_1, window_bounds = array<i64: 1152, 128>}, {pipeline_mode = #tpu.pipeline_mode<synchronous>, transform_indices = @transform_2, window_bounds = array<i64: 1, 128>}, {pipeline_mode = #tpu.pipeline_mode<synchronous>, transform_indices = @transform_3, window_bounds = array<i64: 1152, 128>}, {pipeline_mode = #tpu.pipeline_mode<synchronous>, transform_indices = @transform_4, window_bounds = array<i64: 1, 128>}, {transform_indices = @transform_5, window_bounds = array<i64: 1, 16, 16, 128>}]} {
    %cst = arith.constant 0.000000e+00 : f32
    %0 = vector.broadcast %cst : f32 to vector<18x18x128xf32>
    %c0 = arith.constant 0 : index
    %c0_0 = arith.constant 0 : index
    %c0_1 = arith.constant 0 : index
    %1 = vector.load %arg7[%c0, %c0_0, %c0_1] : memref<18x18x128xf32, #tpu.memory_space<vmem>>, vector<18x18x128xf32>
    tpu.vector_store %arg7[%c0, %c0_0, %c0_1], %0 {strides = array<i32>} : memref<18x18x128xf32, #tpu.memory_space<vmem>>, vector<18x18x128xf32>,
    %c0_2 = arith.constant 0 : index
    %c0_3 = arith.constant 0 : index
    %c0_4 = arith.constant 0 : index
    %c0_5 = arith.constant 0 : index
    %2 = vector.load %arg1[%c0_2, %c0_3, %c0_4, %c0_5] : memref<1x16x16x128xf32, #tpu.memory_space<vmem>>, vector<1x16x16x128xf32>
    %3 = vector.shape_cast %2 : vector<1x16x16x128xf32> to vector<16x16x128xf32>
    %c1 = arith.constant 1 : index
    %c1_6 = arith.constant 1 : index
    %c0_7 = arith.constant 0 : index
    %4 = vector.load %arg7[%c1, %c1_6, %c0_7] : memref<18x18x128xf32, #tpu.memory_space<vmem>>, vector<16x16x128xf32>
    tpu.vector_store %arg7[%c1, %c1_6, %c0_7], %3 {strides = array<i32>} : memref<18x18x128xf32, #tpu.memory_space<vmem>>, vector<16x16x128xf32>,
    %c0_8 = arith.constant 0 : index
    %c0_9 = arith.constant 0 : index
    %5 = vector.load %arg2[%c0_8, %c0_9] : memref<1152x128xf32, #tpu.memory_space<vmem>>, vector<1152x128xf32>
    %c0_10 = arith.constant 0 : index
    %c0_11 = arith.constant 0 : index
    %6 = vector.load %arg3[%c0_10, %c0_11] : memref<1x128xf32, #tpu.memory_space<vmem>>, vector<1x128xf32>
    %c0_12 = arith.constant 0 : index
    %c0_13 = arith.constant 0 : index
    %c0_14 = arith.constant 0 : index
    %7 = vector.load %arg7[%c0_12, %c0_13, %c0_14] : memref<18x18x128xf32, #tpu.memory_space<vmem>>, vector<16x16x128xf32>
    %8 = vector.shape_cast %7 : vector<16x16x128xf32> to vector<256x128xf32>
    %c0_15 = arith.constant 0 : index
    %c1_16 = arith.constant 1 : index
    %c0_17 = arith.constant 0 : index
    %9 = vector.load %arg7[%c0_15, %c1_16, %c0_17] : memref<18x18x128xf32, #tpu.memory_space<vmem>>, vector<16x16x128xf32>
    %10 = vector.shape_cast %9 : vector<16x16x128xf32> to vector<256x128xf32>
    %c0_18 = arith.constant 0 : index
    %c2 = arith.constant 2 : index
    %c0_19 = arith.constant 0 : index
    %11 = vector.load %arg7[%c0_18, %c2, %c0_19] : memref<18x18x128xf32, #tpu.memory_space<vmem>>, vector<16x16x128xf32>
    %12 = vector.shape_cast %11 : vector<16x16x128xf32> to vector<256x128xf32>
    %c1_20 = arith.constant 1 : index
    %c0_21 = arith.constant 0 : index
    %c0_22 = arith.constant 0 : index
    %13 = vector.load %arg7[%c1_20, %c0_21, %c0_22] : memref<18x18x128xf32, #tpu.memory_space<vmem>>, vector<16x16x128xf32>
    %14 = vector.shape_cast %13 : vector<16x16x128xf32> to vector<256x128xf32>
    %c1_23 = arith.constant 1 : index
    %c1_24 = arith.constant 1 : index
    %c0_25 = arith.constant 0 : index
    %15 = vector.load %arg7[%c1_23, %c1_24, %c0_25] : memref<18x18x128xf32, #tpu.memory_space<vmem>>, vector<16x16x128xf32>
    %16 = vector.shape_cast %15 : vector<16x16x128xf32> to vector<256x128xf32>
    %c1_26 = arith.constant 1 : index
    %c2_27 = arith.constant 2 : index
    %c0_28 = arith.constant 0 : index
    %17 = vector.load %arg7[%c1_26, %c2_27, %c0_28] : memref<18x18x128xf32, #tpu.memory_space<vmem>>, vector<16x16x128xf32>
    %18 = vector.shape_cast %17 : vector<16x16x128xf32> to vector<256x128xf32>
    %c2_29 = arith.constant 2 : index
    %c0_30 = arith.constant 0 : index
    %c0_31 = arith.constant 0 : index
    %19 = vector.load %arg7[%c2_29, %c0_30, %c0_31] : memref<18x18x128xf32, #tpu.memory_space<vmem>>, vector<16x16x128xf32>
    %20 = vector.shape_cast %19 : vector<16x16x128xf32> to vector<256x128xf32>
    %c2_32 = arith.constant 2 : index
    %c1_33 = arith.constant 1 : index
    %c0_34 = arith.constant 0 : index
    %21 = vector.load %arg7[%c2_32, %c1_33, %c0_34] : memref<18x18x128xf32, #tpu.memory_space<vmem>>, vector<16x16x128xf32>
    %22 = vector.shape_cast %21 : vector<16x16x128xf32> to vector<256x128xf32>
    %c2_35 = arith.constant 2 : index
    %c2_36 = arith.constant 2 : index
    %c0_37 = arith.constant 0 : index
    %23 = vector.load %arg7[%c2_35, %c2_36, %c0_37] : memref<18x18x128xf32, #tpu.memory_space<vmem>>, vector<16x16x128xf32>
    %24 = vector.shape_cast %23 : vector<16x16x128xf32> to vector<256x128xf32>
    %25 = tpu.concatenate %8, %10, %12, %14, %16, %18, %20, %22, %24 in 1 : vector<256x128xf32>, vector<256x128xf32>, vector<256x128xf32>, vector<256x128xf32>, vector<256x128xf32>, vector<256x128xf32>, vector<256x128xf32>, vector<256x128xf32>, vector<256x128xf32> -> vector<256x1152xf32>
    %cst_38 = arith.constant dense<0.000000e+00> : vector<256x128xf32>
    %26 = tpu.matmul %25, %5, %cst_38 {dimension_numbers = #tpu.dot_dimension_numbers<[1], [0], [0], [1], [0, 0, 1, 1], [], []>} : vector<256x1152xf32>, vector<1152x128xf32>, vector<256x128xf32> -> vector<256x128xf32>
    %27 = vector.broadcast %6 : vector<1x128xf32> to vector<256x128xf32>
    %28 = arith.addf %26, %27 : vector<256x128xf32>
    %cst_39 = arith.constant 0.000000e+00 : f32
    %29 = vector.broadcast %cst_39 : f32 to vector<256x128xf32>
    %30 = arith.maximumf %28, %29 : vector<256x128xf32>
    %cst_40 = arith.constant 0.000000e+00 : f32
    %31 = vector.broadcast %cst_40 : f32 to vector<18x18x128xf32>
    %c0_41 = arith.constant 0 : index
    %c0_42 = arith.constant 0 : index
    %c0_43 = arith.constant 0 : index
    %32 = vector.load %arg8[%c0_41, %c0_42, %c0_43] : memref<18x18x128xf32, #tpu.memory_space<vmem>>, vector<18x18x128xf32>
    tpu.vector_store %arg8[%c0_41, %c0_42, %c0_43], %31 {strides = array<i32>} : memref<18x18x128xf32, #tpu.memory_space<vmem>>, vector<18x18x128xf32>,
    %33 = vector.shape_cast %30 : vector<256x128xf32> to vector<16x16x128xf32>
    %c1_44 = arith.constant 1 : index
    %c1_45 = arith.constant 1 : index
    %c0_46 = arith.constant 0 : index
    %34 = vector.load %arg8[%c1_44, %c1_45, %c0_46] : memref<18x18x128xf32, #tpu.memory_space<vmem>>, vector<16x16x128xf32>
    tpu.vector_store %arg8[%c1_44, %c1_45, %c0_46], %33 {strides = array<i32>} : memref<18x18x128xf32, #tpu.memory_space<vmem>>, vector<16x16x128xf32>,
    %c0_47 = arith.constant 0 : index
    %c0_48 = arith.constant 0 : index
    %35 = vector.load %arg4[%c0_47, %c0_48] : memref<1152x128xf32, #tpu.memory_space<vmem>>, vector<1152x128xf32>
    %c0_49 = arith.constant 0 : index
    %c0_50 = arith.constant 0 : index
    %36 = vector.load %arg5[%c0_49, %c0_50] : memref<1x128xf32, #tpu.memory_space<vmem>>, vector<1x128xf32>
    %c0_51 = arith.constant 0 : index
    %c0_52 = arith.constant 0 : index
    %c0_53 = arith.constant 0 : index
    %37 = vector.load %arg8[%c0_51, %c0_52, %c0_53] : memref<18x18x128xf32, #tpu.memory_space<vmem>>, vector<16x16x128xf32>
    %38 = vector.shape_cast %37 : vector<16x16x128xf32> to vector<256x128xf32>
    %c0_54 = arith.constant 0 : index
    %c1_55 = arith.constant 1 : index
    %c0_56 = arith.constant 0 : index
    %39 = vector.load %arg8[%c0_54, %c1_55, %c0_56] : memref<18x18x128xf32, #tpu.memory_space<vmem>>, vector<16x16x128xf32>
    %40 = vector.shape_cast %39 : vector<16x16x128xf32> to vector<256x128xf32>
    %c0_57 = arith.constant 0 : index
    %c2_58 = arith.constant 2 : index
    %c0_59 = arith.constant 0 : index
    %41 = vector.load %arg8[%c0_57, %c2_58, %c0_59] : memref<18x18x128xf32, #tpu.memory_space<vmem>>, vector<16x16x128xf32>
    %42 = vector.shape_cast %41 : vector<16x16x128xf32> to vector<256x128xf32>
    %c1_60 = arith.constant 1 : index
    %c0_61 = arith.constant 0 : index
    %c0_62 = arith.constant 0 : index
    %43 = vector.load %arg8[%c1_60, %c0_61, %c0_62] : memref<18x18x128xf32, #tpu.memory_space<vmem>>, vector<16x16x128xf32>
    %44 = vector.shape_cast %43 : vector<16x16x128xf32> to vector<256x128xf32>
    %c1_63 = arith.constant 1 : index
    %c1_64 = arith.constant 1 : index
    %c0_65 = arith.constant 0 : index
    %45 = vector.load %arg8[%c1_63, %c1_64, %c0_65] : memref<18x18x128xf32, #tpu.memory_space<vmem>>, vector<16x16x128xf32>
    %46 = vector.shape_cast %45 : vector<16x16x128xf32> to vector<256x128xf32>
    %c1_66 = arith.constant 1 : index
    %c2_67 = arith.constant 2 : index
    %c0_68 = arith.constant 0 : index
    %47 = vector.load %arg8[%c1_66, %c2_67, %c0_68] : memref<18x18x128xf32, #tpu.memory_space<vmem>>, vector<16x16x128xf32>
    %48 = vector.shape_cast %47 : vector<16x16x128xf32> to vector<256x128xf32>
    %c2_69 = arith.constant 2 : index
    %c0_70 = arith.constant 0 : index
    %c0_71 = arith.constant 0 : index
    %49 = vector.load %arg8[%c2_69, %c0_70, %c0_71] : memref<18x18x128xf32, #tpu.memory_space<vmem>>, vector<16x16x128xf32>
    %50 = vector.shape_cast %49 : vector<16x16x128xf32> to vector<256x128xf32>
    %c2_72 = arith.constant 2 : index
    %c1_73 = arith.constant 1 : index
    %c0_74 = arith.constant 0 : index
    %51 = vector.load %arg8[%c2_72, %c1_73, %c0_74] : memref<18x18x128xf32, #tpu.memory_space<vmem>>, vector<16x16x128xf32>
    %52 = vector.shape_cast %51 : vector<16x16x128xf32> to vector<256x128xf32>
    %c2_75 = arith.constant 2 : index
    %c2_76 = arith.constant 2 : index
    %c0_77 = arith.constant 0 : index
    %53 = vector.load %arg8[%c2_75, %c2_76, %c0_77] : memref<18x18x128xf32, #tpu.memory_space<vmem>>, vector<16x16x128xf32>
    %54 = vector.shape_cast %53 : vector<16x16x128xf32> to vector<256x128xf32>
    %55 = tpu.concatenate %38, %40, %42, %44, %46, %48, %50, %52, %54 in 1 : vector<256x128xf32>, vector<256x128xf32>, vector<256x128xf32>, vector<256x128xf32>, vector<256x128xf32>, vector<256x128xf32>, vector<256x128xf32>, vector<256x128xf32>, vector<256x128xf32> -> vector<256x1152xf32>
    %cst_78 = arith.constant dense<0.000000e+00> : vector<256x128xf32>
    %56 = tpu.matmul %55, %35, %cst_78 {dimension_numbers = #tpu.dot_dimension_numbers<[1], [0], [0], [1], [0, 0, 1, 1], [], []>} : vector<256x1152xf32>, vector<1152x128xf32>, vector<256x128xf32> -> vector<256x128xf32>
    %57 = vector.broadcast %36 : vector<1x128xf32> to vector<256x128xf32>
    %58 = arith.addf %56, %57 : vector<256x128xf32>
    %cst_79 = arith.constant 0.000000e+00 : f32
    %59 = vector.broadcast %cst_79 : f32 to vector<256x128xf32>
    %60 = arith.maximumf %58, %59 : vector<256x128xf32>
    %61 = vector.shape_cast %60 : vector<256x128xf32> to vector<16x16x128xf32>
    %c0_80 = arith.constant 0 : index
    %c0_81 = arith.constant 0 : index
    %c0_82 = arith.constant 0 : index
    %c0_83 = arith.constant 0 : index
    %62 = vector.load %arg6[%c0_80, %c0_81, %c0_82, %c0_83] : memref<1x16x16x128xf32, #tpu.memory_space<vmem>>, vector<1x16x16x128xf32>
    %63 = vector.shape_cast %62 : vector<1x16x16x128xf32> to vector<16x16x128xf32>
    %64 = vector.shape_cast %61 : vector<16x16x128xf32> to vector<1x16x16x128xf32>
    tpu.vector_store %arg6[%c0_80, %c0_81, %c0_82, %c0_83], %64 {strides = array<i32>} : memref<1x16x16x128xf32, #tpu.memory_space<vmem>>, vector<1x16x16x128xf32>,
    return
  }
  func.func @transform_0(%arg0: i32) -> (i32, i32, i32, i32) {
    %c0_i32 = arith.constant 0 : i32
    %c0_i32_0 = arith.constant 0 : i32
    %c0_i32_1 = arith.constant 0 : i32
    %c0_i32_2 = arith.constant 0 : i32
    return %arg0, %c0_i32, %c0_i32_0, %c0_i32_1 : i32, i32, i32, i32
  }
  func.func @transform_1(%arg0: i32) -> (i32, i32) {
    %c0_i32 = arith.constant 0 : i32
    %c0_i32_0 = arith.constant 0 : i32
    %c0_i32_1 = arith.constant 0 : i32
    return %c0_i32, %c0_i32_0 : i32, i32
  }
  func.func @transform_2(%arg0: i32) -> (i32, i32) {
    %c0_i32 = arith.constant 0 : i32
    %c0_i32_0 = arith.constant 0 : i32
    %c0_i32_1 = arith.constant 0 : i32
    return %c0_i32, %c0_i32_0 : i32, i32
  }
  func.func @transform_3(%arg0: i32) -> (i32, i32) {
    %c0_i32 = arith.constant 0 : i32
    %c0_i32_0 = arith.constant 0 : i32
    %c0_i32_1 = arith.constant 0 : i32
    return %c0_i32, %c0_i32_0 : i32, i32
  }
  func.func @transform_4(%arg0: i32) -> (i32, i32) {
    %c0_i32 = arith.constant 0 : i32
    %c0_i32_0 = arith.constant 0 : i32
    %c0_i32_1 = arith.constant 0 : i32
    return %c0_i32, %c0_i32_0 : i32, i32
  }
  func.func @transform_5(%arg0: i32) -> (i32, i32, i32, i32) {
    %c0_i32 = arith.constant 0 : i32
    %c0_i32_0 = arith.constant 0 : i32
    %c0_i32_1 = arith.constant 0 : i32
    %c0_i32_2 = arith.constant 0 : i32
    return %arg0, %c0_i32, %c0_i32_0, %c0_i32_1 : i32, i32, i32, i32
  }
}

</mosaic_0001>

<llo_original>
// kernel: tpu_custom_call.1
$region0: #{tpu_custom_call.1}
  #allocation0 [shape = 'u32[]', space=smem, size = 0x4, offset = 0x4, fixed_abs, tag = 'smem constant byte address 0x4 - core index']
  #allocation1 [shape = 'u32[72,128]{1,0:T(1,128)}', space=vmem, size = 0x9000, scoped, tag = 'internal scratch']
  #allocation2 [shape = 'f32[18,18,128]{2,1,0:T(8,128)}', space=vmem, size = 0x36000, scoped, tag = 'scratch operand']
  #allocation3 [shape = 'f32[18,18,128]{2,1,0:T(8,128)}', space=vmem, size = 0x36000, scoped, tag = 'scratch operand']
  %s0 = inlined_call_operand.hbm [shape: f32[2,16,16,128], index: 0, kind: input, shape index: {}]
  %s1 = inlined_call_operand.hbm [shape: f32[1152,128], index: 1, kind: input, shape index: {}]
  %s2 = inlined_call_operand.vmem [shape: f32[1,128], index: 2, kind: input, shape index: {}]
  %s3 = inlined_call_operand.hbm [shape: f32[1152,128], index: 3, kind: input, shape index: {}]
  %s4 = inlined_call_operand.vmem [shape: f32[1,128], index: 4, kind: input, shape index: {}]
  %s5 = inlined_call_operand.hbm [shape: f32[2,16,16,128], index: 5, kind: output, shape index: {}]
  %s6 = sld [smem:[#allocation0]]
  $region65: #{tpu_custom_call.1} parent=0
    _
  %s8 = ssub.s32 1, %s6
  %s9 = scalar_select 0, %s8, %s6
  $region1: #{tpu_custom_call.1} parent=0
    #allocation4 [shape = 'u8[262144]{0}', space=vmem, size = 0x40000, scoped, tag = 'input window, operand 0']
    #allocation5 [shape = 's32[2]{0}', space=sflag, size = 0x8, scoped, tag = 'scoped memory for tpu_custom_call.1']
    #allocation6 [shape = 's32[2]{0}', space=sflag, size = 0x8, scoped, tag = 'scoped memory for tpu_custom_call.1']
    #allocation7 [shape = 'u8[589824]{0}', space=vmem, size = 0x90000, scoped, tag = 'input window, operand 1, single buffered']
    #allocation8 [shape = 's32[1]{0}', space=sflag, size = 0x4, scoped, tag = 'scoped memory for tpu_custom_call.1']
    #allocation9 [shape = 'u8[589824]{0}', space=vmem, size = 0x90000, scoped, tag = 'input window, operand 3, single buffered']
    #allocation10 [shape = 'u8[262144]{0}', space=vmem, size = 0x40000, scoped, tag = 'output window, operand 0']
    %10 = vsyncpa [#allocation5], 0
    %s11 = scalar_lea.sflag [#allocation5], 1
    %12 = vsyncpa %s11, 0
    %13 = vsyncpa [#allocation8], 0
    %14 = vsyncpa [#allocation6], 0
    %s15 = scalar_lea.sflag [#allocation6], 1
    %16 = vsyncpa %s15, 0
    loop: start=0, step=1, limit=4
    $region2: #{tpu_custom_call.1} parent=1 // loop_pre_header
      _
    $region3: #{tpu_custom_call.1} parent=1 // loop_header
      %s18 = sphi 0, %s22
      %p19 = scmp.ge.s32.totalorder %s18, 4
      %s28 = sphi 0, %s30
      %s31 = sphi 0, %s28
      %s32 = sphi 0, %s31
      %s48 = sphi 0, %s32
      %s52 = sphi 0, %s52
      %s54 = sphi 0, %s52
      %s55 = sphi 0, %s54
      %s69 = sphi 0, %s55
      %s73 = sphi 0, %s73
      %s75 = sphi 0, %s73
      %s76 = sphi 0, %s75
      %s90 = sphi 0, %s76
      %s94 = sphi 0, %s94
      %s96 = sphi 0, %s94
      %s97 = sphi 0, %s96
      %s111 = sphi 0, %s97
      %s115 = sphi 0, %s115
      %s117 = sphi 0, %s115
      %s118 = sphi 0, %s117
      %s132 = sphi 0, %s118
      %s138 = sphi 0, %s140
      %s141 = sphi 0, %s138
      %s142 = sphi 0, %s141
      %s158 = sphi 0, %s142
    $region4: #{tpu_custom_call.1} parent=1 // loop_header_branch
      %21 = sbr.rel (%p19) target = $region8
    $region5: #{tpu_custom_call.1} parent=1 // loop_body
      %s23 = ssub.s32 %s18, 1
      %s24 = ssub.s32 %s18, 2
      %s25 = sadd.s32 %s18, 1
      %s26 = ssub.s32 %s18, %s25
      %p27 = scmp.eq.s32.totalorder %s26, 0
      %s29 = sadd.s32 %s28, 1
      %s30 = scalar_select %p27, %s28, %s29
      %p33 = pneg %p27
      %p34 = scmp.eq.s32.totalorder %s18, 1
      %p35 = por %p33, %p34
      %p36 = scmp.ne.s32.totalorder %s28, %s31
      %p37 = scmp.eq.s32.totalorder %s18, 0
      %p38 = por %p36, %p37
      %p39 = scmp.ne.s32.totalorder %s28, %s31
      %p40 = scmp.eq.s32.totalorder %s23, 1
      %p41 = por %p39, %p40
      %p42 = scmp.ne.s32.totalorder %s31, %s32
      %p43 = scmp.eq.s32.totalorder %s23, 0
      %p44 = por %p42, %p43
      %p45 = scmp.ne.s32.totalorder %s31, %s32
      %p46 = scmp.eq.s32.totalorder %s24, 1
      %p47 = por %p45, %p46
      %p49 = scmp.ne.s32.totalorder %s32, %s48
      %p50 = scmp.eq.s32.totalorder %s24, 0
      %p51 = por %p49, %p50
      %s53 = sadd.s32 %s52, 1
      %p56 = scmp.eq.s32.totalorder %s18, 1
      %p57 = scmp.ne.s32.totalorder %s52, %s54
      %p58 = scmp.eq.s32.totalorder %s18, 0
      %p59 = por %p57, %p58
      %p60 = scmp.ne.s32.totalorder %s52, %s54
      %p61 = scmp.eq.s32.totalorder %s23, 1
      %p62 = por %p60, %p61
      %p63 = scmp.ne.s32.totalorder %s54, %s55
      %p64 = scmp.eq.s32.totalorder %s23, 0
      %p65 = por %p63, %p64
      %p66 = scmp.ne.s32.totalorder %s54, %s55
      %p67 = scmp.eq.s32.totalorder %s24, 1
      %p68 = por %p66, %p67
      %p70 = scmp.ne.s32.totalorder %s55, %s69
      %p71 = scmp.eq.s32.totalorder %s24, 0
      %p72 = por %p70, %p71
      %s74 = sadd.s32 %s73, 1
      %p77 = scmp.eq.s32.totalorder %s18, 1
      %p78 = scmp.ne.s32.totalorder %s73, %s75
      %p79 = scmp.eq.s32.totalorder %s18, 0
      %p80 = por %p78, %p79
      %p81 = scmp.ne.s32.totalorder %s73, %s75
      %p82 = scmp.eq.s32.totalorder %s23, 1
      %p83 = por %p81, %p82
      %p84 = scmp.ne.s32.totalorder %s75, %s76
      %p85 = scmp.eq.s32.totalorder %s23, 0
      %p86 = por %p84, %p85
      %p87 = scmp.ne.s32.totalorder %s75, %s76
      %p88 = scmp.eq.s32.totalorder %s24, 1
      %p89 = por %p87, %p88
      %p91 = scmp.ne.s32.totalorder %s76, %s90
      %p92 = scmp.eq.s32.totalorder %s24, 0
      %p93 = por %p91, %p92
      %s95 = sadd.s32 %s94, 1
      %p98 = scmp.eq.s32.totalorder %s18, 1
      %p99 = scmp.ne.s32.totalorder %s94, %s96
      %p100 = scmp.eq.s32.totalorder %s18, 0
      %p101 = por %p99, %p100
      %p102 = scmp.ne.s32.totalorder %s94, %s96
      %p103 = scmp.eq.s32.totalorder %s23, 1
      %p104 = por %p102, %p103
      %p105 = scmp.ne.s32.totalorder %s96, %s97
      %p106 = scmp.eq.s32.totalorder %s23, 0
      %p107 = por %p105, %p106
      %p108 = scmp.ne.s32.totalorder %s96, %s97
      %p109 = scmp.eq.s32.totalorder %s24, 1
      %p110 = por %p108, %p109
      %p112 = scmp.ne.s32.totalorder %s97, %s111
      %p113 = scmp.eq.s32.totalorder %s24, 0
      %p114 = por %p112, %p113
      %s116 = sadd.s32 %s115, 1
      %p119 = scmp.eq.s32.totalorder %s18, 1
      %p120 = scmp.ne.s32.totalorder %s115, %s117
      %p121 = scmp.eq.s32.totalorder %s18, 0
      %p122 = por %p120, %p121
      %p123 = scmp.ne.s32.totalorder %s115, %s117
      %p124 = scmp.eq.s32.totalorder %s23, 1
      %p125 = por %p123, %p124
      %p126 = scmp.ne.s32.totalorder %s117, %s118
      %p127 = scmp.eq.s32.totalorder %s23, 0
      %p128 = por %p126, %p127
      %p129 = scmp.ne.s32.totalorder %s117, %s118
      %p130 = scmp.eq.s32.totalorder %s24, 1
      %p131 = por %p129, %p130
      %p133 = scmp.ne.s32.totalorder %s118, %s132
      %p134 = scmp.eq.s32.totalorder %s24, 0
      %p135 = por %p133, %p134
      %s136 = ssub.s32 %s18, %s25
      %p137 = scmp.eq.s32.totalorder %s136, 0
      %s139 = sadd.s32 %s138, 1
      %s140 = scalar_select %p137, %s138, %s139
      %p143 = pneg %p137
      %p144 = scmp.eq.s32.totalorder %s18, 1
      %p145 = por %p143, %p144
      %p146 = scmp.ne.s32.totalorder %s138, %s141
      %p147 = scmp.eq.s32.totalorder %s18, 0
      %p148 = por %p146, %p147
      %p149 = scmp.ne.s32.totalorder %s138, %s141
      %p150 = scmp.eq.s32.totalorder %s23, 1
      %p151 = por %p149, %p150
      %p152 = scmp.ne.s32.totalorder %s141, %s142
      %p153 = scmp.eq.s32.totalorder %s23, 0
      %p154 = por %p152, %p153
      %p155 = scmp.ne.s32.totalorder %s141, %s142
      %p156 = scmp.eq.s32.totalorder %s24, 1
      %p157 = por %p155, %p156
      %p159 = scmp.ne.s32.totalorder %s142, %s158
      %p160 = scmp.eq.s32.totalorder %s24, 0
      %p161 = por %p159, %p160
      %p162 = scmp.le.s32.totalorder 1, %s18
      %p163 = scmp.lt.s32.totalorder %s18, 3
      %p164 = pnand %p162, %p163
      %p165 = pneg %p164
      // Predicated region
      $region9: #{tpu_custom_call.1} parent=5 // pred_check
        _
      $region10: #{tpu_custom_call.1} parent=5 // pred_check_branch
        %167 = sbr.rel (%p164) target = $region12
      $region11: #{tpu_custom_call.1} parent=5 // pred_region
        %s168 = ssub.s32 %s18, 1
        // Predicated region
        $region13: #{tpu_custom_call.1} parent=11 // pred_check
          %p169 = pneg %p65
        $region14: #{tpu_custom_call.1} parent=11 // pred_check_branch
          %171 = sbr.rel (%p169) target = $region16
        $region15: #{tpu_custom_call.1} parent=11 // pred_region
          %173 = vsyncadd [#allocation8], 0
          %s174 = sshll.u32 %s1, 4
          %s175 = int_to_ptr.hbm [resolvable:$true] %s174
          %s176 = sshll.u32 [#allocation7], 4
          %s177 = int_to_ptr.vmem [resolvable:$true] %s176
          %182 = dma.hbm_to_vmem [thread:$0]  %s175, 18432, %s177, [#allocation8], 128, 128, 8
        $region16: #{tpu_custom_call.1} parent=11 // pred_fallthru
          _
        // Predicated region
        $region17: #{tpu_custom_call.1} parent=11 // pred_check
          %p183 = pneg %p86
        $region18: #{tpu_custom_call.1} parent=11 // pred_check_branch
          %185 = sbr.rel (%p183) target = $region20
        $region19: #{tpu_custom_call.1} parent=11 // pred_region
          _
        $region20: #{tpu_custom_call.1} parent=11 // pred_fallthru
          _
        // Predicated region
        $region21: #{tpu_custom_call.1} parent=11 // pred_check
          %p186 = pneg %p107
        $region22: #{tpu_custom_call.1} parent=11 // pred_check_branch
          %188 = sbr.rel (%p186) target = $region24
        $region23: #{tpu_custom_call.1} parent=11 // pred_region
          %190 = vsyncadd [#allocation8], 0
          %s191 = sshll.u32 %s3, 4
          %s192 = int_to_ptr.hbm [resolvable:$true] %s191
          %s193 = sshll.u32 [#allocation9], 4
          %s194 = int_to_ptr.vmem [resolvable:$true] %s193
          %199 = dma.hbm_to_vmem [thread:$0]  %s192, 18432, %s194, [#allocation8], 128, 128, 8
        $region24: #{tpu_custom_call.1} parent=11 // pred_fallthru
          _
        // Predicated region
        $region25: #{tpu_custom_call.1} parent=11 // pred_check
          %p200 = pneg %p128
        $region26: #{tpu_custom_call.1} parent=11 // pred_check_branch
          %202 = sbr.rel (%p200) target = $region28
        $region27: #{tpu_custom_call.1} parent=11 // pred_region
          _
        $region28: #{tpu_custom_call.1} parent=11 // pred_fallthru
          _
      $region12: #{tpu_custom_call.1} parent=5 // pred_fallthru
        _
      %p203 = scmp.lt.s32.totalorder %s18, 2
      // Predicated region
      $region29: #{tpu_custom_call.1} parent=5 // pred_check
        %p204 = pneg %p203
      $region30: #{tpu_custom_call.1} parent=5 // pred_check_branch
        %206 = sbr.rel (%p204) target = $region32
      $region31: #{tpu_custom_call.1} parent=5 // pred_region
        // Predicated region
        $region33: #{tpu_custom_call.1} parent=31 // pred_check
          %p207 = pneg %p38
        $region34: #{tpu_custom_call.1} parent=31 // pred_check_branch
          %209 = sbr.rel (%p207) target = $region36
        $region35: #{tpu_custom_call.1} parent=31 // pred_region
          %s210 = sand.u32 %s28, 1
          %s211 = scalar_lea.sflag [#allocation5], %s210
          %s212 = sand.u32 %s28, 1
          %s213 = smul.addr %s212, 256
          %s214 = scalar_lea.vmem [#allocation4], %s213
          %216 = vsyncadd %s211, 0
          %s217 = smul.addr %s18, 32
          %s218 = smul.addr %s217, 8
          %s219 = scalar_lea.hbm %s0, %s218
          %s220 = sshll.u32 %s219, 4
          %s221 = int_to_ptr.hbm [resolvable:$true] %s220
          %s222 = sshll.u32 %s214, 4
          %s223 = int_to_ptr.vmem [resolvable:$true] %s222
          %228 = dma.hbm_to_vmem [thread:$0]  %s221, 4096, %s223, %s211, 128, 128, 8
        $region36: #{tpu_custom_call.1} parent=31 // pred_fallthru
          _
      $region32: #{tpu_custom_call.1} parent=5 // pred_fallthru
        _
      %p229 = scmp.le.s32.totalorder 1, %s18
      %p230 = scmp.lt.s32.totalorder %s18, 3
      %p231 = pnand %p229, %p230
      %p232 = pneg %p231
      // Predicated region
      $region37: #{tpu_custom_call.1} parent=5 // pred_check
        _
      $region38: #{tpu_custom_call.1} parent=5 // pred_check_branch
        %234 = sbr.rel (%p231) target = $region40
      $region39: #{tpu_custom_call.1} parent=5 // pred_region
        %s235 = ssub.s32 %s18, 1
        %s236 = sand.u32 %s31, 1
        %s237 = scalar_lea.sflag [#allocation5], %s236
        %s238 = sand.u32 %s31, 1
        %s239 = smul.addr %s238, 256
        %s240 = scalar_lea.vmem [#allocation4], %s239
        // Predicated region
        $region41: #{tpu_custom_call.1} parent=39 // pred_check
          %p241 = pneg %p44
        $region42: #{tpu_custom_call.1} parent=39 // pred_check_branch
          %243 = sbr.rel (%p241) target = $region44
        $region43: #{tpu_custom_call.1} parent=39 // pred_region
          %245 = dma.done %s237, 4096
        $region44: #{tpu_custom_call.1} parent=39 // pred_fallthru
          _
        // Predicated region
        $region45: #{tpu_custom_call.1} parent=39 // pred_check
          %p246 = pneg %p65
        $region46: #{tpu_custom_call.1} parent=39 // pred_check_branch
          %248 = sbr.rel (%p246) target = $region48
        $region47: #{tpu_custom_call.1} parent=39 // pred_region
          %250 = dma.done [#allocation8], 18432
        $region48: #{tpu_custom_call.1} parent=39 // pred_fallthru
          _
        // Predicated region
        $region49: #{tpu_custom_call.1} parent=39 // pred_check
          %p251 = pneg %p107
        $region50: #{tpu_custom_call.1} parent=39 // pred_check_branch
          %253 = sbr.rel (%p251) target = $region52
        $region51: #{tpu_custom_call.1} parent=39 // pred_region
          %255 = dma.done [#allocation8], 18432
        $region52: #{tpu_custom_call.1} parent=39 // pred_fallthru
          _
        %s256 = sand.u32 %s31, 1
        %s257 = scalar_lea.sflag [#allocation5], %s256
        %s258 = sand.u32 %s31, 1
        %s259 = smul.addr %s258, 256
        %s260 = scalar_lea.vmem [#allocation4], %s259
        %p261 = pneg %p44
        %p262 = pneg %p41
        %p263 = pneg %p65
        %p264 = pneg %p62
        %p265 = pneg %p86
        %p266 = pneg %p83
        %p267 = pneg %p107
        %p268 = pneg %p104
        %p269 = pneg %p128
        %p270 = pneg %p125
        %p271 = pneg %p154
        %p272 = pneg %p151
        %s273 = sand.u32 %s141, 1
        %s274 = scalar_lea.sflag [#allocation6], %s273
        %s275 = sand.u32 %s141, 1
        %s276 = smul.addr %s275, 256
        %s277 = scalar_lea.vmem [#allocation10], %s276
        %278 = vst [vmem:[#allocation2] sm:$0xff] 0.0
        %279 = vst [vmem:[#allocation2 + $0x8] sm:$0xff] 0.0
        %280 = vst [vmem:[#allocation2 + $0x10] sm:$0x3] 0.0
        %281 = vst [vmem:[#allocation2 + $0x18] sm:$0xff] 0.0
        %282 = vst [vmem:[#allocation2 + $0x20] sm:$0xff] 0.0
        %283 = vst [vmem:[#allocation2 + $0x28] sm:$0x3] 0.0
        %284 = vst [vmem:[#allocation2 + $0x30] sm:$0xff] 0.0
        %285 = vst [vmem:[#allocation2 + $0x38] sm:$0xff] 0.0
        %286 = vst [vmem:[#allocation2 + $0x40] sm:$0x3] 0.0
        %287 = vst [vmem:[#allocation2 + $0x48] sm:$0xff] 0.0
        %288 = vst [vmem:[#allocation2 + $0x50] sm:$0xff] 0.0
        %289 = vst [vmem:[#allocation2 + $0x58] sm:$0x3] 0.0
        %290 = vst [vmem:[#allocation2 + $0x60] sm:$0xff] 0.0
        %291 = vst [vmem:[#allocation2 + $0x68] sm:$0xff] 0.0
        %292 = vst [vmem:[#allocation2 + $0x70] sm:$0x3] 0.0
        %293 = vst [vmem:[#allocation2 + $0x78] sm:$0xff] 0.0
        %294 = vst [vmem:[#allocation2 + $0x80] sm:$0xff] 0.0
        %295 = vst [vmem:[#allocation2 + $0x88] sm:$0x3] 0.0
        %296 = vst [vmem:[#allocation2 + $0x90] sm:$0xff] 0.0
        %297 = vst [vmem:[#allocation2 + $0x98] sm:$0xff] 0.0
        %298 = vst [vmem:[#allocation2 + $0xa0] sm:$0x3] 0.0
        %299 = vst [vmem:[#allocation2 + $0xa8] sm:$0xff] 0.0
        %300 = vst [vmem:[#allocation2 + $0xb0] sm:$0xff] 0.0
        %301 = vst [vmem:[#allocation2 + $0xb8] sm:$0x3] 0.0
        %302 = vst [vmem:[#allocation2 + $0xc0] sm:$0xff] 0.0
        %303 = vst [vmem:[#allocation2 + $0xc8] sm:$0xff] 0.0
        %304 = vst [vmem:[#allocation2 + $0xd0] sm:$0x3] 0.0
        %305 = vst [vmem:[#allocation2 + $0xd8] sm:$0xff] 0.0
        %306 = vst [vmem:[#allocation2 + $0xe0] sm:$0xff] 0.0
        %307 = vst [vmem:[#allocation2 + $0xe8] sm:$0x3] 0.0
        %308 = vst [vmem:[#allocation2 + $0xf0] sm:$0xff] 0.0
        %309 = vst [vmem:[#allocation2 + $0xf8] sm:$0xff] 0.0
        %310 = vst [vmem:[#allocation2 + $0x100] sm:$0x3] 0.0
        %311 = vst [vmem:[#allocation2 + $0x108] sm:$0xff] 0.0
        %312 = vst [vmem:[#allocation2 + $0x110] sm:$0xff] 0.0
        %313 = vst [vmem:[#allocation2 + $0x118] sm:$0x3] 0.0
        %314 = vst [vmem:[#allocation2 + $0x120] sm:$0xff] 0.0
        %315 = vst [vmem:[#allocation2 + $0x128] sm:$0xff] 0.0
        %316 = vst [vmem:[#allocation2 + $0x130] sm:$0x3] 0.0
        %317 = vst [vmem:[#allocation2 + $0x138] sm:$0xff] 0.0
        %318 = vst [vmem:[#allocation2 + $0x140] sm:$0xff] 0.0
        %319 = vst [vmem:[#allocation2 + $0x148] sm:$0x3] 0.0
        %320 = vst [vmem:[#allocation2 + $0x150] sm:$0xff] 0.0
        %321 = vst [vmem:[#allocation2 + $0x158] sm:$0xff] 0.0
        %322 = vst [vmem:[#allocation2 + $0x160] sm:$0x3] 0.0
        %323 = vst [vmem:[#allocation2 + $0x168] sm:$0xff] 0.0
        %324 = vst [vmem:[#allocation2 + $0x170] sm:$0xff] 0.0
        %325 = vst [vmem:[#allocation2 + $0x178] sm:$0x3] 0.0
        %326 = vst [vmem:[#allocation2 + $0x180] sm:$0xff] 0.0
        %327 = vst [vmem:[#allocation2 + $0x188] sm:$0xff] 0.0
        %328 = vst [vmem:[#allocation2 + $0x190] sm:$0x3] 0.0
        %329 = vst [vmem:[#allocation2 + $0x198] sm:$0xff] 0.0
        %330 = vst [vmem:[#allocation2 + $0x1a0] sm:$0xff] 0.0
        %331 = vst [vmem:[#allocation2 + $0x1a8] sm:$0x3] 0.0
        %v332 = vld [vmem:[%s240] sm:$0xff]
        %v333 = vld [vmem:[%s240 + $0x8] sm:$0xff]
        %v334 = vld [vmem:[%s240 + $0x10] sm:$0xff]
        %v335 = vld [vmem:[%s240 + $0x18] sm:$0xff]
        %v336 = vld [vmem:[%s240 + $0x20] sm:$0xff]
        %v337 = vld [vmem:[%s240 + $0x28] sm:$0xff]
        %v338 = vld [vmem:[%s240 + $0x30] sm:$0xff]
        %v339 = vld [vmem:[%s240 + $0x38] sm:$0xff]
        %v340 = vld [vmem:[%s240 + $0x40] sm:$0xff]
        %v341 = vld [vmem:[%s240 + $0x48] sm:$0xff]
        %v342 = vld [vmem:[%s240 + $0x50] sm:$0xff]
        %v343 = vld [vmem:[%s240 + $0x58] sm:$0xff]
        %v344 = vld [vmem:[%s240 + $0x60] sm:$0xff]
        %v345 = vld [vmem:[%s240 + $0x68] sm:$0xff]
        %v346 = vld [vmem:[%s240 + $0x70] sm:$0xff]
        %v347 = vld [vmem:[%s240 + $0x78] sm:$0xff]
        %v348 = vld [vmem:[%s240 + $0x80] sm:$0xff]
        %v349 = vld [vmem:[%s240 + $0x88] sm:$0xff]
        %v350 = vld [vmem:[%s240 + $0x90] sm:$0xff]
        %v351 = vld [vmem:[%s240 + $0x98] sm:$0xff]
        %v352 = vld [vmem:[%s240 + $0xa0] sm:$0xff]
        %v353 = vld [vmem:[%s240 + $0xa8] sm:$0xff]
        %v354 = vld [vmem:[%s240 + $0xb0] sm:$0xff]
        %v355 = vld [vmem:[%s240 + $0xb8] sm:$0xff]
        %v356 = vld [vmem:[%s240 + $0xc0] sm:$0xff]
        %v357 = vld [vmem:[%s240 + $0xc8] sm:$0xff]
        %v358 = vld [vmem:[%s240 + $0xd0] sm:$0xff]
        %v359 = vld [vmem:[%s240 + $0xd8] sm:$0xff]
        %v360 = vld [vmem:[%s240 + $0xe0] sm:$0xff]
        %v361 = vld [vmem:[%s240 + $0xe8] sm:$0xff]
        %v362 = vld [vmem:[%s240 + $0xf0] sm:$0xff]
        %v363 = vld [vmem:[%s240 + $0xf8] sm:$0xff]
        %s364 = scalar_lea.vmem [#allocation2], 24
        %365 = vst [vmem:[%s364 + $0x1] sm:$0xff] %v332
        %366 = vst [vmem:[%s364 + $0x9] sm:$0xff] %v333
        %367 = vst [vmem:[%s364 + $0x19] sm:$0xff] %v334
        %368 = vst [vmem:[%s364 + $0x21] sm:$0xff] %v335
        %369 = vst [vmem:[%s364 + $0x31] sm:$0xff] %v336
        %370 = vst [vmem:[%s364 + $0x39] sm:$0xff] %v337
        %371 = vst [vmem:[%s364 + $0x49] sm:$0xff] %v338
        %372 = vst [vmem:[%s364 + $0x51] sm:$0xff] %v339
        %373 = vst [vmem:[%s364 + $0x61] sm:$0xff] %v340
        %374 = vst [vmem:[%s364 + $0x69] sm:$0xff] %v341
        %375 = vst [vmem:[%s364 + $0x79] sm:$0xff] %v342
        %376 = vst [vmem:[%s364 + $0x81] sm:$0xff] %v343
        %377 = vst [vmem:[%s364 + $0x91] sm:$0xff] %v344
        %378 = vst [vmem:[%s364 + $0x99] sm:$0xff] %v345
        %379 = vst [vmem:[%s364 + $0xa9] sm:$0xff] %v346
        %380 = vst [vmem:[%s364 + $0xb1] sm:$0xff] %v347
        %381 = vst [vmem:[%s364 + $0xc1] sm:$0xff] %v348
        %382 = vst [vmem:[%s364 + $0xc9] sm:$0xff] %v349
        %383 = vst [vmem:[%s364 + $0xd9] sm:$0xff] %v350
        %384 = vst [vmem:[%s364 + $0xe1] sm:$0xff] %v351
        %385 = vst [vmem:[%s364 + $0xf1] sm:$0xff] %v352
        %386 = vst [vmem:[%s364 + $0xf9] sm:$0xff] %v353
        %387 = vst [vmem:[%s364 + $0x109] sm:$0xff] %v354
        %388 = vst [vmem:[%s364 + $0x111] sm:$0xff] %v355
        %389 = vst [vmem:[%s364 + $0x121] sm:$0xff] %v356
        %390 = vst [vmem:[%s364 + $0x129] sm:$0xff] %v357
        %391 = vst [vmem:[%s364 + $0x139] sm:$0xff] %v358
        %392 = vst [vmem:[%s364 + $0x141] sm:$0xff] %v359
        %393 = vst [vmem:[%s364 + $0x151] sm:$0xff] %v360
        %394 = vst [vmem:[%s364 + $0x159] sm:$0xff] %v361
        %395 = vst [vmem:[%s364 + $0x169] sm:$0xff] %v362
        %396 = vst [vmem:[%s364 + $0x171] sm:$0xff] %v363
        %v397 = vld [vmem:[#allocation7] sm:$0xff]
        %v398 = vld [vmem:[#allocation7 + $0x8] sm:$0xff]
        %v399 = vld [vmem:[#allocation7 + $0x10] sm:$0xff]
        %v400 = vld [vmem:[#allocation7 + $0x18] sm:$0xff]
        %v401 = vld [vmem:[#allocation7 + $0x20] sm:$0xff]
        %v402 = vld [vmem:[#allocation7 + $0x28] sm:$0xff]
        %v403 = vld [vmem:[#allocation7 + $0x30] sm:$0xff]
        %v404 = vld [vmem:[#allocation7 + $0x38] sm:$0xff]
        %v405 = vld [vmem:[#allocation7 + $0x40] sm:$0xff]
        %v406 = vld [vmem:[#allocation7 + $0x48] sm:$0xff]
        %v407 = vld [vmem:[#allocation7 + $0x50] sm:$0xff]
        %v408 = vld [vmem:[#allocation7 + $0x58] sm:$0xff]
        %v409 = vld [vmem:[#allocation7 + $0x60] sm:$0xff]
        %v410 = vld [vmem:[#allocation7 + $0x68] sm:$0xff]
        %v411 = vld [vmem:[#allocation7 + $0x70] sm:$0xff]
        %v412 = vld [vmem:[#allocation7 + $0x78] sm:$0xff]
        %v413 = vld [vmem:[#allocation7 + $0x80] sm:$0xff]
        %v414 = vld [vmem:[#allocation7 + $0x88] sm:$0xff]
        %v415 = vld [vmem:[#allocation7 + $0x90] sm:$0xff]
        %v416 = vld [vmem:[#allocation7 + $0x98] sm:$0xff]
        %v417 = vld [vmem:[#allocation7 + $0xa0] sm:$0xff]
        %v418 = vld [vmem:[#allocation7 + $0xa8] sm:$0xff]
        %v419 = vld [vmem:[#allocation7 + $0xb0] sm:$0xff]
        %v420 = vld [vmem:[#allocation7 + $0xb8] sm:$0xff]
        %v421 = vld [vmem:[#allocation7 + $0xc0] sm:$0xff]
        %v422 = vld [vmem:[#allocation7 + $0xc8] sm:$0xff]
        %v423 = vld [vmem:[#allocation7 + $0xd0] sm:$0xff]
        %v424 = vld [vmem:[#allocation7 + $0xd8] sm:$0xff]
        %v425 = vld [vmem:[#allocation7 + $0xe0] sm:$0xff]
        %v426 = vld [vmem:[#allocation7 + $0xe8] sm:$0xff]
        %v427 = vld [vmem:[#allocation7 + $0xf0] sm:$0xff]
        %v428 = vld [vmem:[#allocation7 + $0xf8] sm:$0xff]
        %v429 = vld [vmem:[#allocation7 + $0x100] sm:$0xff]
        %v430 = vld [vmem:[#allocation7 + $0x108] sm:$0xff]
        %v431 = vld [vmem:[#allocation7 + $0x110] sm:$0xff]
        %v432 = vld [vmem:[#allocation7 + $0x118] sm:$0xff]
        %v433 = vld [vmem:[#allocation7 + $0x120] sm:$0xff]
        %v434 = vld [vmem:[#allocation7 + $0x128] sm:$0xff]
        %v435 = vld [vmem:[#allocation7 + $0x130] sm:$0xff]
        %v436 = vld [vmem:[#allocation7 + $0x138] sm:$0xff]
        %v437 = vld [vmem:[#allocation7 + $0x140] sm:$0xff]
        %v438 = vld [vmem:[#allocation7 + $0x148] sm:$0xff]
        %v439 = vld [vmem:[#allocation7 + $0x150] sm:$0xff]
        %v440 = vld [vmem:[#allocation7 + $0x158] sm:$0xff]
        %v441 = vld [vmem:[#allocation7 + $0x160] sm:$0xff]
        %v442 = vld [vmem:[#allocation7 + $0x168] sm:$0xff]
        %v443 = vld [vmem:[#allocation7 + $0x170] sm:$0xff]
        %v444 = vld [vmem:[#allocation7 + $0x178] sm:$0xff]
        %v445 = vld [vmem:[#allocation7 + $0x180] sm:$0xff]
        %v446 = vld [vmem:[#allocation7 + $0x188] sm:$0xff]
        %v447 = vld [vmem:[#allocation7 + $0x190] sm:$0xff]
        %v448 = vld [vmem:[#allocation7 + $0x198] sm:$0xff]
        %v449 = vld [vmem:[#allocation7 + $0x1a0] sm:$0xff]
        %v450 = vld [vmem:[#allocation7 + $0x1a8] sm:$0xff]
        %v451 = vld [vmem:[#allocation7 + $0x1b0] sm:$0xff]
        %v452 = vld [vmem:[#allocation7 + $0x1b8] sm:$0xff]
        %v453 = vld [vmem:[#allocation7 + $0x1c0] sm:$0xff]
        %v454 = vld [vmem:[#allocation7 + $0x1c8] sm:$0xff]
        %v455 = vld [vmem:[#allocation7 + $0x1d0] sm:$0xff]
        %v456 = vld [vmem:[#allocation7 + $0x1d8] sm:$0xff]
        %v457 = vld [vmem:[#allocation7 + $0x1e0] sm:$0xff]
        %v458 = vld [vmem:[#allocation7 + $0x1e8] sm:$0xff]
        %v459 = vld [vmem:[#allocation7 + $0x1f0] sm:$0xff]
        %v460 = vld [vmem:[#allocation7 + $0x1f8] sm:$0xff]
        %v461 = vld [vmem:[#allocation7 + $0x200] sm:$0xff]
        %v462 = vld [vmem:[#allocation7 + $0x208] sm:$0xff]
        %v463 = vld [vmem:[#allocation7 + $0x210] sm:$0xff]
        %v464 = vld [vmem:[#allocation7 + $0x218] sm:$0xff]
        %v465 = vld [vmem:[#allocation7 + $0x220] sm:$0xff]
        %v466 = vld [vmem:[#allocation7 + $0x228] sm:$0xff]
        %v467 = vld [vmem:[#allocation7 + $0x230] sm:$0xff]
        %v468 = vld [vmem:[#allocation7 + $0x238] sm:$0xff]
        %v469 = vld [vmem:[#allocation7 + $0x240] sm:$0xff]
        %v470 = vld [vmem:[#allocation7 + $0x248] sm:$0xff]
        %v471 = vld [vmem:[#allocation7 + $0x250] sm:$0xff]
        %v472 = vld [vmem:[#allocation7 + $0x258] sm:$0xff]
        %v473 = vld [vmem:[#allocation7 + $0x260] sm:$0xff]
        %v474 = vld [vmem:[#allocation7 + $0x268] sm:$0xff]
        %v475 = vld [vmem:[#allocation7 + $0x270] sm:$0xff]
        %v476 = vld [vmem:[#allocation7 + $0x278] sm:$0xff]
        %v477 = vld [vmem:[#allocation7 + $0x280] sm:$0xff]
        %v478 = vld [vmem:[#allocation7 + $0x288] sm:$0xff]
        %v479 = vld [vmem:[#allocation7 + $0x290] sm:$0xff]
        %v480 = vld [vmem:[#allocation7 + $0x298] sm:$0xff]
        %v481 = vld [vmem:[#allocation7 + $0x2a0] sm:$0xff]
        %v482 = vld [vmem:[#allocation7 + $0x2a8] sm:$0xff]
        %v483 = vld [vmem:[#allocation7 + $0x2b0] sm:$0xff]
        %v484 = vld [vmem:[#allocation7 + $0x2b8] sm:$0xff]
        %v485 = vld [vmem:[#allocation7 + $0x2c0] sm:$0xff]
        %v486 = vld [vmem:[#allocation7 + $0x2c8] sm:$0xff]
        %v487 = vld [vmem:[#allocation7 + $0x2d0] sm:$0xff]
        %v488 = vld [vmem:[#allocation7 + $0x2d8] sm:$0xff]
        %v489 = vld [vmem:[#allocation7 + $0x2e0] sm:$0xff]
        %v490 = vld [vmem:[#allocation7 + $0x2e8] sm:$0xff]
        %v491 = vld [vmem:[#allocation7 + $0x2f0] sm:$0xff]
        %v492 = vld [vmem:[#allocation7 + $0x2f8] sm:$0xff]
        %v493 = vld [vmem:[#allocation7 + $0x300] sm:$0xff]
        %v494 = vld [vmem:[#allocation7 + $0x308] sm:$0xff]
        %v495 = vld [vmem:[#allocation7 + $0x310] sm:$0xff]
        %v496 = vld [vmem:[#allocation7 + $0x318] sm:$0xff]
        %v497 = vld [vmem:[#allocation7 + $0x320] sm:$0xff]
        %v498 = vld [vmem:[#allocation7 + $0x328] sm:$0xff]
        %v499 = vld [vmem:[#allocation7 + $0x330] sm:$0xff]
        %v500 = vld [vmem:[#allocation7 + $0x338] sm:$0xff]
        %v501 = vld [vmem:[#allocation7 + $0x340] sm:$0xff]
        %v502 = vld [vmem:[#allocation7 + $0x348] sm:$0xff]
        %v503 = vld [vmem:[#allocation7 + $0x350] sm:$0xff]
        %v504 = vld [vmem:[#allocation7 + $0x358] sm:$0xff]
        %v505 = vld [vmem:[#allocation7 + $0x360] sm:$0xff]
        %v506 = vld [vmem:[#allocation7 + $0x368] sm:$0xff]
        %v507 = vld [vmem:[#allocation7 + $0x370] sm:$0xff]
        %v508 = vld [vmem:[#allocation7 + $0x378] sm:$0xff]
        %v509 = vld [vmem:[#allocation7 + $0x380] sm:$0xff]
        %v510 = vld [vmem:[#allocation7 + $0x388] sm:$0xff]
        %v511 = vld [vmem:[#allocation7 + $0x390] sm:$0xff]
        %v512 = vld [vmem:[#allocation7 + $0x398] sm:$0xff]
        %v513 = vld [vmem:[#allocation7 + $0x3a0] sm:$0xff]
        %v514 = vld [vmem:[#allocation7 + $0x3a8] sm:$0xff]
        %v515 = vld [vmem:[#allocation7 + $0x3b0] sm:$0xff]
        %v516 = vld [vmem:[#allocation7 + $0x3b8] sm:$0xff]
        %v517 = vld [vmem:[#allocation7 + $0x3c0] sm:$0xff]
        %v518 = vld [vmem:[#allocation7 + $0x3c8] sm:$0xff]
        %v519 = vld [vmem:[#allocation7 + $0x3d0] sm:$0xff]
        %v520 = vld [vmem:[#allocation7 + $0x3d8] sm:$0xff]
        %v521 = vld [vmem:[#allocation7 + $0x3e0] sm:$0xff]
        %v522 = vld [vmem:[#allocation7 + $0x3e8] sm:$0xff]
        %v523 = vld [vmem:[#allocation7 + $0x3f0] sm:$0xff]
        %v524 = vld [vmem:[#allocation7 + $0x3f8] sm:$0xff]
        %v525 = vld [vmem:[#allocation7 + $0x400] sm:$0xff]
        %v526 = vld [vmem:[#allocation7 + $0x408] sm:$0xff]
        %v527 = vld [vmem:[#allocation7 + $0x410] sm:$0xff]
        %v528 = vld [vmem:[#allocation7 + $0x418] sm:$0xff]
        %v529 = vld [vmem:[#allocation7 + $0x420] sm:$0xff]
        %v530 = vld [vmem:[#allocation7 + $0x428] sm:$0xff]
        %v531 = vld [vmem:[#allocation7 + $0x430] sm:$0xff]
        %v532 = vld [vmem:[#allocation7 + $0x438] sm:$0xff]
        %v533 = vld [vmem:[#allocation7 + $0x440] sm:$0xff]
        %v534 = vld [vmem:[#allocation7 + $0x448] sm:$0xff]
        %v535 = vld [vmem:[#allocation7 + $0x450] sm:$0xff]
        %v536 = vld [vmem:[#allocation7 + $0x458] sm:$0xff]
        %v537 = vld [vmem:[#allocation7 + $0x460] sm:$0xff]
        %v538 = vld [vmem:[#allocation7 + $0x468] sm:$0xff]
        %v539 = vld [vmem:[#allocation7 + $0x470] sm:$0xff]
        %v540 = vld [vmem:[#allocation7 + $0x478] sm:$0xff]
        %v541 = vld [vmem:[%s2] sm:$0x1]
        %v542 = vld [vmem:[#allocation2] sm:$0xff]
        %v543 = vld [vmem:[#allocation2 + $0x8] sm:$0xff]
        %v544 = vld [vmem:[#allocation2 + $0x18] sm:$0xff]
        %v545 = vld [vmem:[#allocation2 + $0x20] sm:$0xff]
        %v546 = vld [vmem:[#allocation2 + $0x30] sm:$0xff]
        %v547 = vld [vmem:[#allocation2 + $0x38] sm:$0xff]
        %v548 = vld [vmem:[#allocation2 + $0x48] sm:$0xff]
        %v549 = vld [vmem:[#allocation2 + $0x50] sm:$0xff]
        %v550 = vld [vmem:[#allocation2 + $0x60] sm:$0xff]
        %v551 = vld [vmem:[#allocation2 + $0x68] sm:$0xff]
        %v552 = vld [vmem:[#allocation2 + $0x78] sm:$0xff]
        %v553 = vld [vmem:[#allocation2 + $0x80] sm:$0xff]
        %v554 = vld [vmem:[#allocation2 + $0x90] sm:$0xff]
        %v555 = vld [vmem:[#allocation2 + $0x98] sm:$0xff]
        %v556 = vld [vmem:[#allocation2 + $0xa8] sm:$0xff]
        %v557 = vld [vmem:[#allocation2 + $0xb0] sm:$0xff]
        %v558 = vld [vmem:[#allocation2 + $0xc0] sm:$0xff]
        %v559 = vld [vmem:[#allocation2 + $0xc8] sm:$0xff]
        %v560 = vld [vmem:[#allocation2 + $0xd8] sm:$0xff]
        %v561 = vld [vmem:[#allocation2 + $0xe0] sm:$0xff]
        %v562 = vld [vmem:[#allocation2 + $0xf0] sm:$0xff]
        %v563 = vld [vmem:[#allocation2 + $0xf8] sm:$0xff]
        %v564 = vld [vmem:[#allocation2 + $0x108] sm:$0xff]
        %v565 = vld [vmem:[#allocation2 + $0x110] sm:$0xff]
        %v566 = vld [vmem:[#allocation2 + $0x120] sm:$0xff]
        %v567 = vld [vmem:[#allocation2 + $0x128] sm:$0xff]
        %v568 = vld [vmem:[#allocation2 + $0x138] sm:$0xff]
        %v569 = vld [vmem:[#allocation2 + $0x140] sm:$0xff]
        %v570 = vld [vmem:[#allocation2 + $0x150] sm:$0xff]
        %v571 = vld [vmem:[#allocation2 + $0x158] sm:$0xff]
        %v572 = vld [vmem:[#allocation2 + $0x168] sm:$0xff]
        %v573 = vld [vmem:[#allocation2 + $0x170] sm:$0xff]
        %v574 = vld [vmem:[#allocation2 + $0x1] sm:$0xff]
        %v575 = vld [vmem:[#allocation2 + $0x9] sm:$0xff]
        %v576 = vld [vmem:[#allocation2 + $0x19] sm:$0xff]
        %v577 = vld [vmem:[#allocation2 + $0x21] sm:$0xff]
        %v578 = vld [vmem:[#allocation2 + $0x31] sm:$0xff]
        %v579 = vld [vmem:[#allocation2 + $0x39] sm:$0xff]
        %v580 = vld [vmem:[#allocation2 + $0x49] sm:$0xff]
        %v581 = vld [vmem:[#allocation2 + $0x51] sm:$0xff]
        %v582 = vld [vmem:[#allocation2 + $0x61] sm:$0xff]
        %v583 = vld [vmem:[#allocation2 + $0x69] sm:$0xff]
        %v584 = vld [vmem:[#allocation2 + $0x79] sm:$0xff]
        %v585 = vld [vmem:[#allocation2 + $0x81] sm:$0xff]
        %v586 = vld [vmem:[#allocation2 + $0x91] sm:$0xff]
        %v587 = vld [vmem:[#allocation2 + $0x99] sm:$0xff]
        %v588 = vld [vmem:[#allocation2 + $0xa9] sm:$0xff]
        %v589 = vld [vmem:[#allocation2 + $0xb1] sm:$0xff]
        %v590 = vld [vmem:[#allocation2 + $0xc1] sm:$0xff]
        %v591 = vld [vmem:[#allocation2 + $0xc9] sm:$0xff]
        %v592 = vld [vmem:[#allocation2 + $0xd9] sm:$0xff]
        %v593 = vld [vmem:[#allocation2 + $0xe1] sm:$0xff]
        %v594 = vld [vmem:[#allocation2 + $0xf1] sm:$0xff]
        %v595 = vld [vmem:[#allocation2 + $0xf9] sm:$0xff]
        %v596 = vld [vmem:[#allocation2 + $0x109] sm:$0xff]
        %v597 = vld [vmem:[#allocation2 + $0x111] sm:$0xff]
        %v598 = vld [vmem:[#allocation2 + $0x121] sm:$0xff]
        %v599 = vld [vmem:[#allocation2 + $0x129] sm:$0xff]
        %v600 = vld [vmem:[#allocation2 + $0x139] sm:$0xff]
        %v601 = vld [vmem:[#allocation2 + $0x141] sm:$0xff]
        %v602 = vld [vmem:[#allocation2 + $0x151] sm:$0xff]
        %v603 = vld [vmem:[#allocation2 + $0x159] sm:$0xff]
        %v604 = vld [vmem:[#allocation2 + $0x169] sm:$0xff]
        %v605 = vld [vmem:[#allocation2 + $0x171] sm:$0xff]
        %v606 = vld [vmem:[#allocation2 + $0x2] sm:$0xff]
        %v607 = vld [vmem:[#allocation2 + $0xa] sm:$0xff]
        %v608 = vld [vmem:[#allocation2 + $0x1a] sm:$0xff]
        %v609 = vld [vmem:[#allocation2 + $0x22] sm:$0xff]
        %v610 = vld [vmem:[#allocation2 + $0x32] sm:$0xff]
        %v611 = vld [vmem:[#allocation2 + $0x3a] sm:$0xff]
        %v612 = vld [vmem:[#allocation2 + $0x4a] sm:$0xff]
        %v613 = vld [vmem:[#allocation2 + $0x52] sm:$0xff]
        %v614 = vld [vmem:[#allocation2 + $0x62] sm:$0xff]
        %v615 = vld [vmem:[#allocation2 + $0x6a] sm:$0xff]
        %v616 = vld [vmem:[#allocation2 + $0x7a] sm:$0xff]
        %v617 = vld [vmem:[#allocation2 + $0x82] sm:$0xff]
        %v618 = vld [vmem:[#allocation2 + $0x92] sm:$0xff]
        %v619 = vld [vmem:[#allocation2 + $0x9a] sm:$0xff]
        %v620 = vld [vmem:[#allocation2 + $0xaa] sm:$0xff]
        %v621 = vld [vmem:[#allocation2 + $0xb2] sm:$0xff]
        %v622 = vld [vmem:[#allocation2 + $0xc2] sm:$0xff]
        %v623 = vld [vmem:[#allocation2 + $0xca] sm:$0xff]
        %v624 = vld [vmem:[#allocation2 + $0xda] sm:$0xff]
        %v625 = vld [vmem:[#allocation2 + $0xe2] sm:$0xff]
        %v626 = vld [vmem:[#allocation2 + $0xf2] sm:$0xff]
        %v627 = vld [vmem:[#allocation2 + $0xfa] sm:$0xff]
        %v628 = vld [vmem:[#allocation2 + $0x10a] sm:$0xff]
        %v629 = vld [vmem:[#allocation2 + $0x112] sm:$0xff]
        %v630 = vld [vmem:[#allocation2 + $0x122] sm:$0xff]
        %v631 = vld [vmem:[#allocation2 + $0x12a] sm:$0xff]
        %v632 = vld [vmem:[#allocation2 + $0x13a] sm:$0xff]
        %v633 = vld [vmem:[#allocation2 + $0x142] sm:$0xff]
        %v634 = vld [vmem:[#allocation2 + $0x152] sm:$0xff]
        %v635 = vld [vmem:[#allocation2 + $0x15a] sm:$0xff]
        %v636 = vld [vmem:[#allocation2 + $0x16a] sm:$0xff]
        %v637 = vld [vmem:[#allocation2 + $0x172] sm:$0xff]
        %v638 = vld [vmem:[%s364] sm:$0xff]
        %v639 = vld [vmem:[%s364 + $0x8] sm:$0xff]
        %v640 = vld [vmem:[%s364 + $0x18] sm:$0xff]
        %v641 = vld [vmem:[%s364 + $0x20] sm:$0xff]
        %v642 = vld [vmem:[%s364 + $0x30] sm:$0xff]
        %v643 = vld [vmem:[%s364 + $0x38] sm:$0xff]
        %v644 = vld [vmem:[%s364 + $0x48] sm:$0xff]
        %v645 = vld [vmem:[%s364 + $0x50] sm:$0xff]
        %v646 = vld [vmem:[%s364 + $0x60] sm:$0xff]
        %v647 = vld [vmem:[%s364 + $0x68] sm:$0xff]
        %v648 = vld [vmem:[%s364 + $0x78] sm:$0xff]
        %v649 = vld [vmem:[%s364 + $0x80] sm:$0xff]
        %v650 = vld [vmem:[%s364 + $0x90] sm:$0xff]
        %v651 = vld [vmem:[%s364 + $0x98] sm:$0xff]
        %v652 = vld [vmem:[%s364 + $0xa8] sm:$0xff]
        %v653 = vld [vmem:[%s364 + $0xb0] sm:$0xff]
        %v654 = vld [vmem:[%s364 + $0xc0] sm:$0xff]
        %v655 = vld [vmem:[%s364 + $0xc8] sm:$0xff]
        %v656 = vld [vmem:[%s364 + $0xd8] sm:$0xff]
        %v657 = vld [vmem:[%s364 + $0xe0] sm:$0xff]
        %v658 = vld [vmem:[%s364 + $0xf0] sm:$0xff]
        %v659 = vld [vmem:[%s364 + $0xf8] sm:$0xff]
        %v660 = vld [vmem:[%s364 + $0x108] sm:$0xff]
        %v661 = vld [vmem:[%s364 + $0x110] sm:$0xff]
        %v662 = vld [vmem:[%s364 + $0x120] sm:$0xff]
        %v663 = vld [vmem:[%s364 + $0x128] sm:$0xff]
        %v664 = vld [vmem:[%s364 + $0x138] sm:$0xff]
        %v665 = vld [vmem:[%s364 + $0x140] sm:$0xff]
        %v666 = vld [vmem:[%s364 + $0x150] sm:$0xff]
        %v667 = vld [vmem:[%s364 + $0x158] sm:$0xff]
        %v668 = vld [vmem:[%s364 + $0x168] sm:$0xff]
        %v669 = vld [vmem:[%s364 + $0x170] sm:$0xff]
        %v670 = vld [vmem:[%s364 + $0x1] sm:$0xff]
        %v671 = vld [vmem:[%s364 + $0x9] sm:$0xff]
        %v672 = vld [vmem:[%s364 + $0x19] sm:$0xff]
        %v673 = vld [vmem:[%s364 + $0x21] sm:$0xff]
        %v674 = vld [vmem:[%s364 + $0x31] sm:$0xff]
        %v675 = vld [vmem:[%s364 + $0x39] sm:$0xff]
        %v676 = vld [vmem:[%s364 + $0x49] sm:$0xff]
        %v677 = vld [vmem:[%s364 + $0x51] sm:$0xff]
        %v678 = vld [vmem:[%s364 + $0x61] sm:$0xff]
        %v679 = vld [vmem:[%s364 + $0x69] sm:$0xff]
        %v680 = vld [vmem:[%s364 + $0x79] sm:$0xff]
        %v681 = vld [vmem:[%s364 + $0x81] sm:$0xff]
        %v682 = vld [vmem:[%s364 + $0x91] sm:$0xff]
        %v683 = vld [vmem:[%s364 + $0x99] sm:$0xff]
        %v684 = vld [vmem:[%s364 + $0xa9] sm:$0xff]
        %v685 = vld [vmem:[%s364 + $0xb1] sm:$0xff]
        %v686 = vld [vmem:[%s364 + $0xc1] sm:$0xff]
        %v687 = vld [vmem:[%s364 + $0xc9] sm:$0xff]
        %v688 = vld [vmem:[%s364 + $0xd9] sm:$0xff]
        %v689 = vld [vmem:[%s364 + $0xe1] sm:$0xff]
        %v690 = vld [vmem:[%s364 + $0xf1] sm:$0xff]
        %v691 = vld [vmem:[%s364 + $0xf9] sm:$0xff]
        %v692 = vld [vmem:[%s364 + $0x109] sm:$0xff]
        %v693 = vld [vmem:[%s364 + $0x111] sm:$0xff]
        %v694 = vld [vmem:[%s364 + $0x121] sm:$0xff]
        %v695 = vld [vmem:[%s364 + $0x129] sm:$0xff]
        %v696 = vld [vmem:[%s364 + $0x139] sm:$0xff]
        %v697 = vld [vmem:[%s364 + $0x141] sm:$0xff]
        %v698 = vld [vmem:[%s364 + $0x151] sm:$0xff]
        %v699 = vld [vmem:[%s364 + $0x159] sm:$0xff]
        %v700 = vld [vmem:[%s364 + $0x169] sm:$0xff]
        %v701 = vld [vmem:[%s364 + $0x171] sm:$0xff]
        %v702 = vld [vmem:[%s364 + $0x2] sm:$0xff]
        %v703 = vld [vmem:[%s364 + $0xa] sm:$0xff]
        %v704 = vld [vmem:[%s364 + $0x1a] sm:$0xff]
        %v705 = vld [vmem:[%s364 + $0x22] sm:$0xff]
        %v706 = vld [vmem:[%s364 + $0x32] sm:$0xff]
        %v707 = vld [vmem:[%s364 + $0x3a] sm:$0xff]
        %v708 = vld [vmem:[%s364 + $0x4a] sm:$0xff]
        %v709 = vld [vmem:[%s364 + $0x52] sm:$0xff]
        %v710 = vld [vmem:[%s364 + $0x62] sm:$0xff]
        %v711 = vld [vmem:[%s364 + $0x6a] sm:$0xff]
        %v712 = vld [vmem:[%s364 + $0x7a] sm:$0xff]
        %v713 = vld [vmem:[%s364 + $0x82] sm:$0xff]
        %v714 = vld [vmem:[%s364 + $0x92] sm:$0xff]
        %v715 = vld [vmem:[%s364 + $0x9a] sm:$0xff]
        %v716 = vld [vmem:[%s364 + $0xaa] sm:$0xff]
        %v717 = vld [vmem:[%s364 + $0xb2] sm:$0xff]
        %v718 = vld [vmem:[%s364 + $0xc2] sm:$0xff]
        %v719 = vld [vmem:[%s364 + $0xca] sm:$0xff]
        %v720 = vld [vmem:[%s364 + $0xda] sm:$0xff]
        %v721 = vld [vmem:[%s364 + $0xe2] sm:$0xff]
        %v722 = vld [vmem:[%s364 + $0xf2] sm:$0xff]
        %v723 = vld [vmem:[%s364 + $0xfa] sm:$0xff]
        %v724 = vld [vmem:[%s364 + $0x10a] sm:$0xff]
        %v725 = vld [vmem:[%s364 + $0x112] sm:$0xff]
        %v726 = vld [vmem:[%s364 + $0x122] sm:$0xff]
        %v727 = vld [vmem:[%s364 + $0x12a] sm:$0xff]
        %v728 = vld [vmem:[%s364 + $0x13a] sm:$0xff]
        %v729 = vld [vmem:[%s364 + $0x142] sm:$0xff]
        %v730 = vld [vmem:[%s364 + $0x152] sm:$0xff]
        %v731 = vld [vmem:[%s364 + $0x15a] sm:$0xff]
        %v732 = vld [vmem:[%s364 + $0x16a] sm:$0xff]
        %v733 = vld [vmem:[%s364 + $0x172] sm:$0xff]
        %s734 = scalar_lea.vmem [#allocation2], 48
        %v735 = vld [vmem:[%s734] sm:$0xff]
        %v736 = vld [vmem:[%s734 + $0x8] sm:$0xff]
        %v737 = vld [vmem:[%s734 + $0x18] sm:$0xff]
        %v738 = vld [vmem:[%s734 + $0x20] sm:$0xff]
        %v739 = vld [vmem:[%s734 + $0x30] sm:$0xff]
        %v740 = vld [vmem:[%s734 + $0x38] sm:$0xff]
        %v741 = vld [vmem:[%s734 + $0x48] sm:$0xff]
        %v742 = vld [vmem:[%s734 + $0x50] sm:$0xff]
        %v743 = vld [vmem:[%s734 + $0x60] sm:$0xff]
        %v744 = vld [vmem:[%s734 + $0x68] sm:$0xff]
        %v745 = vld [vmem:[%s734 + $0x78] sm:$0xff]
        %v746 = vld [vmem:[%s734 + $0x80] sm:$0xff]
        %v747 = vld [vmem:[%s734 + $0x90] sm:$0xff]
        %v748 = vld [vmem:[%s734 + $0x98] sm:$0xff]
        %v749 = vld [vmem:[%s734 + $0xa8] sm:$0xff]
        %v750 = vld [vmem:[%s734 + $0xb0] sm:$0xff]
        %v751 = vld [vmem:[%s734 + $0xc0] sm:$0xff]
        %v752 = vld [vmem:[%s734 + $0xc8] sm:$0xff]
        %v753 = vld [vmem:[%s734 + $0xd8] sm:$0xff]
        %v754 = vld [vmem:[%s734 + $0xe0] sm:$0xff]
        %v755 = vld [vmem:[%s734 + $0xf0] sm:$0xff]
        %v756 = vld [vmem:[%s734 + $0xf8] sm:$0xff]
        %v757 = vld [vmem:[%s734 + $0x108] sm:$0xff]
        %v758 = vld [vmem:[%s734 + $0x110] sm:$0xff]
        %v759 = vld [vmem:[%s734 + $0x120] sm:$0xff]
        %v760 = vld [vmem:[%s734 + $0x128] sm:$0xff]
        %v761 = vld [vmem:[%s734 + $0x138] sm:$0xff]
        %v762 = vld [vmem:[%s734 + $0x140] sm:$0xff]
        %v763 = vld [vmem:[%s734 + $0x150] sm:$0xff]
        %v764 = vld [vmem:[%s734 + $0x158] sm:$0xff]
        %v765 = vld [vmem:[%s734 + $0x168] sm:$0xff]
        %v766 = vld [vmem:[%s734 + $0x170] sm:$0xff]
        %v767 = vld [vmem:[%s734 + $0x1] sm:$0xff]
        %v768 = vld [vmem:[%s734 + $0x9] sm:$0xff]
        %v769 = vld [vmem:[%s734 + $0x19] sm:$0xff]
        %v770 = vld [vmem:[%s734 + $0x21] sm:$0xff]
        %v771 = vld [vmem:[%s734 + $0x31] sm:$0xff]
        %v772 = vld [vmem:[%s734 + $0x39] sm:$0xff]
        %v773 = vld [vmem:[%s734 + $0x49] sm:$0xff]
        %v774 = vld [vmem:[%s734 + $0x51] sm:$0xff]
        %v775 = vld [vmem:[%s734 + $0x61] sm:$0xff]
        %v776 = vld [vmem:[%s734 + $0x69] sm:$0xff]
        %v777 = vld [vmem:[%s734 + $0x79] sm:$0xff]
        %v778 = vld [vmem:[%s734 + $0x81] sm:$0xff]
        %v779 = vld [vmem:[%s734 + $0x91] sm:$0xff]
        %v780 = vld [vmem:[%s734 + $0x99] sm:$0xff]
        %v781 = vld [vmem:[%s734 + $0xa9] sm:$0xff]
        %v782 = vld [vmem:[%s734 + $0xb1] sm:$0xff]
        %v783 = vld [vmem:[%s734 + $0xc1] sm:$0xff]
        %v784 = vld [vmem:[%s734 + $0xc9] sm:$0xff]
        %v785 = vld [vmem:[%s734 + $0xd9] sm:$0xff]
        %v786 = vld [vmem:[%s734 + $0xe1] sm:$0xff]
        %v787 = vld [vmem:[%s734 + $0xf1] sm:$0xff]
        %v788 = vld [vmem:[%s734 + $0xf9] sm:$0xff]
        %v789 = vld [vmem:[%s734 + $0x109] sm:$0xff]
        %v790 = vld [vmem:[%s734 + $0x111] sm:$0xff]
        %v791 = vld [vmem:[%s734 + $0x121] sm:$0xff]
        %v792 = vld [vmem:[%s734 + $0x129] sm:$0xff]
        %v793 = vld [vmem:[%s734 + $0x139] sm:$0xff]
        %v794 = vld [vmem:[%s734 + $0x141] sm:$0xff]
        %v795 = vld [vmem:[%s734 + $0x151] sm:$0xff]
        %v796 = vld [vmem:[%s734 + $0x159] sm:$0xff]
        %v797 = vld [vmem:[%s734 + $0x169] sm:$0xff]
        %v798 = vld [vmem:[%s734 + $0x171] sm:$0xff]
        %v799 = vld [vmem:[%s734 + $0x2] sm:$0xff]
        %v800 = vld [vmem:[%s734 + $0xa] sm:$0xff]
        %v801 = vld [vmem:[%s734 + $0x1a] sm:$0xff]
        %v802 = vld [vmem:[%s734 + $0x22] sm:$0xff]
        %v803 = vld [vmem:[%s734 + $0x32] sm:$0xff]
        %v804 = vld [vmem:[%s734 + $0x3a] sm:$0xff]
        %v805 = vld [vmem:[%s734 + $0x4a] sm:$0xff]
        %v806 = vld [vmem:[%s734 + $0x52] sm:$0xff]
        %v807 = vld [vmem:[%s734 + $0x62] sm:$0xff]
        %v808 = vld [vmem:[%s734 + $0x6a] sm:$0xff]
        %v809 = vld [vmem:[%s734 + $0x7a] sm:$0xff]
        %v810 = vld [vmem:[%s734 + $0x82] sm:$0xff]
        %v811 = vld [vmem:[%s734 + $0x92] sm:$0xff]
        %v812 = vld [vmem:[%s734 + $0x9a] sm:$0xff]
        %v813 = vld [vmem:[%s734 + $0xaa] sm:$0xff]
        %v814 = vld [vmem:[%s734 + $0xb2] sm:$0xff]
        %v815 = vld [vmem:[%s734 + $0xc2] sm:$0xff]
        %v816 = vld [vmem:[%s734 + $0xca] sm:$0xff]
        %v817 = vld [vmem:[%s734 + $0xda] sm:$0xff]
        %v818 = vld [vmem:[%s734 + $0xe2] sm:$0xff]
        %v819 = vld [vmem:[%s734 + $0xf2] sm:$0xff]
        %v820 = vld [vmem:[%s734 + $0xfa] sm:$0xff]
        %v821 = vld [vmem:[%s734 + $0x10a] sm:$0xff]
        %v822 = vld [vmem:[%s734 + $0x112] sm:$0xff]
        %v823 = vld [vmem:[%s734 + $0x122] sm:$0xff]
        %v824 = vld [vmem:[%s734 + $0x12a] sm:$0xff]
        %v825 = vld [vmem:[%s734 + $0x13a] sm:$0xff]
        %v826 = vld [vmem:[%s734 + $0x142] sm:$0xff]
        %v827 = vld [vmem:[%s734 + $0x152] sm:$0xff]
        %v828 = vld [vmem:[%s734 + $0x15a] sm:$0xff]
        %v829 = vld [vmem:[%s734 + $0x16a] sm:$0xff]
        %v830 = vld [vmem:[%s734 + $0x172] sm:$0xff]
        %v832 = vperm.slane %v541, 0
        %834 = vmatpush.msra.mxu0 %v412
        %835 = vmatpush.msra.mxu0 %v411
        %836 = vmatpush.msra.mxu0 %v410
        %837 = vmatpush.msra.mxu0 %v409
        %838 = vmatpush.msra.mxu0 %v408
        %839 = vmatpush.msra.mxu0 %v407
        %840 = vmatpush.msra.mxu0 %v406
        %841 = vmatpush.msra.mxu0 %v405
        %842 = vmatpush.msra.mxu0 %v404
        %843 = vmatpush.msra.mxu0 %v403
        %844 = vmatpush.msra.mxu0 %v402
        %845 = vmatpush.msra.mxu0 %v401
        %846 = vmatpush.msra.mxu0 %v400
        %847 = vmatpush.msra.mxu0 %v399
        %848 = vmatpush.msra.mxu0 %v398
        %849 = vmatpush.msra.mxu0 %v397
        %850 = vmatmul.f32.gmra.mxu0 %v542
        %v851 = vpop.f32.mrf.mxu0
        %v852 = vadd.f32 %v832, %v851
        %853 = vmatmul.f32.gmra.mxu0 %v543
        %v854 = vpop.f32.mrf.mxu0
        %v855 = vadd.f32 %v832, %v854
        %856 = vmatmul.f32.gmra.mxu0 %v544
        %v857 = vpop.f32.mrf.mxu0
        %v858 = vadd.f32 %v832, %v857
        %859 = vmatmul.f32.gmra.mxu0 %v545
        %v860 = vpop.f32.mrf.mxu0
        %v861 = vadd.f32 %v832, %v860
        %862 = vmatmul.f32.gmra.mxu0 %v546
        %v863 = vpop.f32.mrf.mxu0
        %v864 = vadd.f32 %v832, %v863
        %865 = vmatmul.f32.gmra.mxu0 %v547
        %v866 = vpop.f32.mrf.mxu0
        %v867 = vadd.f32 %v832, %v866
        %868 = vmatmul.f32.gmra.mxu0 %v548
        %v869 = vpop.f32.mrf.mxu0
        %v870 = vadd.f32 %v832, %v869
        %871 = vmatmul.f32.gmra.mxu0 %v549
        %v872 = vpop.f32.mrf.mxu0
        %v873 = vadd.f32 %v832, %v872
        %874 = vmatmul.f32.gmra.mxu0 %v550
        %v875 = vpop.f32.mrf.mxu0
        %v876 = vadd.f32 %v832, %v875
        %877 = vmatmul.f32.gmra.mxu0 %v551
        %v878 = vpop.f32.mrf.mxu0
        %v879 = vadd.f32 %v832, %v878
        %880 = vmatmul.f32.gmra.mxu0 %v552
        %v881 = vpop.f32.mrf.mxu0
        %v882 = vadd.f32 %v832, %v881
        %883 = vmatmul.f32.gmra.mxu0 %v553
        %v884 = vpop.f32.mrf.mxu0
        %v885 = vadd.f32 %v832, %v884
        %886 = vmatmul.f32.gmra.mxu0 %v554
        %v887 = vpop.f32.mrf.mxu0
        %v888 = vadd.f32 %v832, %v887
        %889 = vmatmul.f32.gmra.mxu0 %v555
        %v890 = vpop.f32.mrf.mxu0
        %v891 = vadd.f32 %v832, %v890
        %892 = vmatmul.f32.gmra.mxu0 %v556
        %v893 = vpop.f32.mrf.mxu0
        %v894 = vadd.f32 %v832, %v893
        %895 = vmatmul.f32.gmra.mxu0 %v557
        %v896 = vpop.f32.mrf.mxu0
        %v897 = vadd.f32 %v832, %v896
        %898 = vmatmul.f32.gmra.mxu0 %v558
        %v899 = vpop.f32.mrf.mxu0
        %v900 = vadd.f32 %v832, %v899
        %901 = vmatmul.f32.gmra.mxu0 %v559
        %v902 = vpop.f32.mrf.mxu0
        %v903 = vadd.f32 %v832, %v902
        %904 = vmatmul.f32.gmra.mxu0 %v560
        %v905 = vpop.f32.mrf.mxu0
        %v906 = vadd.f32 %v832, %v905
        %907 = vmatmul.f32.gmra.mxu0 %v561
        %v908 = vpop.f32.mrf.mxu0
        %v909 = vadd.f32 %v832, %v908
        %910 = vmatmul.f32.gmra.mxu0 %v562
        %v911 = vpop.f32.mrf.mxu0
        %v912 = vadd.f32 %v832, %v911
        %913 = vmatmul.f32.gmra.mxu0 %v563
        %v914 = vpop.f32.mrf.mxu0
        %v915 = vadd.f32 %v832, %v914
        %916 = vmatmul.f32.gmra.mxu0 %v564
        %v917 = vpop.f32.mrf.mxu0
        %v918 = vadd.f32 %v832, %v917
        %919 = vmatmul.f32.gmra.mxu0 %v565
        %v920 = vpop.f32.mrf.mxu0
        %v921 = vadd.f32 %v832, %v920
        %922 = vmatmul.f32.gmra.mxu0 %v566
        %v923 = vpop.f32.mrf.mxu0
        %v924 = vadd.f32 %v832, %v923
        %925 = vmatmul.f32.gmra.mxu0 %v567
        %v926 = vpop.f32.mrf.mxu0
        %v927 = vadd.f32 %v832, %v926
        %928 = vmatmul.f32.gmra.mxu0 %v568
        %v929 = vpop.f32.mrf.mxu0
        %v930 = vadd.f32 %v832, %v929
        %931 = vmatmul.f32.gmra.mxu0 %v569
        %v932 = vpop.f32.mrf.mxu0
        %v933 = vadd.f32 %v832, %v932
        %934 = vmatmul.f32.gmra.mxu0 %v570
        %v935 = vpop.f32.mrf.mxu0
        %v936 = vadd.f32 %v832, %v935
        %937 = vmatmul.f32.gmra.mxu0 %v571
        %v938 = vpop.f32.mrf.mxu0
        %v939 = vadd.f32 %v832, %v938
        %940 = vmatmul.f32.gmra.mxu0 %v572
        %v941 = vpop.f32.mrf.mxu0
        %v942 = vadd.f32 %v832, %v941
        %943 = vmatmul.f32.gmra.mxu0 %v573
        %v944 = vpop.f32.mrf.mxu0
        %v945 = vadd.f32 %v832, %v944
        %946 = vdwg.mxu0
        %947 = vmatpush.msra.mxu0 %v428
        %948 = vmatpush.msra.mxu0 %v427
        %949 = vmatpush.msra.mxu0 %v426
        %950 = vmatpush.msra.mxu0 %v425
        %951 = vmatpush.msra.mxu0 %v424
        %952 = vmatpush.msra.mxu0 %v423
        %953 = vmatpush.msra.mxu0 %v422
        %954 = vmatpush.msra.mxu0 %v421
        %955 = vmatpush.msra.mxu0 %v420
        %956 = vmatpush.msra.mxu0 %v419
        %957 = vmatpush.msra.mxu0 %v418
        %958 = vmatpush.msra.mxu0 %v417
        %959 = vmatpush.msra.mxu0 %v416
        %960 = vmatpush.msra.mxu0 %v415
        %961 = vmatpush.msra.mxu0 %v414
        %962 = vmatpush.msra.mxu0 %v413
        %963 = vmatmul.f32.gmra.mxu0 %v574
        %v964 = vpop.f32.mrf.mxu0
        %v965 = vadd.f32 %v852, %v964
        %966 = vmatmul.f32.gmra.mxu0 %v575
        %v967 = vpop.f32.mrf.mxu0
        %v968 = vadd.f32 %v855, %v967
        %969 = vmatmul.f32.gmra.mxu0 %v576
        %v970 = vpop.f32.mrf.mxu0
        %v971 = vadd.f32 %v858, %v970
        %972 = vmatmul.f32.gmra.mxu0 %v577
        %v973 = vpop.f32.mrf.mxu0
        %v974 = vadd.f32 %v861, %v973
        %975 = vmatmul.f32.gmra.mxu0 %v578
        %v976 = vpop.f32.mrf.mxu0
        %v977 = vadd.f32 %v864, %v976
        %978 = vmatmul.f32.gmra.mxu0 %v579
        %v979 = vpop.f32.mrf.mxu0
        %v980 = vadd.f32 %v867, %v979
        %981 = vmatmul.f32.gmra.mxu0 %v580
        %v982 = vpop.f32.mrf.mxu0
        %v983 = vadd.f32 %v870, %v982
        %984 = vmatmul.f32.gmra.mxu0 %v581
        %v985 = vpop.f32.mrf.mxu0
        %v986 = vadd.f32 %v873, %v985
        %987 = vmatmul.f32.gmra.mxu0 %v582
        %v988 = vpop.f32.mrf.mxu0
        %v989 = vadd.f32 %v876, %v988
        %990 = vmatmul.f32.gmra.mxu0 %v583
        %v991 = vpop.f32.mrf.mxu0
        %v992 = vadd.f32 %v879, %v991
        %993 = vmatmul.f32.gmra.mxu0 %v584
        %v994 = vpop.f32.mrf.mxu0
        %v995 = vadd.f32 %v882, %v994
        %996 = vmatmul.f32.gmra.mxu0 %v585
        %v997 = vpop.f32.mrf.mxu0
        %v998 = vadd.f32 %v885, %v997
        %999 = vmatmul.f32.gmra.mxu0 %v586
        %v1000 = vpop.f32.mrf.mxu0
        %v1001 = vadd.f32 %v888, %v1000
        %1002 = vmatmul.f32.gmra.mxu0 %v587
        %v1003 = vpop.f32.mrf.mxu0
        %v1004 = vadd.f32 %v891, %v1003
        %1005 = vmatmul.f32.gmra.mxu0 %v588
        %v1006 = vpop.f32.mrf.mxu0
        %v1007 = vadd.f32 %v894, %v1006
        %1008 = vmatmul.f32.gmra.mxu0 %v589
        %v1009 = vpop.f32.mrf.mxu0
        %v1010 = vadd.f32 %v897, %v1009
        %1011 = vmatmul.f32.gmra.mxu0 %v590
        %v1012 = vpop.f32.mrf.mxu0
        %v1013 = vadd.f32 %v900, %v1012
        %1014 = vmatmul.f32.gmra.mxu0 %v591
        %v1015 = vpop.f32.mrf.mxu0
        %v1016 = vadd.f32 %v903, %v1015
        %1017 = vmatmul.f32.gmra.mxu0 %v592
        %v1018 = vpop.f32.mrf.mxu0
        %v1019 = vadd.f32 %v906, %v1018
        %1020 = vmatmul.f32.gmra.mxu0 %v593
        %v1021 = vpop.f32.mrf.mxu0
        %v1022 = vadd.f32 %v909, %v1021
        %1023 = vmatmul.f32.gmra.mxu0 %v594
        %v1024 = vpop.f32.mrf.mxu0
        %v1025 = vadd.f32 %v912, %v1024
        %1026 = vmatmul.f32.gmra.mxu0 %v595
        %v1027 = vpop.f32.mrf.mxu0
        %v1028 = vadd.f32 %v915, %v1027
        %1029 = vmatmul.f32.gmra.mxu0 %v596
        %v1030 = vpop.f32.mrf.mxu0
        %v1031 = vadd.f32 %v918, %v1030
        %1032 = vmatmul.f32.gmra.mxu0 %v597
        %v1033 = vpop.f32.mrf.mxu0
        %v1034 = vadd.f32 %v921, %v1033
        %1035 = vmatmul.f32.gmra.mxu0 %v598
        %v1036 = vpop.f32.mrf.mxu0
        %v1037 = vadd.f32 %v924, %v1036
        %1038 = vmatmul.f32.gmra.mxu0 %v599
        %v1039 = vpop.f32.mrf.mxu0
        %v1040 = vadd.f32 %v927, %v1039
        %1041 = vmatmul.f32.gmra.mxu0 %v600
        %v1042 = vpop.f32.mrf.mxu0
        %v1043 = vadd.f32 %v930, %v1042
        %1044 = vmatmul.f32.gmra.mxu0 %v601
        %v1045 = vpop.f32.mrf.mxu0
        %v1046 = vadd.f32 %v933, %v1045
        %1047 = vmatmul.f32.gmra.mxu0 %v602
        %v1048 = vpop.f32.mrf.mxu0
        %v1049 = vadd.f32 %v936, %v1048
        %1050 = vmatmul.f32.gmra.mxu0 %v603
        %v1051 = vpop.f32.mrf.mxu0
        %v1052 = vadd.f32 %v939, %v1051
        %1053 = vmatmul.f32.gmra.mxu0 %v604
        %v1054 = vpop.f32.mrf.mxu0
        %v1055 = vadd.f32 %v942, %v1054
        %1056 = vmatmul.f32.gmra.mxu0 %v605
        %v1057 = vpop.f32.mrf.mxu0
        %v1058 = vadd.f32 %v945, %v1057
        %1059 = vdwg.mxu0
        %1060 = vmatpush.msra.mxu0 %v444
        %1061 = vmatpush.msra.mxu0 %v443
        %1062 = vmatpush.msra.mxu0 %v442
        %1063 = vmatpush.msra.mxu0 %v441
        %1064 = vmatpush.msra.mxu0 %v440
        %1065 = vmatpush.msra.mxu0 %v439
        %1066 = vmatpush.msra.mxu0 %v438
        %1067 = vmatpush.msra.mxu0 %v437
        %1068 = vmatpush.msra.mxu0 %v436
        %1069 = vmatpush.msra.mxu0 %v435
        %1070 = vmatpush.msra.mxu0 %v434
        %1071 = vmatpush.msra.mxu0 %v433
        %1072 = vmatpush.msra.mxu0 %v432
        %1073 = vmatpush.msra.mxu0 %v431
        %1074 = vmatpush.msra.mxu0 %v430
        %1075 = vmatpush.msra.mxu0 %v429
        %1076 = vmatmul.f32.gmra.mxu0 %v606
        %v1077 = vpop.f32.mrf.mxu0
        %v1078 = vadd.f32 %v965, %v1077
        %1079 = vmatmul.f32.gmra.mxu0 %v607
        %v1080 = vpop.f32.mrf.mxu0
        %v1081 = vadd.f32 %v968, %v1080
        %1082 = vmatmul.f32.gmra.mxu0 %v608
        %v1083 = vpop.f32.mrf.mxu0
        %v1084 = vadd.f32 %v971, %v1083
        %1085 = vmatmul.f32.gmra.mxu0 %v609
        %v1086 = vpop.f32.mrf.mxu0
        %v1087 = vadd.f32 %v974, %v1086
        %1088 = vmatmul.f32.gmra.mxu0 %v610
        %v1089 = vpop.f32.mrf.mxu0
        %v1090 = vadd.f32 %v977, %v1089
        %1091 = vmatmul.f32.gmra.mxu0 %v611
        %v1092 = vpop.f32.mrf.mxu0
        %v1093 = vadd.f32 %v980, %v1092
        %1094 = vmatmul.f32.gmra.mxu0 %v612
        %v1095 = vpop.f32.mrf.mxu0
        %v1096 = vadd.f32 %v983, %v1095
        %1097 = vmatmul.f32.gmra.mxu0 %v613
        %v1098 = vpop.f32.mrf.mxu0
        %v1099 = vadd.f32 %v986, %v1098
        %1100 = vmatmul.f32.gmra.mxu0 %v614
        %v1101 = vpop.f32.mrf.mxu0
        %v1102 = vadd.f32 %v989, %v1101
        %1103 = vmatmul.f32.gmra.mxu0 %v615
        %v1104 = vpop.f32.mrf.mxu0
        %v1105 = vadd.f32 %v992, %v1104
        %1106 = vmatmul.f32.gmra.mxu0 %v616
        %v1107 = vpop.f32.mrf.mxu0
        %v1108 = vadd.f32 %v995, %v1107
        %1109 = vmatmul.f32.gmra.mxu0 %v617
        %v1110 = vpop.f32.mrf.mxu0
        %v1111 = vadd.f32 %v998, %v1110
        %1112 = vmatmul.f32.gmra.mxu0 %v618
        %v1113 = vpop.f32.mrf.mxu0
        %v1114 = vadd.f32 %v1001, %v1113
        %1115 = vmatmul.f32.gmra.mxu0 %v619
        %v1116 = vpop.f32.mrf.mxu0
        %v1117 = vadd.f32 %v1004, %v1116
        %1118 = vmatmul.f32.gmra.mxu0 %v620
        %v1119 = vpop.f32.mrf.mxu0
        %v1120 = vadd.f32 %v1007, %v1119
        %1121 = vmatmul.f32.gmra.mxu0 %v621
        %v1122 = vpop.f32.mrf.mxu0
        %v1123 = vadd.f32 %v1010, %v1122
        %1124 = vmatmul.f32.gmra.mxu0 %v622
        %v1125 = vpop.f32.mrf.mxu0
        %v1126 = vadd.f32 %v1013, %v1125
        %1127 = vmatmul.f32.gmra.mxu0 %v623
        %v1128 = vpop.f32.mrf.mxu0
        %v1129 = vadd.f32 %v1016, %v1128
        %1130 = vmatmul.f32.gmra.mxu0 %v624
        %v1131 = vpop.f32.mrf.mxu0
        %v1132 = vadd.f32 %v1019, %v1131
        %1133 = vmatmul.f32.gmra.mxu0 %v625
        %v1134 = vpop.f32.mrf.mxu0
        %v1135 = vadd.f32 %v1022, %v1134
        %1136 = vmatmul.f32.gmra.mxu0 %v626
        %v1137 = vpop.f32.mrf.mxu0
        %v1138 = vadd.f32 %v1025, %v1137
        %1139 = vmatmul.f32.gmra.mxu0 %v627
        %v1140 = vpop.f32.mrf.mxu0
        %v1141 = vadd.f32 %v1028, %v1140
        %1142 = vmatmul.f32.gmra.mxu0 %v628
        %v1143 = vpop.f32.mrf.mxu0
        %v1144 = vadd.f32 %v1031, %v1143
        %1145 = vmatmul.f32.gmra.mxu0 %v629
        %v1146 = vpop.f32.mrf.mxu0
        %v1147 = vadd.f32 %v1034, %v1146
        %1148 = vmatmul.f32.gmra.mxu0 %v630
        %v1149 = vpop.f32.mrf.mxu0
        %v1150 = vadd.f32 %v1037, %v1149
        %1151 = vmatmul.f32.gmra.mxu0 %v631
        %v1152 = vpop.f32.mrf.mxu0
        %v1153 = vadd.f32 %v1040, %v1152
        %1154 = vmatmul.f32.gmra.mxu0 %v632
        %v1155 = vpop.f32.mrf.mxu0
        %v1156 = vadd.f32 %v1043, %v1155
        %1157 = vmatmul.f32.gmra.mxu0 %v633
        %v1158 = vpop.f32.mrf.mxu0
        %v1159 = vadd.f32 %v1046, %v1158
        %1160 = vmatmul.f32.gmra.mxu0 %v634
        %v1161 = vpop.f32.mrf.mxu0
        %v1162 = vadd.f32 %v1049, %v1161
        %1163 = vmatmul.f32.gmra.mxu0 %v635
        %v1164 = vpop.f32.mrf.mxu0
        %v1165 = vadd.f32 %v1052, %v1164
        %1166 = vmatmul.f32.gmra.mxu0 %v636
        %v1167 = vpop.f32.mrf.mxu0
        %v1168 = vadd.f32 %v1055, %v1167
        %1169 = vmatmul.f32.gmra.mxu0 %v637
        %v1170 = vpop.f32.mrf.mxu0
        %v1171 = vadd.f32 %v1058, %v1170
        %1172 = vdwg.mxu0
        %1173 = vmatpush.msra.mxu0 %v460
        %1174 = vmatpush.msra.mxu0 %v459
        %1175 = vmatpush.msra.mxu0 %v458
        %1176 = vmatpush.msra.mxu0 %v457
        %1177 = vmatpush.msra.mxu0 %v456
        %1178 = vmatpush.msra.mxu0 %v455
        %1179 = vmatpush.msra.mxu0 %v454
        %1180 = vmatpush.msra.mxu0 %v453
        %1181 = vmatpush.msra.mxu0 %v452
        %1182 = vmatpush.msra.mxu0 %v451
        %1183 = vmatpush.msra.mxu0 %v450
        %1184 = vmatpush.msra.mxu0 %v449
        %1185 = vmatpush.msra.mxu0 %v448
        %1186 = vmatpush.msra.mxu0 %v447
        %1187 = vmatpush.msra.mxu0 %v446
        %1188 = vmatpush.msra.mxu0 %v445
        %1189 = vmatmul.f32.gmra.mxu0 %v638
        %v1190 = vpop.f32.mrf.mxu0
        %v1191 = vadd.f32 %v1078, %v1190
        %1192 = vmatmul.f32.gmra.mxu0 %v639
        %v1193 = vpop.f32.mrf.mxu0
        %v1194 = vadd.f32 %v1081, %v1193
        %1195 = vmatmul.f32.gmra.mxu0 %v640
        %v1196 = vpop.f32.mrf.mxu0
        %v1197 = vadd.f32 %v1084, %v1196
        %1198 = vmatmul.f32.gmra.mxu0 %v641
        %v1199 = vpop.f32.mrf.mxu0
        %v1200 = vadd.f32 %v1087, %v1199
        %1201 = vmatmul.f32.gmra.mxu0 %v642
        %v1202 = vpop.f32.mrf.mxu0
        %v1203 = vadd.f32 %v1090, %v1202
        %1204 = vmatmul.f32.gmra.mxu0 %v643
        %v1205 = vpop.f32.mrf.mxu0
        %v1206 = vadd.f32 %v1093, %v1205
        %1207 = vmatmul.f32.gmra.mxu0 %v644
        %v1208 = vpop.f32.mrf.mxu0
        %v1209 = vadd.f32 %v1096, %v1208
        %1210 = vmatmul.f32.gmra.mxu0 %v645
        %v1211 = vpop.f32.mrf.mxu0
        %v1212 = vadd.f32 %v1099, %v1211
        %1213 = vmatmul.f32.gmra.mxu0 %v646
        %v1214 = vpop.f32.mrf.mxu0
        %v1215 = vadd.f32 %v1102, %v1214
        %1216 = vmatmul.f32.gmra.mxu0 %v647
        %v1217 = vpop.f32.mrf.mxu0
        %v1218 = vadd.f32 %v1105, %v1217
        %1219 = vmatmul.f32.gmra.mxu0 %v648
        %v1220 = vpop.f32.mrf.mxu0
        %v1221 = vadd.f32 %v1108, %v1220
        %1222 = vmatmul.f32.gmra.mxu0 %v649
        %v1223 = vpop.f32.mrf.mxu0
        %v1224 = vadd.f32 %v1111, %v1223
        %1225 = vmatmul.f32.gmra.mxu0 %v650
        %v1226 = vpop.f32.mrf.mxu0
        %v1227 = vadd.f32 %v1114, %v1226
        %1228 = vmatmul.f32.gmra.mxu0 %v651
        %v1229 = vpop.f32.mrf.mxu0
        %v1230 = vadd.f32 %v1117, %v1229
        %1231 = vmatmul.f32.gmra.mxu0 %v652
        %v1232 = vpop.f32.mrf.mxu0
        %v1233 = vadd.f32 %v1120, %v1232
        %1234 = vmatmul.f32.gmra.mxu0 %v653
        %v1235 = vpop.f32.mrf.mxu0
        %v1236 = vadd.f32 %v1123, %v1235
        %1237 = vmatmul.f32.gmra.mxu0 %v654
        %v1238 = vpop.f32.mrf.mxu0
        %v1239 = vadd.f32 %v1126, %v1238
        %1240 = vmatmul.f32.gmra.mxu0 %v655
        %v1241 = vpop.f32.mrf.mxu0
        %v1242 = vadd.f32 %v1129, %v1241
        %1243 = vmatmul.f32.gmra.mxu0 %v656
        %v1244 = vpop.f32.mrf.mxu0
        %v1245 = vadd.f32 %v1132, %v1244
        %1246 = vmatmul.f32.gmra.mxu0 %v657
        %v1247 = vpop.f32.mrf.mxu0
        %v1248 = vadd.f32 %v1135, %v1247
        %1249 = vmatmul.f32.gmra.mxu0 %v658
        %v1250 = vpop.f32.mrf.mxu0
        %v1251 = vadd.f32 %v1138, %v1250
        %1252 = vmatmul.f32.gmra.mxu0 %v659
        %v1253 = vpop.f32.mrf.mxu0
        %v1254 = vadd.f32 %v1141, %v1253
        %1255 = vmatmul.f32.gmra.mxu0 %v660
        %v1256 = vpop.f32.mrf.mxu0
        %v1257 = vadd.f32 %v1144, %v1256
        %1258 = vmatmul.f32.gmra.mxu0 %v661
        %v1259 = vpop.f32.mrf.mxu0
        %v1260 = vadd.f32 %v1147, %v1259
        %1261 = vmatmul.f32.gmra.mxu0 %v662
        %v1262 = vpop.f32.mrf.mxu0
        %v1263 = vadd.f32 %v1150, %v1262
        %1264 = vmatmul.f32.gmra.mxu0 %v663
        %v1265 = vpop.f32.mrf.mxu0
        %v1266 = vadd.f32 %v1153, %v1265
        %1267 = vmatmul.f32.gmra.mxu0 %v664
        %v1268 = vpop.f32.mrf.mxu0
        %v1269 = vadd.f32 %v1156, %v1268
        %1270 = vmatmul.f32.gmra.mxu0 %v665
        %v1271 = vpop.f32.mrf.mxu0
        %v1272 = vadd.f32 %v1159, %v1271
        %1273 = vmatmul.f32.gmra.mxu0 %v666
        %v1274 = vpop.f32.mrf.mxu0
        %v1275 = vadd.f32 %v1162, %v1274
        %1276 = vmatmul.f32.gmra.mxu0 %v667
        %v1277 = vpop.f32.mrf.mxu0
        %v1278 = vadd.f32 %v1165, %v1277
        %1279 = vmatmul.f32.gmra.mxu0 %v668
        %v1280 = vpop.f32.mrf.mxu0
        %v1281 = vadd.f32 %v1168, %v1280
        %1282 = vmatmul.f32.gmra.mxu0 %v669
        %v1283 = vpop.f32.mrf.mxu0
        %v1284 = vadd.f32 %v1171, %v1283
        %1285 = vdwg.mxu0
        %1286 = vmatpush.msra.mxu0 %v476
        %1287 = vmatpush.msra.mxu0 %v475
        %1288 = vmatpush.msra.mxu0 %v474
        %1289 = vmatpush.msra.mxu0 %v473
        %1290 = vmatpush.msra.mxu0 %v472
        %1291 = vmatpush.msra.mxu0 %v471
        %1292 = vmatpush.msra.mxu0 %v470
        %1293 = vmatpush.msra.mxu0 %v469
        %1294 = vmatpush.msra.mxu0 %v468
        %1295 = vmatpush.msra.mxu0 %v467
        %1296 = vmatpush.msra.mxu0 %v466
        %1297 = vmatpush.msra.mxu0 %v465
        %1298 = vmatpush.msra.mxu0 %v464
        %1299 = vmatpush.msra.mxu0 %v463
        %1300 = vmatpush.msra.mxu0 %v462
        %1301 = vmatpush.msra.mxu0 %v461
        %1302 = vmatmul.f32.gmra.mxu0 %v670
        %v1303 = vpop.f32.mrf.mxu0
        %v1304 = vadd.f32 %v1191, %v1303
        %1305 = vmatmul.f32.gmra.mxu0 %v671
        %v1306 = vpop.f32.mrf.mxu0
        %v1307 = vadd.f32 %v1194, %v1306
        %1308 = vmatmul.f32.gmra.mxu0 %v672
        %v1309 = vpop.f32.mrf.mxu0
        %v1310 = vadd.f32 %v1197, %v1309
        %1311 = vmatmul.f32.gmra.mxu0 %v673
        %v1312 = vpop.f32.mrf.mxu0
        %v1313 = vadd.f32 %v1200, %v1312
        %1314 = vmatmul.f32.gmra.mxu0 %v674
        %v1315 = vpop.f32.mrf.mxu0
        %v1316 = vadd.f32 %v1203, %v1315
        %1317 = vmatmul.f32.gmra.mxu0 %v675
        %v1318 = vpop.f32.mrf.mxu0
        %v1319 = vadd.f32 %v1206, %v1318
        %1320 = vmatmul.f32.gmra.mxu0 %v676
        %v1321 = vpop.f32.mrf.mxu0
        %v1322 = vadd.f32 %v1209, %v1321
        %1323 = vmatmul.f32.gmra.mxu0 %v677
        %v1324 = vpop.f32.mrf.mxu0
        %v1325 = vadd.f32 %v1212, %v1324
        %1326 = vmatmul.f32.gmra.mxu0 %v678
        %v1327 = vpop.f32.mrf.mxu0
        %v1328 = vadd.f32 %v1215, %v1327
        %1329 = vmatmul.f32.gmra.mxu0 %v679
        %v1330 = vpop.f32.mrf.mxu0
        %v1331 = vadd.f32 %v1218, %v1330
        %1332 = vmatmul.f32.gmra.mxu0 %v680
        %v1333 = vpop.f32.mrf.mxu0
        %v1334 = vadd.f32 %v1221, %v1333
        %1335 = vmatmul.f32.gmra.mxu0 %v681
        %v1336 = vpop.f32.mrf.mxu0
        %v1337 = vadd.f32 %v1224, %v1336
        %1338 = vmatmul.f32.gmra.mxu0 %v682
        %v1339 = vpop.f32.mrf.mxu0
        %v1340 = vadd.f32 %v1227, %v1339
        %1341 = vmatmul.f32.gmra.mxu0 %v683
        %v1342 = vpop.f32.mrf.mxu0
        %v1343 = vadd.f32 %v1230, %v1342
        %1344 = vmatmul.f32.gmra.mxu0 %v684
        %v1345 = vpop.f32.mrf.mxu0
        %v1346 = vadd.f32 %v1233, %v1345
        %1347 = vmatmul.f32.gmra.mxu0 %v685
        %v1348 = vpop.f32.mrf.mxu0
        %v1349 = vadd.f32 %v1236, %v1348
        %1350 = vmatmul.f32.gmra.mxu0 %v686
        %v1351 = vpop.f32.mrf.mxu0
        %v1352 = vadd.f32 %v1239, %v1351
        %1353 = vmatmul.f32.gmra.mxu0 %v687
        %v1354 = vpop.f32.mrf.mxu0
        %v1355 = vadd.f32 %v1242, %v1354
        %1356 = vmatmul.f32.gmra.mxu0 %v688
        %v1357 = vpop.f32.mrf.mxu0
        %v1358 = vadd.f32 %v1245, %v1357
        %1359 = vmatmul.f32.gmra.mxu0 %v689
        %v1360 = vpop.f32.mrf.mxu0
        %v1361 = vadd.f32 %v1248, %v1360
        %1362 = vmatmul.f32.gmra.mxu0 %v690
        %v1363 = vpop.f32.mrf.mxu0
        %v1364 = vadd.f32 %v1251, %v1363
        %1365 = vmatmul.f32.gmra.mxu0 %v691
        %v1366 = vpop.f32.mrf.mxu0
        %v1367 = vadd.f32 %v1254, %v1366
        %1368 = vmatmul.f32.gmra.mxu0 %v692
        %v1369 = vpop.f32.mrf.mxu0
        %v1370 = vadd.f32 %v1257, %v1369
        %1371 = vmatmul.f32.gmra.mxu0 %v693
        %v1372 = vpop.f32.mrf.mxu0
        %v1373 = vadd.f32 %v1260, %v1372
        %1374 = vmatmul.f32.gmra.mxu0 %v694
        %v1375 = vpop.f32.mrf.mxu0
        %v1376 = vadd.f32 %v1263, %v1375
        %1377 = vmatmul.f32.gmra.mxu0 %v695
        %v1378 = vpop.f32.mrf.mxu0
        %v1379 = vadd.f32 %v1266, %v1378
        %1380 = vmatmul.f32.gmra.mxu0 %v696
        %v1381 = vpop.f32.mrf.mxu0
        %v1382 = vadd.f32 %v1269, %v1381
        %1383 = vmatmul.f32.gmra.mxu0 %v697
        %v1384 = vpop.f32.mrf.mxu0
        %v1385 = vadd.f32 %v1272, %v1384
        %1386 = vmatmul.f32.gmra.mxu0 %v698
        %v1387 = vpop.f32.mrf.mxu0
        %v1388 = vadd.f32 %v1275, %v1387
        %1389 = vmatmul.f32.gmra.mxu0 %v699
        %v1390 = vpop.f32.mrf.mxu0
        %v1391 = vadd.f32 %v1278, %v1390
        %1392 = vmatmul.f32.gmra.mxu0 %v700
        %v1393 = vpop.f32.mrf.mxu0
        %v1394 = vadd.f32 %v1281, %v1393
        %1395 = vmatmul.f32.gmra.mxu0 %v701
        %v1396 = vpop.f32.mrf.mxu0
        %v1397 = vadd.f32 %v1284, %v1396
        %1398 = vdwg.mxu0
        %1399 = vmatpush.msra.mxu0 %v492
        %1400 = vmatpush.msra.mxu0 %v491
        %1401 = vmatpush.msra.mxu0 %v490
        %1402 = vmatpush.msra.mxu0 %v489
        %1403 = vmatpush.msra.mxu0 %v488
        %1404 = vmatpush.msra.mxu0 %v487
        %1405 = vmatpush.msra.mxu0 %v486
        %1406 = vmatpush.msra.mxu0 %v485
        %1407 = vmatpush.msra.mxu0 %v484
        %1408 = vmatpush.msra.mxu0 %v483
        %1409 = vmatpush.msra.mxu0 %v482
        %1410 = vmatpush.msra.mxu0 %v481
        %1411 = vmatpush.msra.mxu0 %v480
        %1412 = vmatpush.msra.mxu0 %v479
        %1413 = vmatpush.msra.mxu0 %v478
        %1414 = vmatpush.msra.mxu0 %v477
        %1415 = vmatmul.f32.gmra.mxu0 %v702
        %v1416 = vpop.f32.mrf.mxu0
        %v1417 = vadd.f32 %v1304, %v1416
        %1418 = vmatmul.f32.gmra.mxu0 %v703
        %v1419 = vpop.f32.mrf.mxu0
        %v1420 = vadd.f32 %v1307, %v1419
        %1421 = vmatmul.f32.gmra.mxu0 %v704
        %v1422 = vpop.f32.mrf.mxu0
        %v1423 = vadd.f32 %v1310, %v1422
        %1424 = vmatmul.f32.gmra.mxu0 %v705
        %v1425 = vpop.f32.mrf.mxu0
        %v1426 = vadd.f32 %v1313, %v1425
        %1427 = vmatmul.f32.gmra.mxu0 %v706
        %v1428 = vpop.f32.mrf.mxu0
        %v1429 = vadd.f32 %v1316, %v1428
        %1430 = vmatmul.f32.gmra.mxu0 %v707
        %v1431 = vpop.f32.mrf.mxu0
        %v1432 = vadd.f32 %v1319, %v1431
        %1433 = vmatmul.f32.gmra.mxu0 %v708
        %v1434 = vpop.f32.mrf.mxu0
        %v1435 = vadd.f32 %v1322, %v1434
        %1436 = vmatmul.f32.gmra.mxu0 %v709
        %v1437 = vpop.f32.mrf.mxu0
        %v1438 = vadd.f32 %v1325, %v1437
        %1439 = vmatmul.f32.gmra.mxu0 %v710
        %v1440 = vpop.f32.mrf.mxu0
        %v1441 = vadd.f32 %v1328, %v1440
        %1442 = vmatmul.f32.gmra.mxu0 %v711
        %v1443 = vpop.f32.mrf.mxu0
        %v1444 = vadd.f32 %v1331, %v1443
        %1445 = vmatmul.f32.gmra.mxu0 %v712
        %v1446 = vpop.f32.mrf.mxu0
        %v1447 = vadd.f32 %v1334, %v1446
        %1448 = vmatmul.f32.gmra.mxu0 %v713
        %v1449 = vpop.f32.mrf.mxu0
        %v1450 = vadd.f32 %v1337, %v1449
        %1451 = vmatmul.f32.gmra.mxu0 %v714
        %v1452 = vpop.f32.mrf.mxu0
        %v1453 = vadd.f32 %v1340, %v1452
        %1454 = vmatmul.f32.gmra.mxu0 %v715
        %v1455 = vpop.f32.mrf.mxu0
        %v1456 = vadd.f32 %v1343, %v1455
        %1457 = vmatmul.f32.gmra.mxu0 %v716
        %v1458 = vpop.f32.mrf.mxu0
        %v1459 = vadd.f32 %v1346, %v1458
        %1460 = vmatmul.f32.gmra.mxu0 %v717
        %v1461 = vpop.f32.mrf.mxu0
        %v1462 = vadd.f32 %v1349, %v1461
        %1463 = vmatmul.f32.gmra.mxu0 %v718
        %v1464 = vpop.f32.mrf.mxu0
        %v1465 = vadd.f32 %v1352, %v1464
        %1466 = vmatmul.f32.gmra.mxu0 %v719
        %v1467 = vpop.f32.mrf.mxu0
        %v1468 = vadd.f32 %v1355, %v1467
        %1469 = vmatmul.f32.gmra.mxu0 %v720
        %v1470 = vpop.f32.mrf.mxu0
        %v1471 = vadd.f32 %v1358, %v1470
        %1472 = vmatmul.f32.gmra.mxu0 %v721
        %v1473 = vpop.f32.mrf.mxu0
        %v1474 = vadd.f32 %v1361, %v1473
        %1475 = vmatmul.f32.gmra.mxu0 %v722
        %v1476 = vpop.f32.mrf.mxu0
        %v1477 = vadd.f32 %v1364, %v1476
        %1478 = vmatmul.f32.gmra.mxu0 %v723
        %v1479 = vpop.f32.mrf.mxu0
        %v1480 = vadd.f32 %v1367, %v1479
        %1481 = vmatmul.f32.gmra.mxu0 %v724
        %v1482 = vpop.f32.mrf.mxu0
        %v1483 = vadd.f32 %v1370, %v1482
        %1484 = vmatmul.f32.gmra.mxu0 %v725
        %v1485 = vpop.f32.mrf.mxu0
        %v1486 = vadd.f32 %v1373, %v1485
        %1487 = vmatmul.f32.gmra.mxu0 %v726
        %v1488 = vpop.f32.mrf.mxu0
        %v1489 = vadd.f32 %v1376, %v1488
        %1490 = vmatmul.f32.gmra.mxu0 %v727
        %v1491 = vpop.f32.mrf.mxu0
        %v1492 = vadd.f32 %v1379, %v1491
        %1493 = vmatmul.f32.gmra.mxu0 %v728
        %v1494 = vpop.f32.mrf.mxu0
        %v1495 = vadd.f32 %v1382, %v1494
        %1496 = vmatmul.f32.gmra.mxu0 %v729
        %v1497 = vpop.f32.mrf.mxu0
        %v1498 = vadd.f32 %v1385, %v1497
        %1499 = vmatmul.f32.gmra.mxu0 %v730
        %v1500 = vpop.f32.mrf.mxu0
        %v1501 = vadd.f32 %v1388, %v1500
        %1502 = vmatmul.f32.gmra.mxu0 %v731
        %v1503 = vpop.f32.mrf.mxu0
        %v1504 = vadd.f32 %v1391, %v1503
        %1505 = vmatmul.f32.gmra.mxu0 %v732
        %v1506 = vpop.f32.mrf.mxu0
        %v1507 = vadd.f32 %v1394, %v1506
        %1508 = vmatmul.f32.gmra.mxu0 %v733
        %v1509 = vpop.f32.mrf.mxu0
        %v1510 = vadd.f32 %v1397, %v1509
        %1511 = vdwg.mxu0
        %1512 = vmatpush.msra.mxu0 %v508
        %1513 = vmatpush.msra.mxu0 %v507
        %1514 = vmatpush.msra.mxu0 %v506
        %1515 = vmatpush.msra.mxu0 %v505
        %1516 = vmatpush.msra.mxu0 %v504
        %1517 = vmatpush.msra.mxu0 %v503
        %1518 = vmatpush.msra.mxu0 %v502
        %1519 = vmatpush.msra.mxu0 %v501
        %1520 = vmatpush.msra.mxu0 %v500
        %1521 = vmatpush.msra.mxu0 %v499
        %1522 = vmatpush.msra.mxu0 %v498
        %1523 = vmatpush.msra.mxu0 %v497
        %1524 = vmatpush.msra.mxu0 %v496
        %1525 = vmatpush.msra.mxu0 %v495
        %1526 = vmatpush.msra.mxu0 %v494
        %1527 = vmatpush.msra.mxu0 %v493
        %1528 = vmatmul.f32.gmra.mxu0 %v735
        %v1529 = vpop.f32.mrf.mxu0
        %v1530 = vadd.f32 %v1417, %v1529
        %1531 = vmatmul.f32.gmra.mxu0 %v736
        %v1532 = vpop.f32.mrf.mxu0
        %v1533 = vadd.f32 %v1420, %v1532
        %1534 = vmatmul.f32.gmra.mxu0 %v737
        %v1535 = vpop.f32.mrf.mxu0
        %v1536 = vadd.f32 %v1423, %v1535
        %1537 = vmatmul.f32.gmra.mxu0 %v738
        %v1538 = vpop.f32.mrf.mxu0
        %v1539 = vadd.f32 %v1426, %v1538
        %1540 = vmatmul.f32.gmra.mxu0 %v739
        %v1541 = vpop.f32.mrf.mxu0
        %v1542 = vadd.f32 %v1429, %v1541
        %1543 = vmatmul.f32.gmra.mxu0 %v740
        %v1544 = vpop.f32.mrf.mxu0
        %v1545 = vadd.f32 %v1432, %v1544
        %1546 = vmatmul.f32.gmra.mxu0 %v741
        %v1547 = vpop.f32.mrf.mxu0
        %v1548 = vadd.f32 %v1435, %v1547
        %1549 = vmatmul.f32.gmra.mxu0 %v742
        %v1550 = vpop.f32.mrf.mxu0
        %v1551 = vadd.f32 %v1438, %v1550
        %1552 = vmatmul.f32.gmra.mxu0 %v743
        %v1553 = vpop.f32.mrf.mxu0
        %v1554 = vadd.f32 %v1441, %v1553
        %1555 = vmatmul.f32.gmra.mxu0 %v744
        %v1556 = vpop.f32.mrf.mxu0
        %v1557 = vadd.f32 %v1444, %v1556
        %1558 = vmatmul.f32.gmra.mxu0 %v745
        %v1559 = vpop.f32.mrf.mxu0
        %v1560 = vadd.f32 %v1447, %v1559
        %1561 = vmatmul.f32.gmra.mxu0 %v746
        %v1562 = vpop.f32.mrf.mxu0
        %v1563 = vadd.f32 %v1450, %v1562
        %1564 = vmatmul.f32.gmra.mxu0 %v747
        %v1565 = vpop.f32.mrf.mxu0
        %v1566 = vadd.f32 %v1453, %v1565
        %1567 = vmatmul.f32.gmra.mxu0 %v748
        %v1568 = vpop.f32.mrf.mxu0
        %v1569 = vadd.f32 %v1456, %v1568
        %1570 = vmatmul.f32.gmra.mxu0 %v749
        %v1571 = vpop.f32.mrf.mxu0
        %v1572 = vadd.f32 %v1459, %v1571
        %1573 = vmatmul.f32.gmra.mxu0 %v750
        %v1574 = vpop.f32.mrf.mxu0
        %v1575 = vadd.f32 %v1462, %v1574
        %1576 = vmatmul.f32.gmra.mxu0 %v751
        %v1577 = vpop.f32.mrf.mxu0
        %v1578 = vadd.f32 %v1465, %v1577
        %1579 = vmatmul.f32.gmra.mxu0 %v752
        %v1580 = vpop.f32.mrf.mxu0
        %v1581 = vadd.f32 %v1468, %v1580
        %1582 = vmatmul.f32.gmra.mxu0 %v753
        %v1583 = vpop.f32.mrf.mxu0
        %v1584 = vadd.f32 %v1471, %v1583
        %1585 = vmatmul.f32.gmra.mxu0 %v754
        %v1586 = vpop.f32.mrf.mxu0
        %v1587 = vadd.f32 %v1474, %v1586
        %1588 = vmatmul.f32.gmra.mxu0 %v755
        %v1589 = vpop.f32.mrf.mxu0
        %v1590 = vadd.f32 %v1477, %v1589
        %1591 = vmatmul.f32.gmra.mxu0 %v756
        %v1592 = vpop.f32.mrf.mxu0
        %v1593 = vadd.f32 %v1480, %v1592
        %1594 = vmatmul.f32.gmra.mxu0 %v757
        %v1595 = vpop.f32.mrf.mxu0
        %v1596 = vadd.f32 %v1483, %v1595
        %1597 = vmatmul.f32.gmra.mxu0 %v758
        %v1598 = vpop.f32.mrf.mxu0
        %v1599 = vadd.f32 %v1486, %v1598
        %1600 = vmatmul.f32.gmra.mxu0 %v759
        %v1601 = vpop.f32.mrf.mxu0
        %v1602 = vadd.f32 %v1489, %v1601
        %1603 = vmatmul.f32.gmra.mxu0 %v760
        %v1604 = vpop.f32.mrf.mxu0
        %v1605 = vadd.f32 %v1492, %v1604
        %1606 = vmatmul.f32.gmra.mxu0 %v761
        %v1607 = vpop.f32.mrf.mxu0
        %v1608 = vadd.f32 %v1495, %v1607
        %1609 = vmatmul.f32.gmra.mxu0 %v762
        %v1610 = vpop.f32.mrf.mxu0
        %v1611 = vadd.f32 %v1498, %v1610
        %1612 = vmatmul.f32.gmra.mxu0 %v763
        %v1613 = vpop.f32.mrf.mxu0
        %v1614 = vadd.f32 %v1501, %v1613
        %1615 = vmatmul.f32.gmra.mxu0 %v764
        %v1616 = vpop.f32.mrf.mxu0
        %v1617 = vadd.f32 %v1504, %v1616
        %1618 = vmatmul.f32.gmra.mxu0 %v765
        %v1619 = vpop.f32.mrf.mxu0
        %v1620 = vadd.f32 %v1507, %v1619
        %1621 = vmatmul.f32.gmra.mxu0 %v766
        %v1622 = vpop.f32.mrf.mxu0
        %v1623 = vadd.f32 %v1510, %v1622
        %1624 = vdwg.mxu0
        %1625 = vmatpush.msra.mxu0 %v524
        %1626 = vmatpush.msra.mxu0 %v523
        %1627 = vmatpush.msra.mxu0 %v522
        %1628 = vmatpush.msra.mxu0 %v521
        %1629 = vmatpush.msra.mxu0 %v520
        %1630 = vmatpush.msra.mxu0 %v519
        %1631 = vmatpush.msra.mxu0 %v518
        %1632 = vmatpush.msra.mxu0 %v517
        %1633 = vmatpush.msra.mxu0 %v516
        %1634 = vmatpush.msra.mxu0 %v515
        %1635 = vmatpush.msra.mxu0 %v514
        %1636 = vmatpush.msra.mxu0 %v513
        %1637 = vmatpush.msra.mxu0 %v512
        %1638 = vmatpush.msra.mxu0 %v511
        %1639 = vmatpush.msra.mxu0 %v510
        %1640 = vmatpush.msra.mxu0 %v509
        %1641 = vmatmul.f32.gmra.mxu0 %v767
        %v1642 = vpop.f32.mrf.mxu0
        %v1643 = vadd.f32 %v1530, %v1642
        %1644 = vmatmul.f32.gmra.mxu0 %v768
        %v1645 = vpop.f32.mrf.mxu0
        %v1646 = vadd.f32 %v1533, %v1645
        %1647 = vmatmul.f32.gmra.mxu0 %v769
        %v1648 = vpop.f32.mrf.mxu0
        %v1649 = vadd.f32 %v1536, %v1648
        %1650 = vmatmul.f32.gmra.mxu0 %v770
        %v1651 = vpop.f32.mrf.mxu0
        %v1652 = vadd.f32 %v1539, %v1651
        %1653 = vmatmul.f32.gmra.mxu0 %v771
        %v1654 = vpop.f32.mrf.mxu0
        %v1655 = vadd.f32 %v1542, %v1654
        %1656 = vmatmul.f32.gmra.mxu0 %v772
        %v1657 = vpop.f32.mrf.mxu0
        %v1658 = vadd.f32 %v1545, %v1657
        %1659 = vmatmul.f32.gmra.mxu0 %v773
        %v1660 = vpop.f32.mrf.mxu0
        %v1661 = vadd.f32 %v1548, %v1660
        %1662 = vmatmul.f32.gmra.mxu0 %v774
        %v1663 = vpop.f32.mrf.mxu0
        %v1664 = vadd.f32 %v1551, %v1663
        %1665 = vmatmul.f32.gmra.mxu0 %v775
        %v1666 = vpop.f32.mrf.mxu0
        %v1667 = vadd.f32 %v1554, %v1666
        %1668 = vmatmul.f32.gmra.mxu0 %v776
        %v1669 = vpop.f32.mrf.mxu0
        %v1670 = vadd.f32 %v1557, %v1669
        %1671 = vmatmul.f32.gmra.mxu0 %v777
        %v1672 = vpop.f32.mrf.mxu0
        %v1673 = vadd.f32 %v1560, %v1672
        %1674 = vmatmul.f32.gmra.mxu0 %v778
        %v1675 = vpop.f32.mrf.mxu0
        %v1676 = vadd.f32 %v1563, %v1675
        %1677 = vmatmul.f32.gmra.mxu0 %v779
        %v1678 = vpop.f32.mrf.mxu0
        %v1679 = vadd.f32 %v1566, %v1678
        %1680 = vmatmul.f32.gmra.mxu0 %v780
        %v1681 = vpop.f32.mrf.mxu0
        %v1682 = vadd.f32 %v1569, %v1681
        %1683 = vmatmul.f32.gmra.mxu0 %v781
        %v1684 = vpop.f32.mrf.mxu0
        %v1685 = vadd.f32 %v1572, %v1684
        %1686 = vmatmul.f32.gmra.mxu0 %v782
        %v1687 = vpop.f32.mrf.mxu0
        %v1688 = vadd.f32 %v1575, %v1687
        %1689 = vmatmul.f32.gmra.mxu0 %v783
        %v1690 = vpop.f32.mrf.mxu0
        %v1691 = vadd.f32 %v1578, %v1690
        %1692 = vmatmul.f32.gmra.mxu0 %v784
        %v1693 = vpop.f32.mrf.mxu0
        %v1694 = vadd.f32 %v1581, %v1693
        %1695 = vmatmul.f32.gmra.mxu0 %v785
        %v1696 = vpop.f32.mrf.mxu0
        %v1697 = vadd.f32 %v1584, %v1696
        %1698 = vmatmul.f32.gmra.mxu0 %v786
        %v1699 = vpop.f32.mrf.mxu0
        %v1700 = vadd.f32 %v1587, %v1699
        %1701 = vmatmul.f32.gmra.mxu0 %v787
        %v1702 = vpop.f32.mrf.mxu0
        %v1703 = vadd.f32 %v1590, %v1702
        %1704 = vmatmul.f32.gmra.mxu0 %v788
        %v1705 = vpop.f32.mrf.mxu0
        %v1706 = vadd.f32 %v1593, %v1705
        %1707 = vmatmul.f32.gmra.mxu0 %v789
        %v1708 = vpop.f32.mrf.mxu0
        %v1709 = vadd.f32 %v1596, %v1708
        %1710 = vmatmul.f32.gmra.mxu0 %v790
        %v1711 = vpop.f32.mrf.mxu0
        %v1712 = vadd.f32 %v1599, %v1711
        %1713 = vmatmul.f32.gmra.mxu0 %v791
        %v1714 = vpop.f32.mrf.mxu0
        %v1715 = vadd.f32 %v1602, %v1714
        %1716 = vmatmul.f32.gmra.mxu0 %v792
        %v1717 = vpop.f32.mrf.mxu0
        %v1718 = vadd.f32 %v1605, %v1717
        %1719 = vmatmul.f32.gmra.mxu0 %v793
        %v1720 = vpop.f32.mrf.mxu0
        %v1721 = vadd.f32 %v1608, %v1720
        %1722 = vmatmul.f32.gmra.mxu0 %v794
        %v1723 = vpop.f32.mrf.mxu0
        %v1724 = vadd.f32 %v1611, %v1723
        %1725 = vmatmul.f32.gmra.mxu0 %v795
        %v1726 = vpop.f32.mrf.mxu0
        %v1727 = vadd.f32 %v1614, %v1726
        %1728 = vmatmul.f32.gmra.mxu0 %v796
        %v1729 = vpop.f32.mrf.mxu0
        %v1730 = vadd.f32 %v1617, %v1729
        %1731 = vmatmul.f32.gmra.mxu0 %v797
        %v1732 = vpop.f32.mrf.mxu0
        %v1733 = vadd.f32 %v1620, %v1732
        %1734 = vmatmul.f32.gmra.mxu0 %v798
        %v1735 = vpop.f32.mrf.mxu0
        %v1736 = vadd.f32 %v1623, %v1735
        %1737 = vdwg.mxu0
        %1738 = vmatpush.msra.mxu0 %v540
        %1739 = vmatpush.msra.mxu0 %v539
        %1740 = vmatpush.msra.mxu0 %v538
        %1741 = vmatpush.msra.mxu0 %v537
        %1742 = vmatpush.msra.mxu0 %v536
        %1743 = vmatpush.msra.mxu0 %v535
        %1744 = vmatpush.msra.mxu0 %v534
        %1745 = vmatpush.msra.mxu0 %v533
        %1746 = vmatpush.msra.mxu0 %v532
        %1747 = vmatpush.msra.mxu0 %v531
        %1748 = vmatpush.msra.mxu0 %v530
        %1749 = vmatpush.msra.mxu0 %v529
        %1750 = vmatpush.msra.mxu0 %v528
        %1751 = vmatpush.msra.mxu0 %v527
        %1752 = vmatpush.msra.mxu0 %v526
        %1753 = vmatpush.msra.mxu0 %v525
        %1754 = vmatmul.f32.gmra.mxu0 %v799
        %v1755 = vpop.f32.mrf.mxu0
        %v1756 = vadd.f32 %v1643, %v1755
        %1757 = vmatmul.f32.gmra.mxu0 %v800
        %v1758 = vpop.f32.mrf.mxu0
        %v1759 = vadd.f32 %v1646, %v1758
        %1760 = vmatmul.f32.gmra.mxu0 %v801
        %v1761 = vpop.f32.mrf.mxu0
        %v1762 = vadd.f32 %v1649, %v1761
        %1763 = vmatmul.f32.gmra.mxu0 %v802
        %v1764 = vpop.f32.mrf.mxu0
        %v1765 = vadd.f32 %v1652, %v1764
        %1766 = vmatmul.f32.gmra.mxu0 %v803
        %v1767 = vpop.f32.mrf.mxu0
        %v1768 = vadd.f32 %v1655, %v1767
        %1769 = vmatmul.f32.gmra.mxu0 %v804
        %v1770 = vpop.f32.mrf.mxu0
        %v1771 = vadd.f32 %v1658, %v1770
        %1772 = vmatmul.f32.gmra.mxu0 %v805
        %v1773 = vpop.f32.mrf.mxu0
        %v1774 = vadd.f32 %v1661, %v1773
        %1775 = vmatmul.f32.gmra.mxu0 %v806
        %v1776 = vpop.f32.mrf.mxu0
        %v1777 = vadd.f32 %v1664, %v1776
        %1778 = vmatmul.f32.gmra.mxu0 %v807
        %v1779 = vpop.f32.mrf.mxu0
        %v1780 = vadd.f32 %v1667, %v1779
        %1781 = vmatmul.f32.gmra.mxu0 %v808
        %v1782 = vpop.f32.mrf.mxu0
        %v1783 = vadd.f32 %v1670, %v1782
        %1784 = vmatmul.f32.gmra.mxu0 %v809
        %v1785 = vpop.f32.mrf.mxu0
        %v1786 = vadd.f32 %v1673, %v1785
        %1787 = vmatmul.f32.gmra.mxu0 %v810
        %v1788 = vpop.f32.mrf.mxu0
        %v1789 = vadd.f32 %v1676, %v1788
        %1790 = vmatmul.f32.gmra.mxu0 %v811
        %v1791 = vpop.f32.mrf.mxu0
        %v1792 = vadd.f32 %v1679, %v1791
        %1793 = vmatmul.f32.gmra.mxu0 %v812
        %v1794 = vpop.f32.mrf.mxu0
        %v1795 = vadd.f32 %v1682, %v1794
        %1796 = vmatmul.f32.gmra.mxu0 %v813
        %v1797 = vpop.f32.mrf.mxu0
        %v1798 = vadd.f32 %v1685, %v1797
        %1799 = vmatmul.f32.gmra.mxu0 %v814
        %v1800 = vpop.f32.mrf.mxu0
        %v1801 = vadd.f32 %v1688, %v1800
        %1802 = vmatmul.f32.gmra.mxu0 %v815
        %v1803 = vpop.f32.mrf.mxu0
        %v1804 = vadd.f32 %v1691, %v1803
        %1805 = vmatmul.f32.gmra.mxu0 %v816
        %v1806 = vpop.f32.mrf.mxu0
        %v1807 = vadd.f32 %v1694, %v1806
        %1808 = vmatmul.f32.gmra.mxu0 %v817
        %v1809 = vpop.f32.mrf.mxu0
        %v1810 = vadd.f32 %v1697, %v1809
        %1811 = vmatmul.f32.gmra.mxu0 %v818
        %v1812 = vpop.f32.mrf.mxu0
        %v1813 = vadd.f32 %v1700, %v1812
        %1814 = vmatmul.f32.gmra.mxu0 %v819
        %v1815 = vpop.f32.mrf.mxu0
        %v1816 = vadd.f32 %v1703, %v1815
        %1817 = vmatmul.f32.gmra.mxu0 %v820
        %v1818 = vpop.f32.mrf.mxu0
        %v1819 = vadd.f32 %v1706, %v1818
        %1820 = vmatmul.f32.gmra.mxu0 %v821
        %v1821 = vpop.f32.mrf.mxu0
        %v1822 = vadd.f32 %v1709, %v1821
        %1823 = vmatmul.f32.gmra.mxu0 %v822
        %v1824 = vpop.f32.mrf.mxu0
        %v1825 = vadd.f32 %v1712, %v1824
        %1826 = vmatmul.f32.gmra.mxu0 %v823
        %v1827 = vpop.f32.mrf.mxu0
        %v1828 = vadd.f32 %v1715, %v1827
        %1829 = vmatmul.f32.gmra.mxu0 %v824
        %v1830 = vpop.f32.mrf.mxu0
        %v1831 = vadd.f32 %v1718, %v1830
        %1832 = vmatmul.f32.gmra.mxu0 %v825
        %v1833 = vpop.f32.mrf.mxu0
        %v1834 = vadd.f32 %v1721, %v1833
        %1835 = vmatmul.f32.gmra.mxu0 %v826
        %v1836 = vpop.f32.mrf.mxu0
        %v1837 = vadd.f32 %v1724, %v1836
        %1838 = vmatmul.f32.gmra.mxu0 %v827
        %v1839 = vpop.f32.mrf.mxu0
        %v1840 = vadd.f32 %v1727, %v1839
        %1841 = vmatmul.f32.gmra.mxu0 %v828
        %v1842 = vpop.f32.mrf.mxu0
        %v1843 = vadd.f32 %v1730, %v1842
        %1844 = vmatmul.f32.gmra.mxu0 %v829
        %v1845 = vpop.f32.mrf.mxu0
        %v1846 = vadd.f32 %v1733, %v1845
        %1847 = vmatmul.f32.gmra.mxu0 %v830
        %v1848 = vpop.f32.mrf.mxu0
        %v1849 = vadd.f32 %v1736, %v1848
        %1850 = vdwg.mxu0
        %v1851 = vmax.f32 %v1756, 0.0
        %v1852 = vmax.f32 %v1759, 0.0
        %v1853 = vmax.f32 %v1762, 0.0
        %v1854 = vmax.f32 %v1765, 0.0
        %v1855 = vmax.f32 %v1768, 0.0
        %v1856 = vmax.f32 %v1771, 0.0
        %v1857 = vmax.f32 %v1774, 0.0
        %v1858 = vmax.f32 %v1777, 0.0
        %v1859 = vmax.f32 %v1780, 0.0
        %v1860 = vmax.f32 %v1783, 0.0
        %v1861 = vmax.f32 %v1786, 0.0
        %v1862 = vmax.f32 %v1789, 0.0
        %v1863 = vmax.f32 %v1792, 0.0
        %v1864 = vmax.f32 %v1795, 0.0
        %v1865 = vmax.f32 %v1798, 0.0
        %v1866 = vmax.f32 %v1801, 0.0
        %v1867 = vmax.f32 %v1804, 0.0
        %v1868 = vmax.f32 %v1807, 0.0
        %v1869 = vmax.f32 %v1810, 0.0
        %v1870 = vmax.f32 %v1813, 0.0
        %v1871 = vmax.f32 %v1816, 0.0
        %v1872 = vmax.f32 %v1819, 0.0
        %v1873 = vmax.f32 %v1822, 0.0
        %v1874 = vmax.f32 %v1825, 0.0
        %v1875 = vmax.f32 %v1828, 0.0
        %v1876 = vmax.f32 %v1831, 0.0
        %v1877 = vmax.f32 %v1834, 0.0
        %v1878 = vmax.f32 %v1837, 0.0
        %v1879 = vmax.f32 %v1840, 0.0
        %v1880 = vmax.f32 %v1843, 0.0
        %v1881 = vmax.f32 %v1846, 0.0
        %v1882 = vmax.f32 %v1849, 0.0
        %1883 = vst [vmem:[#allocation3] sm:$0xff] 0.0
        %1884 = vst [vmem:[#allocation3 + $0x8] sm:$0xff] 0.0
        %1885 = vst [vmem:[#allocation3 + $0x10] sm:$0x3] 0.0
        %1886 = vst [vmem:[#allocation3 + $0x18] sm:$0xff] 0.0
        %1887 = vst [vmem:[#allocation3 + $0x20] sm:$0xff] 0.0
        %1888 = vst [vmem:[#allocation3 + $0x28] sm:$0x3] 0.0
        %1889 = vst [vmem:[#allocation3 + $0x30] sm:$0xff] 0.0
        %1890 = vst [vmem:[#allocation3 + $0x38] sm:$0xff] 0.0
        %1891 = vst [vmem:[#allocation3 + $0x40] sm:$0x3] 0.0
        %1892 = vst [vmem:[#allocation3 + $0x48] sm:$0xff] 0.0
        %1893 = vst [vmem:[#allocation3 + $0x50] sm:$0xff] 0.0
        %1894 = vst [vmem:[#allocation3 + $0x58] sm:$0x3] 0.0
        %1895 = vst [vmem:[#allocation3 + $0x60] sm:$0xff] 0.0
        %1896 = vst [vmem:[#allocation3 + $0x68] sm:$0xff] 0.0
        %1897 = vst [vmem:[#allocation3 + $0x70] sm:$0x3] 0.0
        %1898 = vst [vmem:[#allocation3 + $0x78] sm:$0xff] 0.0
        %1899 = vst [vmem:[#allocation3 + $0x80] sm:$0xff] 0.0
        %1900 = vst [vmem:[#allocation3 + $0x88] sm:$0x3] 0.0
        %1901 = vst [vmem:[#allocation3 + $0x90] sm:$0xff] 0.0
        %1902 = vst [vmem:[#allocation3 + $0x98] sm:$0xff] 0.0
        %1903 = vst [vmem:[#allocation3 + $0xa0] sm:$0x3] 0.0
        %1904 = vst [vmem:[#allocation3 + $0xa8] sm:$0xff] 0.0
        %1905 = vst [vmem:[#allocation3 + $0xb0] sm:$0xff] 0.0
        %1906 = vst [vmem:[#allocation3 + $0xb8] sm:$0x3] 0.0
        %1907 = vst [vmem:[#allocation3 + $0xc0] sm:$0xff] 0.0
        %1908 = vst [vmem:[#allocation3 + $0xc8] sm:$0xff] 0.0
        %1909 = vst [vmem:[#allocation3 + $0xd0] sm:$0x3] 0.0
        %1910 = vst [vmem:[#allocation3 + $0xd8] sm:$0xff] 0.0
        %1911 = vst [vmem:[#allocation3 + $0xe0] sm:$0xff] 0.0
        %1912 = vst [vmem:[#allocation3 + $0xe8] sm:$0x3] 0.0
        %1913 = vst [vmem:[#allocation3 + $0xf0] sm:$0xff] 0.0
        %1914 = vst [vmem:[#allocation3 + $0xf8] sm:$0xff] 0.0
        %1915 = vst [vmem:[#allocation3 + $0x100] sm:$0x3] 0.0
        %1916 = vst [vmem:[#allocation3 + $0x108] sm:$0xff] 0.0
        %1917 = vst [vmem:[#allocation3 + $0x110] sm:$0xff] 0.0
        %1918 = vst [vmem:[#allocation3 + $0x118] sm:$0x3] 0.0
        %1919 = vst [vmem:[#allocation3 + $0x120] sm:$0xff] 0.0
        %1920 = vst [vmem:[#allocation3 + $0x128] sm:$0xff] 0.0
        %1921 = vst [vmem:[#allocation3 + $0x130] sm:$0x3] 0.0
        %1922 = vst [vmem:[#allocation3 + $0x138] sm:$0xff] 0.0
        %1923 = vst [vmem:[#allocation3 + $0x140] sm:$0xff] 0.0
        %1924 = vst [vmem:[#allocation3 + $0x148] sm:$0x3] 0.0
        %1925 = vst [vmem:[#allocation3 + $0x150] sm:$0xff] 0.0
        %1926 = vst [vmem:[#allocation3 + $0x158] sm:$0xff] 0.0
        %1927 = vst [vmem:[#allocation3 + $0x160] sm:$0x3] 0.0
        %1928 = vst [vmem:[#allocation3 + $0x168] sm:$0xff] 0.0
        %1929 = vst [vmem:[#allocation3 + $0x170] sm:$0xff] 0.0
        %1930 = vst [vmem:[#allocation3 + $0x178] sm:$0x3] 0.0
        %1931 = vst [vmem:[#allocation3 + $0x180] sm:$0xff] 0.0
        %1932 = vst [vmem:[#allocation3 + $0x188] sm:$0xff] 0.0
        %1933 = vst [vmem:[#allocation3 + $0x190] sm:$0x3] 0.0
        %1934 = vst [vmem:[#allocation3 + $0x198] sm:$0xff] 0.0
        %1935 = vst [vmem:[#allocation3 + $0x1a0] sm:$0xff] 0.0
        %1936 = vst [vmem:[#allocation3 + $0x1a8] sm:$0x3] 0.0
        %s1937 = scalar_lea.vmem [#allocation3], 24
        %1938 = vst [vmem:[%s1937 + $0x1] sm:$0xff] %v1851
        %1939 = vst [vmem:[%s1937 + $0x9] sm:$0xff] %v1852
        %1940 = vst [vmem:[%s1937 + $0x19] sm:$0xff] %v1853
        %1941 = vst [vmem:[%s1937 + $0x21] sm:$0xff] %v1854
        %1942 = vst [vmem:[%s1937 + $0x31] sm:$0xff] %v1855
        %1943 = vst [vmem:[%s1937 + $0x39] sm:$0xff] %v1856
        %1944 = vst [vmem:[%s1937 + $0x49] sm:$0xff] %v1857
        %1945 = vst [vmem:[%s1937 + $0x51] sm:$0xff] %v1858
        %1946 = vst [vmem:[%s1937 + $0x61] sm:$0xff] %v1859
        %1947 = vst [vmem:[%s1937 + $0x69] sm:$0xff] %v1860
        %1948 = vst [vmem:[%s1937 + $0x79] sm:$0xff] %v1861
        %1949 = vst [vmem:[%s1937 + $0x81] sm:$0xff] %v1862
        %1950 = vst [vmem:[%s1937 + $0x91] sm:$0xff] %v1863
        %1951 = vst [vmem:[%s1937 + $0x99] sm:$0xff] %v1864
        %1952 = vst [vmem:[%s1937 + $0xa9] sm:$0xff] %v1865
        %1953 = vst [vmem:[%s1937 + $0xb1] sm:$0xff] %v1866
        %1954 = vst [vmem:[%s1937 + $0xc1] sm:$0xff] %v1867
        %1955 = vst [vmem:[%s1937 + $0xc9] sm:$0xff] %v1868
        %1956 = vst [vmem:[%s1937 + $0xd9] sm:$0xff] %v1869
        %1957 = vst [vmem:[%s1937 + $0xe1] sm:$0xff] %v1870
        %1958 = vst [vmem:[%s1937 + $0xf1] sm:$0xff] %v1871
        %1959 = vst [vmem:[%s1937 + $0xf9] sm:$0xff] %v1872
        %1960 = vst [vmem:[%s1937 + $0x109] sm:$0xff] %v1873
        %1961 = vst [vmem:[%s1937 + $0x111] sm:$0xff] %v1874
        %1962 = vst [vmem:[%s1937 + $0x121] sm:$0xff] %v1875
        %1963 = vst [vmem:[%s1937 + $0x129] sm:$0xff] %v1876
        %1964 = vst [vmem:[%s1937 + $0x139] sm:$0xff] %v1877
        %1965 = vst [vmem:[%s1937 + $0x141] sm:$0xff] %v1878
        %1966 = vst [vmem:[%s1937 + $0x151] sm:$0xff] %v1879
        %1967 = vst [vmem:[%s1937 + $0x159] sm:$0xff] %v1880
        %1968 = vst [vmem:[%s1937 + $0x169] sm:$0xff] %v1881
        %1969 = vst [vmem:[%s1937 + $0x171] sm:$0xff] %v1882
        %v1970 = vld [vmem:[#allocation9] sm:$0xff]
        %v1971 = vld [vmem:[#allocation9 + $0x8] sm:$0xff]
        %v1972 = vld [vmem:[#allocation9 + $0x10] sm:$0xff]
        %v1973 = vld [vmem:[#allocation9 + $0x18] sm:$0xff]
        %v1974 = vld [vmem:[#allocation9 + $0x20] sm:$0xff]
        %v1975 = vld [vmem:[#allocation9 + $0x28] sm:$0xff]
        %v1976 = vld [vmem:[#allocation9 + $0x30] sm:$0xff]
        %v1977 = vld [vmem:[#allocation9 + $0x38] sm:$0xff]
        %v1978 = vld [vmem:[#allocation9 + $0x40] sm:$0xff]
        %v1979 = vld [vmem:[#allocation9 + $0x48] sm:$0xff]
        %v1980 = vld [vmem:[#allocation9 + $0x50] sm:$0xff]
        %v1981 = vld [vmem:[#allocation9 + $0x58] sm:$0xff]
        %v1982 = vld [vmem:[#allocation9 + $0x60] sm:$0xff]
        %v1983 = vld [vmem:[#allocation9 + $0x68] sm:$0xff]
        %v1984 = vld [vmem:[#allocation9 + $0x70] sm:$0xff]
        %v1985 = vld [vmem:[#allocation9 + $0x78] sm:$0xff]
        %v1986 = vld [vmem:[#allocation9 + $0x80] sm:$0xff]
        %v1987 = vld [vmem:[#allocation9 + $0x88] sm:$0xff]
        %v1988 = vld [vmem:[#allocation9 + $0x90] sm:$0xff]
        %v1989 = vld [vmem:[#allocation9 + $0x98] sm:$0xff]
        %v1990 = vld [vmem:[#allocation9 + $0xa0] sm:$0xff]
        %v1991 = vld [vmem:[#allocation9 + $0xa8] sm:$0xff]
        %v1992 = vld [vmem:[#allocation9 + $0xb0] sm:$0xff]
        %v1993 = vld [vmem:[#allocation9 + $0xb8] sm:$0xff]
        %v1994 = vld [vmem:[#allocation9 + $0xc0] sm:$0xff]
        %v1995 = vld [vmem:[#allocation9 + $0xc8] sm:$0xff]
        %v1996 = vld [vmem:[#allocation9 + $0xd0] sm:$0xff]
        %v1997 = vld [vmem:[#allocation9 + $0xd8] sm:$0xff]
        %v1998 = vld [vmem:[#allocation9 + $0xe0] sm:$0xff]
        %v1999 = vld [vmem:[#allocation9 + $0xe8] sm:$0xff]
        %v2000 = vld [vmem:[#allocation9 + $0xf0] sm:$0xff]
        %v2001 = vld [vmem:[#allocation9 + $0xf8] sm:$0xff]
        %v2002 = vld [vmem:[#allocation9 + $0x100] sm:$0xff]
        %v2003 = vld [vmem:[#allocation9 + $0x108] sm:$0xff]
        %v2004 = vld [vmem:[#allocation9 + $0x110] sm:$0xff]
        %v2005 = vld [vmem:[#allocation9 + $0x118] sm:$0xff]
        %v2006 = vld [vmem:[#allocation9 + $0x120] sm:$0xff]
        %v2007 = vld [vmem:[#allocation9 + $0x128] sm:$0xff]
        %v2008 = vld [vmem:[#allocation9 + $0x130] sm:$0xff]
        %v2009 = vld [vmem:[#allocation9 + $0x138] sm:$0xff]
        %v2010 = vld [vmem:[#allocation9 + $0x140] sm:$0xff]
        %v2011 = vld [vmem:[#allocation9 + $0x148] sm:$0xff]
        %v2012 = vld [vmem:[#allocation9 + $0x150] sm:$0xff]
        %v2013 = vld [vmem:[#allocation9 + $0x158] sm:$0xff]
        %v2014 = vld [vmem:[#allocation9 + $0x160] sm:$0xff]
        %v2015 = vld [vmem:[#allocation9 + $0x168] sm:$0xff]
        %v2016 = vld [vmem:[#allocation9 + $0x170] sm:$0xff]
        %v2017 = vld [vmem:[#allocation9 + $0x178] sm:$0xff]
        %v2018 = vld [vmem:[#allocation9 + $0x180] sm:$0xff]
        %v2019 = vld [vmem:[#allocation9 + $0x188] sm:$0xff]
        %v2020 = vld [vmem:[#allocation9 + $0x190] sm:$0xff]
        %v2021 = vld [vmem:[#allocation9 + $0x198] sm:$0xff]
        %v2022 = vld [vmem:[#allocation9 + $0x1a0] sm:$0xff]
        %v2023 = vld [vmem:[#allocation9 + $0x1a8] sm:$0xff]
        %v2024 = vld [vmem:[#allocation9 + $0x1b0] sm:$0xff]
        %v2025 = vld [vmem:[#allocation9 + $0x1b8] sm:$0xff]
        %v2026 = vld [vmem:[#allocation9 + $0x1c0] sm:$0xff]
        %v2027 = vld [vmem:[#allocation9 + $0x1c8] sm:$0xff]
        %v2028 = vld [vmem:[#allocation9 + $0x1d0] sm:$0xff]
        %v2029 = vld [vmem:[#allocation9 + $0x1d8] sm:$0xff]
        %v2030 = vld [vmem:[#allocation9 + $0x1e0] sm:$0xff]
        %v2031 = vld [vmem:[#allocation9 + $0x1e8] sm:$0xff]
        %v2032 = vld [vmem:[#allocation9 + $0x1f0] sm:$0xff]
        %v2033 = vld [vmem:[#allocation9 + $0x1f8] sm:$0xff]
        %v2034 = vld [vmem:[#allocation9 + $0x200] sm:$0xff]
        %v2035 = vld [vmem:[#allocation9 + $0x208] sm:$0xff]
        %v2036 = vld [vmem:[#allocation9 + $0x210] sm:$0xff]
        %v2037 = vld [vmem:[#allocation9 + $0x218] sm:$0xff]
        %v2038 = vld [vmem:[#allocation9 + $0x220] sm:$0xff]
        %v2039 = vld [vmem:[#allocation9 + $0x228] sm:$0xff]
        %v2040 = vld [vmem:[#allocation9 + $0x230] sm:$0xff]
        %v2041 = vld [vmem:[#allocation9 + $0x238] sm:$0xff]
        %v2042 = vld [vmem:[#allocation9 + $0x240] sm:$0xff]
        %v2043 = vld [vmem:[#allocation9 + $0x248] sm:$0xff]
        %v2044 = vld [vmem:[#allocation9 + $0x250] sm:$0xff]
        %v2045 = vld [vmem:[#allocation9 + $0x258] sm:$0xff]
        %v2046 = vld [vmem:[#allocation9 + $0x260] sm:$0xff]
        %v2047 = vld [vmem:[#allocation9 + $0x268] sm:$0xff]
        %v2048 = vld [vmem:[#allocation9 + $0x270] sm:$0xff]
        %v2049 = vld [vmem:[#allocation9 + $0x278] sm:$0xff]
        %v2050 = vld [vmem:[#allocation9 + $0x280] sm:$0xff]
        %v2051 = vld [vmem:[#allocation9 + $0x288] sm:$0xff]
        %v2052 = vld [vmem:[#allocation9 + $0x290] sm:$0xff]
        %v2053 = vld [vmem:[#allocation9 + $0x298] sm:$0xff]
        %v2054 = vld [vmem:[#allocation9 + $0x2a0] sm:$0xff]
        %v2055 = vld [vmem:[#allocation9 + $0x2a8] sm:$0xff]
        %v2056 = vld [vmem:[#allocation9 + $0x2b0] sm:$0xff]
        %v2057 = vld [vmem:[#allocation9 + $0x2b8] sm:$0xff]
        %v2058 = vld [vmem:[#allocation9 + $0x2c0] sm:$0xff]
        %v2059 = vld [vmem:[#allocation9 + $0x2c8] sm:$0xff]
        %v2060 = vld [vmem:[#allocation9 + $0x2d0] sm:$0xff]
        %v2061 = vld [vmem:[#allocation9 + $0x2d8] sm:$0xff]
        %v2062 = vld [vmem:[#allocation9 + $0x2e0] sm:$0xff]
        %v2063 = vld [vmem:[#allocation9 + $0x2e8] sm:$0xff]
        %v2064 = vld [vmem:[#allocation9 + $0x2f0] sm:$0xff]
        %v2065 = vld [vmem:[#allocation9 + $0x2f8] sm:$0xff]
        %v2066 = vld [vmem:[#allocation9 + $0x300] sm:$0xff]
        %v2067 = vld [vmem:[#allocation9 + $0x308] sm:$0xff]
        %v2068 = vld [vmem:[#allocation9 + $0x310] sm:$0xff]
        %v2069 = vld [vmem:[#allocation9 + $0x318] sm:$0xff]
        %v2070 = vld [vmem:[#allocation9 + $0x320] sm:$0xff]
        %v2071 = vld [vmem:[#allocation9 + $0x328] sm:$0xff]
        %v2072 = vld [vmem:[#allocation9 + $0x330] sm:$0xff]
        %v2073 = vld [vmem:[#allocation9 + $0x338] sm:$0xff]
        %v2074 = vld [vmem:[#allocation9 + $0x340] sm:$0xff]
        %v2075 = vld [vmem:[#allocation9 + $0x348] sm:$0xff]
        %v2076 = vld [vmem:[#allocation9 + $0x350] sm:$0xff]
        %v2077 = vld [vmem:[#allocation9 + $0x358] sm:$0xff]
        %v2078 = vld [vmem:[#allocation9 + $0x360] sm:$0xff]
        %v2079 = vld [vmem:[#allocation9 + $0x368] sm:$0xff]
        %v2080 = vld [vmem:[#allocation9 + $0x370] sm:$0xff]
        %v2081 = vld [vmem:[#allocation9 + $0x378] sm:$0xff]
        %v2082 = vld [vmem:[#allocation9 + $0x380] sm:$0xff]
        %v2083 = vld [vmem:[#allocation9 + $0x388] sm:$0xff]
        %v2084 = vld [vmem:[#allocation9 + $0x390] sm:$0xff]
        %v2085 = vld [vmem:[#allocation9 + $0x398] sm:$0xff]
        %v2086 = vld [vmem:[#allocation9 + $0x3a0] sm:$0xff]
        %v2087 = vld [vmem:[#allocation9 + $0x3a8] sm:$0xff]
        %v2088 = vld [vmem:[#allocation9 + $0x3b0] sm:$0xff]
        %v2089 = vld [vmem:[#allocation9 + $0x3b8] sm:$0xff]
        %v2090 = vld [vmem:[#allocation9 + $0x3c0] sm:$0xff]
        %v2091 = vld [vmem:[#allocation9 + $0x3c8] sm:$0xff]
        %v2092 = vld [vmem:[#allocation9 + $0x3d0] sm:$0xff]
        %v2093 = vld [vmem:[#allocation9 + $0x3d8] sm:$0xff]
        %v2094 = vld [vmem:[#allocation9 + $0x3e0] sm:$0xff]
        %v2095 = vld [vmem:[#allocation9 + $0x3e8] sm:$0xff]
        %v2096 = vld [vmem:[#allocation9 + $0x3f0] sm:$0xff]
        %v2097 = vld [vmem:[#allocation9 + $0x3f8] sm:$0xff]
        %v2098 = vld [vmem:[#allocation9 + $0x400] sm:$0xff]
        %v2099 = vld [vmem:[#allocation9 + $0x408] sm:$0xff]
        %v2100 = vld [vmem:[#allocation9 + $0x410] sm:$0xff]
        %v2101 = vld [vmem:[#allocation9 + $0x418] sm:$0xff]
        %v2102 = vld [vmem:[#allocation9 + $0x420] sm:$0xff]
        %v2103 = vld [vmem:[#allocation9 + $0x428] sm:$0xff]
        %v2104 = vld [vmem:[#allocation9 + $0x430] sm:$0xff]
        %v2105 = vld [vmem:[#allocation9 + $0x438] sm:$0xff]
        %v2106 = vld [vmem:[#allocation9 + $0x440] sm:$0xff]
        %v2107 = vld [vmem:[#allocation9 + $0x448] sm:$0xff]
        %v2108 = vld [vmem:[#allocation9 + $0x450] sm:$0xff]
        %v2109 = vld [vmem:[#allocation9 + $0x458] sm:$0xff]
        %v2110 = vld [vmem:[#allocation9 + $0x460] sm:$0xff]
        %v2111 = vld [vmem:[#allocation9 + $0x468] sm:$0xff]
        %v2112 = vld [vmem:[#allocation9 + $0x470] sm:$0xff]
        %v2113 = vld [vmem:[#allocation9 + $0x478] sm:$0xff]
        %v2114 = vld [vmem:[%s4] sm:$0x1]
        %v2115 = vld [vmem:[#allocation3] sm:$0xff]
        %v2116 = vld [vmem:[#allocation3 + $0x8] sm:$0xff]
        %v2117 = vld [vmem:[#allocation3 + $0x18] sm:$0xff]
        %v2118 = vld [vmem:[#allocation3 + $0x20] sm:$0xff]
        %v2119 = vld [vmem:[#allocation3 + $0x30] sm:$0xff]
        %v2120 = vld [vmem:[#allocation3 + $0x38] sm:$0xff]
        %v2121 = vld [vmem:[#allocation3 + $0x48] sm:$0xff]
        %v2122 = vld [vmem:[#allocation3 + $0x50] sm:$0xff]
        %v2123 = vld [vmem:[#allocation3 + $0x60] sm:$0xff]
        %v2124 = vld [vmem:[#allocation3 + $0x68] sm:$0xff]
        %v2125 = vld [vmem:[#allocation3 + $0x78] sm:$0xff]
        %v2126 = vld [vmem:[#allocation3 + $0x80] sm:$0xff]
        %v2127 = vld [vmem:[#allocation3 + $0x90] sm:$0xff]
        %v2128 = vld [vmem:[#allocation3 + $0x98] sm:$0xff]
        %v2129 = vld [vmem:[#allocation3 + $0xa8] sm:$0xff]
        %v2130 = vld [vmem:[#allocation3 + $0xb0] sm:$0xff]
        %v2131 = vld [vmem:[#allocation3 + $0xc0] sm:$0xff]
        %v2132 = vld [vmem:[#allocation3 + $0xc8] sm:$0xff]
        %v2133 = vld [vmem:[#allocation3 + $0xd8] sm:$0xff]
        %v2134 = vld [vmem:[#allocation3 + $0xe0] sm:$0xff]
        %v2135 = vld [vmem:[#allocation3 + $0xf0] sm:$0xff]
        %v2136 = vld [vmem:[#allocation3 + $0xf8] sm:$0xff]
        %v2137 = vld [vmem:[#allocation3 + $0x108] sm:$0xff]
        %v2138 = vld [vmem:[#allocation3 + $0x110] sm:$0xff]
        %v2139 = vld [vmem:[#allocation3 + $0x120] sm:$0xff]
        %v2140 = vld [vmem:[#allocation3 + $0x128] sm:$0xff]
        %v2141 = vld [vmem:[#allocation3 + $0x138] sm:$0xff]
        %v2142 = vld [vmem:[#allocation3 + $0x140] sm:$0xff]
        %v2143 = vld [vmem:[#allocation3 + $0x150] sm:$0xff]
        %v2144 = vld [vmem:[#allocation3 + $0x158] sm:$0xff]
        %v2145 = vld [vmem:[#allocation3 + $0x168] sm:$0xff]
        %v2146 = vld [vmem:[#allocation3 + $0x170] sm:$0xff]
        %v2147 = vld [vmem:[#allocation3 + $0x1] sm:$0xff]
        %v2148 = vld [vmem:[#allocation3 + $0x9] sm:$0xff]
        %v2149 = vld [vmem:[#allocation3 + $0x19] sm:$0xff]
        %v2150 = vld [vmem:[#allocation3 + $0x21] sm:$0xff]
        %v2151 = vld [vmem:[#allocation3 + $0x31] sm:$0xff]
        %v2152 = vld [vmem:[#allocation3 + $0x39] sm:$0xff]
        %v2153 = vld [vmem:[#allocation3 + $0x49] sm:$0xff]
        %v2154 = vld [vmem:[#allocation3 + $0x51] sm:$0xff]
        %v2155 = vld [vmem:[#allocation3 + $0x61] sm:$0xff]
        %v2156 = vld [vmem:[#allocation3 + $0x69] sm:$0xff]
        %v2157 = vld [vmem:[#allocation3 + $0x79] sm:$0xff]
        %v2158 = vld [vmem:[#allocation3 + $0x81] sm:$0xff]
        %v2159 = vld [vmem:[#allocation3 + $0x91] sm:$0xff]
        %v2160 = vld [vmem:[#allocation3 + $0x99] sm:$0xff]
        %v2161 = vld [vmem:[#allocation3 + $0xa9] sm:$0xff]
        %v2162 = vld [vmem:[#allocation3 + $0xb1] sm:$0xff]
        %v2163 = vld [vmem:[#allocation3 + $0xc1] sm:$0xff]
        %v2164 = vld [vmem:[#allocation3 + $0xc9] sm:$0xff]
        %v2165 = vld [vmem:[#allocation3 + $0xd9] sm:$0xff]
        %v2166 = vld [vmem:[#allocation3 + $0xe1] sm:$0xff]
        %v2167 = vld [vmem:[#allocation3 + $0xf1] sm:$0xff]
        %v2168 = vld [vmem:[#allocation3 + $0xf9] sm:$0xff]
        %v2169 = vld [vmem:[#allocation3 + $0x109] sm:$0xff]
        %v2170 = vld [vmem:[#allocation3 + $0x111] sm:$0xff]
        %v2171 = vld [vmem:[#allocation3 + $0x121] sm:$0xff]
        %v2172 = vld [vmem:[#allocation3 + $0x129] sm:$0xff]
        %v2173 = vld [vmem:[#allocation3 + $0x139] sm:$0xff]
        %v2174 = vld [vmem:[#allocation3 + $0x141] sm:$0xff]
        %v2175 = vld [vmem:[#allocation3 + $0x151] sm:$0xff]
        %v2176 = vld [vmem:[#allocation3 + $0x159] sm:$0xff]
        %v2177 = vld [vmem:[#allocation3 + $0x169] sm:$0xff]
        %v2178 = vld [vmem:[#allocation3 + $0x171] sm:$0xff]
        %v2179 = vld [vmem:[#allocation3 + $0x2] sm:$0xff]
        %v2180 = vld [vmem:[#allocation3 + $0xa] sm:$0xff]
        %v2181 = vld [vmem:[#allocation3 + $0x1a] sm:$0xff]
        %v2182 = vld [vmem:[#allocation3 + $0x22] sm:$0xff]
        %v2183 = vld [vmem:[#allocation3 + $0x32] sm:$0xff]
        %v2184 = vld [vmem:[#allocation3 + $0x3a] sm:$0xff]
        %v2185 = vld [vmem:[#allocation3 + $0x4a] sm:$0xff]
        %v2186 = vld [vmem:[#allocation3 + $0x52] sm:$0xff]
        %v2187 = vld [vmem:[#allocation3 + $0x62] sm:$0xff]
        %v2188 = vld [vmem:[#allocation3 + $0x6a] sm:$0xff]
        %v2189 = vld [vmem:[#allocation3 + $0x7a] sm:$0xff]
        %v2190 = vld [vmem:[#allocation3 + $0x82] sm:$0xff]
        %v2191 = vld [vmem:[#allocation3 + $0x92] sm:$0xff]
        %v2192 = vld [vmem:[#allocation3 + $0x9a] sm:$0xff]
        %v2193 = vld [vmem:[#allocation3 + $0xaa] sm:$0xff]
        %v2194 = vld [vmem:[#allocation3 + $0xb2] sm:$0xff]
        %v2195 = vld [vmem:[#allocation3 + $0xc2] sm:$0xff]
        %v2196 = vld [vmem:[#allocation3 + $0xca] sm:$0xff]
        %v2197 = vld [vmem:[#allocation3 + $0xda] sm:$0xff]
        %v2198 = vld [vmem:[#allocation3 + $0xe2] sm:$0xff]
        %v2199 = vld [vmem:[#allocation3 + $0xf2] sm:$0xff]
        %v2200 = vld [vmem:[#allocation3 + $0xfa] sm:$0xff]
        %v2201 = vld [vmem:[#allocation3 + $0x10a] sm:$0xff]
        %v2202 = vld [vmem:[#allocation3 + $0x112] sm:$0xff]
        %v2203 = vld [vmem:[#allocation3 + $0x122] sm:$0xff]
        %v2204 = vld [vmem:[#allocation3 + $0x12a] sm:$0xff]
        %v2205 = vld [vmem:[#allocation3 + $0x13a] sm:$0xff]
        %v2206 = vld [vmem:[#allocation3 + $0x142] sm:$0xff]
        %v2207 = vld [vmem:[#allocation3 + $0x152] sm:$0xff]
        %v2208 = vld [vmem:[#allocation3 + $0x15a] sm:$0xff]
        %v2209 = vld [vmem:[#allocation3 + $0x16a] sm:$0xff]
        %v2210 = vld [vmem:[#allocation3 + $0x172] sm:$0xff]
        %v2211 = vld [vmem:[%s1937] sm:$0xff]
        %v2212 = vld [vmem:[%s1937 + $0x8] sm:$0xff]
        %v2213 = vld [vmem:[%s1937 + $0x18] sm:$0xff]
        %v2214 = vld [vmem:[%s1937 + $0x20] sm:$0xff]
        %v2215 = vld [vmem:[%s1937 + $0x30] sm:$0xff]
        %v2216 = vld [vmem:[%s1937 + $0x38] sm:$0xff]
        %v2217 = vld [vmem:[%s1937 + $0x48] sm:$0xff]
        %v2218 = vld [vmem:[%s1937 + $0x50] sm:$0xff]
        %v2219 = vld [vmem:[%s1937 + $0x60] sm:$0xff]
        %v2220 = vld [vmem:[%s1937 + $0x68] sm:$0xff]
        %v2221 = vld [vmem:[%s1937 + $0x78] sm:$0xff]
        %v2222 = vld [vmem:[%s1937 + $0x80] sm:$0xff]
        %v2223 = vld [vmem:[%s1937 + $0x90] sm:$0xff]
        %v2224 = vld [vmem:[%s1937 + $0x98] sm:$0xff]
        %v2225 = vld [vmem:[%s1937 + $0xa8] sm:$0xff]
        %v2226 = vld [vmem:[%s1937 + $0xb0] sm:$0xff]
        %v2227 = vld [vmem:[%s1937 + $0xc0] sm:$0xff]
        %v2228 = vld [vmem:[%s1937 + $0xc8] sm:$0xff]
        %v2229 = vld [vmem:[%s1937 + $0xd8] sm:$0xff]
        %v2230 = vld [vmem:[%s1937 + $0xe0] sm:$0xff]
        %v2231 = vld [vmem:[%s1937 + $0xf0] sm:$0xff]
        %v2232 = vld [vmem:[%s1937 + $0xf8] sm:$0xff]
        %v2233 = vld [vmem:[%s1937 + $0x108] sm:$0xff]
        %v2234 = vld [vmem:[%s1937 + $0x110] sm:$0xff]
        %v2235 = vld [vmem:[%s1937 + $0x120] sm:$0xff]
        %v2236 = vld [vmem:[%s1937 + $0x128] sm:$0xff]
        %v2237 = vld [vmem:[%s1937 + $0x138] sm:$0xff]
        %v2238 = vld [vmem:[%s1937 + $0x140] sm:$0xff]
        %v2239 = vld [vmem:[%s1937 + $0x150] sm:$0xff]
        %v2240 = vld [vmem:[%s1937 + $0x158] sm:$0xff]
        %v2241 = vld [vmem:[%s1937 + $0x168] sm:$0xff]
        %v2242 = vld [vmem:[%s1937 + $0x170] sm:$0xff]
        %v2243 = vld [vmem:[%s1937 + $0x1] sm:$0xff]
        %v2244 = vld [vmem:[%s1937 + $0x9] sm:$0xff]
        %v2245 = vld [vmem:[%s1937 + $0x19] sm:$0xff]
        %v2246 = vld [vmem:[%s1937 + $0x21] sm:$0xff]
        %v2247 = vld [vmem:[%s1937 + $0x31] sm:$0xff]
        %v2248 = vld [vmem:[%s1937 + $0x39] sm:$0xff]
        %v2249 = vld [vmem:[%s1937 + $0x49] sm:$0xff]
        %v2250 = vld [vmem:[%s1937 + $0x51] sm:$0xff]
        %v2251 = vld [vmem:[%s1937 + $0x61] sm:$0xff]
        %v2252 = vld [vmem:[%s1937 + $0x69] sm:$0xff]
        %v2253 = vld [vmem:[%s1937 + $0x79] sm:$0xff]
        %v2254 = vld [vmem:[%s1937 + $0x81] sm:$0xff]
        %v2255 = vld [vmem:[%s1937 + $0x91] sm:$0xff]
        %v2256 = vld [vmem:[%s1937 + $0x99] sm:$0xff]
        %v2257 = vld [vmem:[%s1937 + $0xa9] sm:$0xff]
        %v2258 = vld [vmem:[%s1937 + $0xb1] sm:$0xff]
        %v2259 = vld [vmem:[%s1937 + $0xc1] sm:$0xff]
        %v2260 = vld [vmem:[%s1937 + $0xc9] sm:$0xff]
        %v2261 = vld [vmem:[%s1937 + $0xd9] sm:$0xff]
        %v2262 = vld [vmem:[%s1937 + $0xe1] sm:$0xff]
        %v2263 = vld [vmem:[%s1937 + $0xf1] sm:$0xff]
        %v2264 = vld [vmem:[%s1937 + $0xf9] sm:$0xff]
        %v2265 = vld [vmem:[%s1937 + $0x109] sm:$0xff]
        %v2266 = vld [vmem:[%s1937 + $0x111] sm:$0xff]
        %v2267 = vld [vmem:[%s1937 + $0x121] sm:$0xff]
        %v2268 = vld [vmem:[%s1937 + $0x129] sm:$0xff]
        %v2269 = vld [vmem:[%s1937 + $0x139] sm:$0xff]
        %v2270 = vld [vmem:[%s1937 + $0x141] sm:$0xff]
        %v2271 = vld [vmem:[%s1937 + $0x151] sm:$0xff]
        %v2272 = vld [vmem:[%s1937 + $0x159] sm:$0xff]
        %v2273 = vld [vmem:[%s1937 + $0x169] sm:$0xff]
        %v2274 = vld [vmem:[%s1937 + $0x171] sm:$0xff]
        %v2275 = vld [vmem:[%s1937 + $0x2] sm:$0xff]
        %v2276 = vld [vmem:[%s1937 + $0xa] sm:$0xff]
        %v2277 = vld [vmem:[%s1937 + $0x1a] sm:$0xff]
        %v2278 = vld [vmem:[%s1937 + $0x22] sm:$0xff]
        %v2279 = vld [vmem:[%s1937 + $0x32] sm:$0xff]
        %v2280 = vld [vmem:[%s1937 + $0x3a] sm:$0xff]
        %v2281 = vld [vmem:[%s1937 + $0x4a] sm:$0xff]
        %v2282 = vld [vmem:[%s1937 + $0x52] sm:$0xff]
        %v2283 = vld [vmem:[%s1937 + $0x62] sm:$0xff]
        %v2284 = vld [vmem:[%s1937 + $0x6a] sm:$0xff]
        %v2285 = vld [vmem:[%s1937 + $0x7a] sm:$0xff]
        %v2286 = vld [vmem:[%s1937 + $0x82] sm:$0xff]
        %v2287 = vld [vmem:[%s1937 + $0x92] sm:$0xff]
        %v2288 = vld [vmem:[%s1937 + $0x9a] sm:$0xff]
        %v2289 = vld [vmem:[%s1937 + $0xaa] sm:$0xff]
        %v2290 = vld [vmem:[%s1937 + $0xb2] sm:$0xff]
        %v2291 = vld [vmem:[%s1937 + $0xc2] sm:$0xff]
        %v2292 = vld [vmem:[%s1937 + $0xca] sm:$0xff]
        %v2293 = vld [vmem:[%s1937 + $0xda] sm:$0xff]
        %v2294 = vld [vmem:[%s1937 + $0xe2] sm:$0xff]
        %v2295 = vld [vmem:[%s1937 + $0xf2] sm:$0xff]
        %v2296 = vld [vmem:[%s1937 + $0xfa] sm:$0xff]
        %v2297 = vld [vmem:[%s1937 + $0x10a] sm:$0xff]
        %v2298 = vld [vmem:[%s1937 + $0x112] sm:$0xff]
        %v2299 = vld [vmem:[%s1937 + $0x122] sm:$0xff]
        %v2300 = vld [vmem:[%s1937 + $0x12a] sm:$0xff]
        %v2301 = vld [vmem:[%s1937 + $0x13a] sm:$0xff]
        %v2302 = vld [vmem:[%s1937 + $0x142] sm:$0xff]
        %v2303 = vld [vmem:[%s1937 + $0x152] sm:$0xff]
        %v2304 = vld [vmem:[%s1937 + $0x15a] sm:$0xff]
        %v2305 = vld [vmem:[%s1937 + $0x16a] sm:$0xff]
        %v2306 = vld [vmem:[%s1937 + $0x172] sm:$0xff]
        %s2307 = scalar_lea.vmem [#allocation3], 48
        %v2308 = vld [vmem:[%s2307] sm:$0xff]
        %v2309 = vld [vmem:[%s2307 + $0x8] sm:$0xff]
        %v2310 = vld [vmem:[%s2307 + $0x18] sm:$0xff]
        %v2311 = vld [vmem:[%s2307 + $0x20] sm:$0xff]
        %v2312 = vld [vmem:[%s2307 + $0x30] sm:$0xff]
        %v2313 = vld [vmem:[%s2307 + $0x38] sm:$0xff]
        %v2314 = vld [vmem:[%s2307 + $0x48] sm:$0xff]
        %v2315 = vld [vmem:[%s2307 + $0x50] sm:$0xff]
        %v2316 = vld [vmem:[%s2307 + $0x60] sm:$0xff]
        %v2317 = vld [vmem:[%s2307 + $0x68] sm:$0xff]
        %v2318 = vld [vmem:[%s2307 + $0x78] sm:$0xff]
        %v2319 = vld [vmem:[%s2307 + $0x80] sm:$0xff]
        %v2320 = vld [vmem:[%s2307 + $0x90] sm:$0xff]
        %v2321 = vld [vmem:[%s2307 + $0x98] sm:$0xff]
        %v2322 = vld [vmem:[%s2307 + $0xa8] sm:$0xff]
        %v2323 = vld [vmem:[%s2307 + $0xb0] sm:$0xff]
        %v2324 = vld [vmem:[%s2307 + $0xc0] sm:$0xff]
        %v2325 = vld [vmem:[%s2307 + $0xc8] sm:$0xff]
        %v2326 = vld [vmem:[%s2307 + $0xd8] sm:$0xff]
        %v2327 = vld [vmem:[%s2307 + $0xe0] sm:$0xff]
        %v2328 = vld [vmem:[%s2307 + $0xf0] sm:$0xff]
        %v2329 = vld [vmem:[%s2307 + $0xf8] sm:$0xff]
        %v2330 = vld [vmem:[%s2307 + $0x108] sm:$0xff]
        %v2331 = vld [vmem:[%s2307 + $0x110] sm:$0xff]
        %v2332 = vld [vmem:[%s2307 + $0x120] sm:$0xff]
        %v2333 = vld [vmem:[%s2307 + $0x128] sm:$0xff]
        %v2334 = vld [vmem:[%s2307 + $0x138] sm:$0xff]
        %v2335 = vld [vmem:[%s2307 + $0x140] sm:$0xff]
        %v2336 = vld [vmem:[%s2307 + $0x150] sm:$0xff]
        %v2337 = vld [vmem:[%s2307 + $0x158] sm:$0xff]
        %v2338 = vld [vmem:[%s2307 + $0x168] sm:$0xff]
        %v2339 = vld [vmem:[%s2307 + $0x170] sm:$0xff]
        %v2340 = vld [vmem:[%s2307 + $0x1] sm:$0xff]
        %v2341 = vld [vmem:[%s2307 + $0x9] sm:$0xff]
        %v2342 = vld [vmem:[%s2307 + $0x19] sm:$0xff]
        %v2343 = vld [vmem:[%s2307 + $0x21] sm:$0xff]
        %v2344 = vld [vmem:[%s2307 + $0x31] sm:$0xff]
        %v2345 = vld [vmem:[%s2307 + $0x39] sm:$0xff]
        %v2346 = vld [vmem:[%s2307 + $0x49] sm:$0xff]
        %v2347 = vld [vmem:[%s2307 + $0x51] sm:$0xff]
        %v2348 = vld [vmem:[%s2307 + $0x61] sm:$0xff]
        %v2349 = vld [vmem:[%s2307 + $0x69] sm:$0xff]
        %v2350 = vld [vmem:[%s2307 + $0x79] sm:$0xff]
        %v2351 = vld [vmem:[%s2307 + $0x81] sm:$0xff]
        %v2352 = vld [vmem:[%s2307 + $0x91] sm:$0xff]
        %v2353 = vld [vmem:[%s2307 + $0x99] sm:$0xff]
        %v2354 = vld [vmem:[%s2307 + $0xa9] sm:$0xff]
        %v2355 = vld [vmem:[%s2307 + $0xb1] sm:$0xff]
        %v2356 = vld [vmem:[%s2307 + $0xc1] sm:$0xff]
        %v2357 = vld [vmem:[%s2307 + $0xc9] sm:$0xff]
        %v2358 = vld [vmem:[%s2307 + $0xd9] sm:$0xff]
        %v2359 = vld [vmem:[%s2307 + $0xe1] sm:$0xff]
        %v2360 = vld [vmem:[%s2307 + $0xf1] sm:$0xff]
        %v2361 = vld [vmem:[%s2307 + $0xf9] sm:$0xff]
        %v2362 = vld [vmem:[%s2307 + $0x109] sm:$0xff]
        %v2363 = vld [vmem:[%s2307 + $0x111] sm:$0xff]
        %v2364 = vld [vmem:[%s2307 + $0x121] sm:$0xff]
        %v2365 = vld [vmem:[%s2307 + $0x129] sm:$0xff]
        %v2366 = vld [vmem:[%s2307 + $0x139] sm:$0xff]
        %v2367 = vld [vmem:[%s2307 + $0x141] sm:$0xff]
        %v2368 = vld [vmem:[%s2307 + $0x151] sm:$0xff]
        %v2369 = vld [vmem:[%s2307 + $0x159] sm:$0xff]
        %v2370 = vld [vmem:[%s2307 + $0x169] sm:$0xff]
        %v2371 = vld [vmem:[%s2307 + $0x171] sm:$0xff]
        %v2372 = vld [vmem:[%s2307 + $0x2] sm:$0xff]
        %v2373 = vld [vmem:[%s2307 + $0xa] sm:$0xff]
        %v2374 = vld [vmem:[%s2307 + $0x1a] sm:$0xff]
        %v2375 = vld [vmem:[%s2307 + $0x22] sm:$0xff]
        %v2376 = vld [vmem:[%s2307 + $0x32] sm:$0xff]
        %v2377 = vld [vmem:[%s2307 + $0x3a] sm:$0xff]
        %v2378 = vld [vmem:[%s2307 + $0x4a] sm:$0xff]
        %v2379 = vld [vmem:[%s2307 + $0x52] sm:$0xff]
        %v2380 = vld [vmem:[%s2307 + $0x62] sm:$0xff]
        %v2381 = vld [vmem:[%s2307 + $0x6a] sm:$0xff]
        %v2382 = vld [vmem:[%s2307 + $0x7a] sm:$0xff]
        %v2383 = vld [vmem:[%s2307 + $0x82] sm:$0xff]
        %v2384 = vld [vmem:[%s2307 + $0x92] sm:$0xff]
        %v2385 = vld [vmem:[%s2307 + $0x9a] sm:$0xff]
        %v2386 = vld [vmem:[%s2307 + $0xaa] sm:$0xff]
        %v2387 = vld [vmem:[%s2307 + $0xb2] sm:$0xff]
        %v2388 = vld [vmem:[%s2307 + $0xc2] sm:$0xff]
        %v2389 = vld [vmem:[%s2307 + $0xca] sm:$0xff]
        %v2390 = vld [vmem:[%s2307 + $0xda] sm:$0xff]
        %v2391 = vld [vmem:[%s2307 + $0xe2] sm:$0xff]
        %v2392 = vld [vmem:[%s2307 + $0xf2] sm:$0xff]
        %v2393 = vld [vmem:[%s2307 + $0xfa] sm:$0xff]
        %v2394 = vld [vmem:[%s2307 + $0x10a] sm:$0xff]
        %v2395 = vld [vmem:[%s2307 + $0x112] sm:$0xff]
        %v2396 = vld [vmem:[%s2307 + $0x122] sm:$0xff]
        %v2397 = vld [vmem:[%s2307 + $0x12a] sm:$0xff]
        %v2398 = vld [vmem:[%s2307 + $0x13a] sm:$0xff]
        %v2399 = vld [vmem:[%s2307 + $0x142] sm:$0xff]
        %v2400 = vld [vmem:[%s2307 + $0x152] sm:$0xff]
        %v2401 = vld [vmem:[%s2307 + $0x15a] sm:$0xff]
        %v2402 = vld [vmem:[%s2307 + $0x16a] sm:$0xff]
        %v2403 = vld [vmem:[%s2307 + $0x172] sm:$0xff]
        %v2405 = vperm.slane %v2114, 0
        %2407 = vmatpush.msra.mxu0 %v1985
        %2408 = vmatpush.msra.mxu0 %v1984
        %2409 = vmatpush.msra.mxu0 %v1983
        %2410 = vmatpush.msra.mxu0 %v1982
        %2411 = vmatpush.msra.mxu0 %v1981
        %2412 = vmatpush.msra.mxu0 %v1980
        %2413 = vmatpush.msra.mxu0 %v1979
        %2414 = vmatpush.msra.mxu0 %v1978
        %2415 = vmatpush.msra.mxu0 %v1977
        %2416 = vmatpush.msra.mxu0 %v1976
        %2417 = vmatpush.msra.mxu0 %v1975
        %2418 = vmatpush.msra.mxu0 %v1974
        %2419 = vmatpush.msra.mxu0 %v1973
        %2420 = vmatpush.msra.mxu0 %v1972
        %2421 = vmatpush.msra.mxu0 %v1971
        %2422 = vmatpush.msra.mxu0 %v1970
        %2423 = vmatmul.f32.gmra.mxu0 %v2115
        %v2424 = vpop.f32.mrf.mxu0
        %v2425 = vadd.f32 %v2405, %v2424
        %2426 = vmatmul.f32.gmra.mxu0 %v2116
        %v2427 = vpop.f32.mrf.mxu0
        %v2428 = vadd.f32 %v2405, %v2427
        %2429 = vmatmul.f32.gmra.mxu0 %v2117
        %v2430 = vpop.f32.mrf.mxu0
        %v2431 = vadd.f32 %v2405, %v2430
        %2432 = vmatmul.f32.gmra.mxu0 %v2118
        %v2433 = vpop.f32.mrf.mxu0
        %v2434 = vadd.f32 %v2405, %v2433
        %2435 = vmatmul.f32.gmra.mxu0 %v2119
        %v2436 = vpop.f32.mrf.mxu0
        %v2437 = vadd.f32 %v2405, %v2436
        %2438 = vmatmul.f32.gmra.mxu0 %v2120
        %v2439 = vpop.f32.mrf.mxu0
        %v2440 = vadd.f32 %v2405, %v2439
        %2441 = vmatmul.f32.gmra.mxu0 %v2121
        %v2442 = vpop.f32.mrf.mxu0
        %v2443 = vadd.f32 %v2405, %v2442
        %2444 = vmatmul.f32.gmra.mxu0 %v2122
        %v2445 = vpop.f32.mrf.mxu0
        %v2446 = vadd.f32 %v2405, %v2445
        %2447 = vmatmul.f32.gmra.mxu0 %v2123
        %v2448 = vpop.f32.mrf.mxu0
        %v2449 = vadd.f32 %v2405, %v2448
        %2450 = vmatmul.f32.gmra.mxu0 %v2124
        %v2451 = vpop.f32.mrf.mxu0
        %v2452 = vadd.f32 %v2405, %v2451
        %2453 = vmatmul.f32.gmra.mxu0 %v2125
        %v2454 = vpop.f32.mrf.mxu0
        %v2455 = vadd.f32 %v2405, %v2454
        %2456 = vmatmul.f32.gmra.mxu0 %v2126
        %v2457 = vpop.f32.mrf.mxu0
        %v2458 = vadd.f32 %v2405, %v2457
        %2459 = vmatmul.f32.gmra.mxu0 %v2127
        %v2460 = vpop.f32.mrf.mxu0
        %v2461 = vadd.f32 %v2405, %v2460
        %2462 = vmatmul.f32.gmra.mxu0 %v2128
        %v2463 = vpop.f32.mrf.mxu0
        %v2464 = vadd.f32 %v2405, %v2463
        %2465 = vmatmul.f32.gmra.mxu0 %v2129
        %v2466 = vpop.f32.mrf.mxu0
        %v2467 = vadd.f32 %v2405, %v2466
        %2468 = vmatmul.f32.gmra.mxu0 %v2130
        %v2469 = vpop.f32.mrf.mxu0
        %v2470 = vadd.f32 %v2405, %v2469
        %2471 = vmatmul.f32.gmra.mxu0 %v2131
        %v2472 = vpop.f32.mrf.mxu0
        %v2473 = vadd.f32 %v2405, %v2472
        %2474 = vmatmul.f32.gmra.mxu0 %v2132
        %v2475 = vpop.f32.mrf.mxu0
        %v2476 = vadd.f32 %v2405, %v2475
        %2477 = vmatmul.f32.gmra.mxu0 %v2133
        %v2478 = vpop.f32.mrf.mxu0
        %v2479 = vadd.f32 %v2405, %v2478
        %2480 = vmatmul.f32.gmra.mxu0 %v2134
        %v2481 = vpop.f32.mrf.mxu0
        %v2482 = vadd.f32 %v2405, %v2481
        %2483 = vmatmul.f32.gmra.mxu0 %v2135
        %v2484 = vpop.f32.mrf.mxu0
        %v2485 = vadd.f32 %v2405, %v2484
        %2486 = vmatmul.f32.gmra.mxu0 %v2136
        %v2487 = vpop.f32.mrf.mxu0
        %v2488 = vadd.f32 %v2405, %v2487
        %2489 = vmatmul.f32.gmra.mxu0 %v2137
        %v2490 = vpop.f32.mrf.mxu0
        %v2491 = vadd.f32 %v2405, %v2490
        %2492 = vmatmul.f32.gmra.mxu0 %v2138
        %v2493 = vpop.f32.mrf.mxu0
        %v2494 = vadd.f32 %v2405, %v2493
        %2495 = vmatmul.f32.gmra.mxu0 %v2139
        %v2496 = vpop.f32.mrf.mxu0
        %v2497 = vadd.f32 %v2405, %v2496
        %2498 = vmatmul.f32.gmra.mxu0 %v2140
        %v2499 = vpop.f32.mrf.mxu0
        %v2500 = vadd.f32 %v2405, %v2499
        %2501 = vmatmul.f32.gmra.mxu0 %v2141
        %v2502 = vpop.f32.mrf.mxu0
        %v2503 = vadd.f32 %v2405, %v2502
        %2504 = vmatmul.f32.gmra.mxu0 %v2142
        %v2505 = vpop.f32.mrf.mxu0
        %v2506 = vadd.f32 %v2405, %v2505
        %2507 = vmatmul.f32.gmra.mxu0 %v2143
        %v2508 = vpop.f32.mrf.mxu0
        %v2509 = vadd.f32 %v2405, %v2508
        %2510 = vmatmul.f32.gmra.mxu0 %v2144
        %v2511 = vpop.f32.mrf.mxu0
        %v2512 = vadd.f32 %v2405, %v2511
        %2513 = vmatmul.f32.gmra.mxu0 %v2145
        %v2514 = vpop.f32.mrf.mxu0
        %v2515 = vadd.f32 %v2405, %v2514
        %2516 = vmatmul.f32.gmra.mxu0 %v2146
        %v2517 = vpop.f32.mrf.mxu0
        %v2518 = vadd.f32 %v2405, %v2517
        %2519 = vdwg.mxu0
        %2520 = vmatpush.msra.mxu0 %v2001
        %2521 = vmatpush.msra.mxu0 %v2000
        %2522 = vmatpush.msra.mxu0 %v1999
        %2523 = vmatpush.msra.mxu0 %v1998
        %2524 = vmatpush.msra.mxu0 %v1997
        %2525 = vmatpush.msra.mxu0 %v1996
        %2526 = vmatpush.msra.mxu0 %v1995
        %2527 = vmatpush.msra.mxu0 %v1994
        %2528 = vmatpush.msra.mxu0 %v1993
        %2529 = vmatpush.msra.mxu0 %v1992
        %2530 = vmatpush.msra.mxu0 %v1991
        %2531 = vmatpush.msra.mxu0 %v1990
        %2532 = vmatpush.msra.mxu0 %v1989
        %2533 = vmatpush.msra.mxu0 %v1988
        %2534 = vmatpush.msra.mxu0 %v1987
        %2535 = vmatpush.msra.mxu0 %v1986
        %2536 = vmatmul.f32.gmra.mxu0 %v2147
        %v2537 = vpop.f32.mrf.mxu0
        %v2538 = vadd.f32 %v2425, %v2537
        %2539 = vmatmul.f32.gmra.mxu0 %v2148
        %v2540 = vpop.f32.mrf.mxu0
        %v2541 = vadd.f32 %v2428, %v2540
        %2542 = vmatmul.f32.gmra.mxu0 %v2149
        %v2543 = vpop.f32.mrf.mxu0
        %v2544 = vadd.f32 %v2431, %v2543
        %2545 = vmatmul.f32.gmra.mxu0 %v2150
        %v2546 = vpop.f32.mrf.mxu0
        %v2547 = vadd.f32 %v2434, %v2546
        %2548 = vmatmul.f32.gmra.mxu0 %v2151
        %v2549 = vpop.f32.mrf.mxu0
        %v2550 = vadd.f32 %v2437, %v2549
        %2551 = vmatmul.f32.gmra.mxu0 %v2152
        %v2552 = vpop.f32.mrf.mxu0
        %v2553 = vadd.f32 %v2440, %v2552
        %2554 = vmatmul.f32.gmra.mxu0 %v2153
        %v2555 = vpop.f32.mrf.mxu0
        %v2556 = vadd.f32 %v2443, %v2555
        %2557 = vmatmul.f32.gmra.mxu0 %v2154
        %v2558 = vpop.f32.mrf.mxu0
        %v2559 = vadd.f32 %v2446, %v2558
        %2560 = vmatmul.f32.gmra.mxu0 %v2155
        %v2561 = vpop.f32.mrf.mxu0
        %v2562 = vadd.f32 %v2449, %v2561
        %2563 = vmatmul.f32.gmra.mxu0 %v2156
        %v2564 = vpop.f32.mrf.mxu0
        %v2565 = vadd.f32 %v2452, %v2564
        %2566 = vmatmul.f32.gmra.mxu0 %v2157
        %v2567 = vpop.f32.mrf.mxu0
        %v2568 = vadd.f32 %v2455, %v2567
        %2569 = vmatmul.f32.gmra.mxu0 %v2158
        %v2570 = vpop.f32.mrf.mxu0
        %v2571 = vadd.f32 %v2458, %v2570
        %2572 = vmatmul.f32.gmra.mxu0 %v2159
        %v2573 = vpop.f32.mrf.mxu0
        %v2574 = vadd.f32 %v2461, %v2573
        %2575 = vmatmul.f32.gmra.mxu0 %v2160
        %v2576 = vpop.f32.mrf.mxu0
        %v2577 = vadd.f32 %v2464, %v2576
        %2578 = vmatmul.f32.gmra.mxu0 %v2161
        %v2579 = vpop.f32.mrf.mxu0
        %v2580 = vadd.f32 %v2467, %v2579
        %2581 = vmatmul.f32.gmra.mxu0 %v2162
        %v2582 = vpop.f32.mrf.mxu0
        %v2583 = vadd.f32 %v2470, %v2582
        %2584 = vmatmul.f32.gmra.mxu0 %v2163
        %v2585 = vpop.f32.mrf.mxu0
        %v2586 = vadd.f32 %v2473, %v2585
        %2587 = vmatmul.f32.gmra.mxu0 %v2164
        %v2588 = vpop.f32.mrf.mxu0
        %v2589 = vadd.f32 %v2476, %v2588
        %2590 = vmatmul.f32.gmra.mxu0 %v2165
        %v2591 = vpop.f32.mrf.mxu0
        %v2592 = vadd.f32 %v2479, %v2591
        %2593 = vmatmul.f32.gmra.mxu0 %v2166
        %v2594 = vpop.f32.mrf.mxu0
        %v2595 = vadd.f32 %v2482, %v2594
        %2596 = vmatmul.f32.gmra.mxu0 %v2167
        %v2597 = vpop.f32.mrf.mxu0
        %v2598 = vadd.f32 %v2485, %v2597
        %2599 = vmatmul.f32.gmra.mxu0 %v2168
        %v2600 = vpop.f32.mrf.mxu0
        %v2601 = vadd.f32 %v2488, %v2600
        %2602 = vmatmul.f32.gmra.mxu0 %v2169
        %v2603 = vpop.f32.mrf.mxu0
        %v2604 = vadd.f32 %v2491, %v2603
        %2605 = vmatmul.f32.gmra.mxu0 %v2170
        %v2606 = vpop.f32.mrf.mxu0
        %v2607 = vadd.f32 %v2494, %v2606
        %2608 = vmatmul.f32.gmra.mxu0 %v2171
        %v2609 = vpop.f32.mrf.mxu0
        %v2610 = vadd.f32 %v2497, %v2609
        %2611 = vmatmul.f32.gmra.mxu0 %v2172
        %v2612 = vpop.f32.mrf.mxu0
        %v2613 = vadd.f32 %v2500, %v2612
        %2614 = vmatmul.f32.gmra.mxu0 %v2173
        %v2615 = vpop.f32.mrf.mxu0
        %v2616 = vadd.f32 %v2503, %v2615
        %2617 = vmatmul.f32.gmra.mxu0 %v2174
        %v2618 = vpop.f32.mrf.mxu0
        %v2619 = vadd.f32 %v2506, %v2618
        %2620 = vmatmul.f32.gmra.mxu0 %v2175
        %v2621 = vpop.f32.mrf.mxu0
        %v2622 = vadd.f32 %v2509, %v2621
        %2623 = vmatmul.f32.gmra.mxu0 %v2176
        %v2624 = vpop.f32.mrf.mxu0
        %v2625 = vadd.f32 %v2512, %v2624
        %2626 = vmatmul.f32.gmra.mxu0 %v2177
        %v2627 = vpop.f32.mrf.mxu0
        %v2628 = vadd.f32 %v2515, %v2627
        %2629 = vmatmul.f32.gmra.mxu0 %v2178
        %v2630 = vpop.f32.mrf.mxu0
        %v2631 = vadd.f32 %v2518, %v2630
        %2632 = vdwg.mxu0
        %2633 = vmatpush.msra.mxu0 %v2017
        %2634 = vmatpush.msra.mxu0 %v2016
        %2635 = vmatpush.msra.mxu0 %v2015
        %2636 = vmatpush.msra.mxu0 %v2014
        %2637 = vmatpush.msra.mxu0 %v2013
        %2638 = vmatpush.msra.mxu0 %v2012
        %2639 = vmatpush.msra.mxu0 %v2011
        %2640 = vmatpush.msra.mxu0 %v2010
        %2641 = vmatpush.msra.mxu0 %v2009
        %2642 = vmatpush.msra.mxu0 %v2008
        %2643 = vmatpush.msra.mxu0 %v2007
        %2644 = vmatpush.msra.mxu0 %v2006
        %2645 = vmatpush.msra.mxu0 %v2005
        %2646 = vmatpush.msra.mxu0 %v2004
        %2647 = vmatpush.msra.mxu0 %v2003
        %2648 = vmatpush.msra.mxu0 %v2002
        %2649 = vmatmul.f32.gmra.mxu0 %v2179
        %v2650 = vpop.f32.mrf.mxu0
        %v2651 = vadd.f32 %v2538, %v2650
        %2652 = vmatmul.f32.gmra.mxu0 %v2180
        %v2653 = vpop.f32.mrf.mxu0
        %v2654 = vadd.f32 %v2541, %v2653
        %2655 = vmatmul.f32.gmra.mxu0 %v2181
        %v2656 = vpop.f32.mrf.mxu0
        %v2657 = vadd.f32 %v2544, %v2656
        %2658 = vmatmul.f32.gmra.mxu0 %v2182
        %v2659 = vpop.f32.mrf.mxu0
        %v2660 = vadd.f32 %v2547, %v2659
        %2661 = vmatmul.f32.gmra.mxu0 %v2183
        %v2662 = vpop.f32.mrf.mxu0
        %v2663 = vadd.f32 %v2550, %v2662
        %2664 = vmatmul.f32.gmra.mxu0 %v2184
        %v2665 = vpop.f32.mrf.mxu0
        %v2666 = vadd.f32 %v2553, %v2665
        %2667 = vmatmul.f32.gmra.mxu0 %v2185
        %v2668 = vpop.f32.mrf.mxu0
        %v2669 = vadd.f32 %v2556, %v2668
        %2670 = vmatmul.f32.gmra.mxu0 %v2186
        %v2671 = vpop.f32.mrf.mxu0
        %v2672 = vadd.f32 %v2559, %v2671
        %2673 = vmatmul.f32.gmra.mxu0 %v2187
        %v2674 = vpop.f32.mrf.mxu0
        %v2675 = vadd.f32 %v2562, %v2674
        %2676 = vmatmul.f32.gmra.mxu0 %v2188
        %v2677 = vpop.f32.mrf.mxu0
        %v2678 = vadd.f32 %v2565, %v2677
        %2679 = vmatmul.f32.gmra.mxu0 %v2189
        %v2680 = vpop.f32.mrf.mxu0
        %v2681 = vadd.f32 %v2568, %v2680
        %2682 = vmatmul.f32.gmra.mxu0 %v2190
        %v2683 = vpop.f32.mrf.mxu0
        %v2684 = vadd.f32 %v2571, %v2683
        %2685 = vmatmul.f32.gmra.mxu0 %v2191
        %v2686 = vpop.f32.mrf.mxu0
        %v2687 = vadd.f32 %v2574, %v2686
        %2688 = vmatmul.f32.gmra.mxu0 %v2192
        %v2689 = vpop.f32.mrf.mxu0
        %v2690 = vadd.f32 %v2577, %v2689
        %2691 = vmatmul.f32.gmra.mxu0 %v2193
        %v2692 = vpop.f32.mrf.mxu0
        %v2693 = vadd.f32 %v2580, %v2692
        %2694 = vmatmul.f32.gmra.mxu0 %v2194
        %v2695 = vpop.f32.mrf.mxu0
        %v2696 = vadd.f32 %v2583, %v2695
        %2697 = vmatmul.f32.gmra.mxu0 %v2195
        %v2698 = vpop.f32.mrf.mxu0
        %v2699 = vadd.f32 %v2586, %v2698
        %2700 = vmatmul.f32.gmra.mxu0 %v2196
        %v2701 = vpop.f32.mrf.mxu0
        %v2702 = vadd.f32 %v2589, %v2701
        %2703 = vmatmul.f32.gmra.mxu0 %v2197
        %v2704 = vpop.f32.mrf.mxu0
        %v2705 = vadd.f32 %v2592, %v2704
        %2706 = vmatmul.f32.gmra.mxu0 %v2198
        %v2707 = vpop.f32.mrf.mxu0
        %v2708 = vadd.f32 %v2595, %v2707
        %2709 = vmatmul.f32.gmra.mxu0 %v2199
        %v2710 = vpop.f32.mrf.mxu0
        %v2711 = vadd.f32 %v2598, %v2710
        %2712 = vmatmul.f32.gmra.mxu0 %v2200
        %v2713 = vpop.f32.mrf.mxu0
        %v2714 = vadd.f32 %v2601, %v2713
        %2715 = vmatmul.f32.gmra.mxu0 %v2201
        %v2716 = vpop.f32.mrf.mxu0
        %v2717 = vadd.f32 %v2604, %v2716
        %2718 = vmatmul.f32.gmra.mxu0 %v2202
        %v2719 = vpop.f32.mrf.mxu0
        %v2720 = vadd.f32 %v2607, %v2719
        %2721 = vmatmul.f32.gmra.mxu0 %v2203
        %v2722 = vpop.f32.mrf.mxu0
        %v2723 = vadd.f32 %v2610, %v2722
        %2724 = vmatmul.f32.gmra.mxu0 %v2204
        %v2725 = vpop.f32.mrf.mxu0
        %v2726 = vadd.f32 %v2613, %v2725
        %2727 = vmatmul.f32.gmra.mxu0 %v2205
        %v2728 = vpop.f32.mrf.mxu0
        %v2729 = vadd.f32 %v2616, %v2728
        %2730 = vmatmul.f32.gmra.mxu0 %v2206
        %v2731 = vpop.f32.mrf.mxu0
        %v2732 = vadd.f32 %v2619, %v2731
        %2733 = vmatmul.f32.gmra.mxu0 %v2207
        %v2734 = vpop.f32.mrf.mxu0
        %v2735 = vadd.f32 %v2622, %v2734
        %2736 = vmatmul.f32.gmra.mxu0 %v2208
        %v2737 = vpop.f32.mrf.mxu0
        %v2738 = vadd.f32 %v2625, %v2737
        %2739 = vmatmul.f32.gmra.mxu0 %v2209
        %v2740 = vpop.f32.mrf.mxu0
        %v2741 = vadd.f32 %v2628, %v2740
        %2742 = vmatmul.f32.gmra.mxu0 %v2210
        %v2743 = vpop.f32.mrf.mxu0
        %v2744 = vadd.f32 %v2631, %v2743
        %2745 = vdwg.mxu0
        %2746 = vmatpush.msra.mxu0 %v2033
        %2747 = vmatpush.msra.mxu0 %v2032
        %2748 = vmatpush.msra.mxu0 %v2031
        %2749 = vmatpush.msra.mxu0 %v2030
        %2750 = vmatpush.msra.mxu0 %v2029
        %2751 = vmatpush.msra.mxu0 %v2028
        %2752 = vmatpush.msra.mxu0 %v2027
        %2753 = vmatpush.msra.mxu0 %v2026
        %2754 = vmatpush.msra.mxu0 %v2025
        %2755 = vmatpush.msra.mxu0 %v2024
        %2756 = vmatpush.msra.mxu0 %v2023
        %2757 = vmatpush.msra.mxu0 %v2022
        %2758 = vmatpush.msra.mxu0 %v2021
        %2759 = vmatpush.msra.mxu0 %v2020
        %2760 = vmatpush.msra.mxu0 %v2019
        %2761 = vmatpush.msra.mxu0 %v2018
        %2762 = vmatmul.f32.gmra.mxu0 %v2211
        %v2763 = vpop.f32.mrf.mxu0
        %v2764 = vadd.f32 %v2651, %v2763
        %2765 = vmatmul.f32.gmra.mxu0 %v2212
        %v2766 = vpop.f32.mrf.mxu0
        %v2767 = vadd.f32 %v2654, %v2766
        %2768 = vmatmul.f32.gmra.mxu0 %v2213
        %v2769 = vpop.f32.mrf.mxu0
        %v2770 = vadd.f32 %v2657, %v2769
        %2771 = vmatmul.f32.gmra.mxu0 %v2214
        %v2772 = vpop.f32.mrf.mxu0
        %v2773 = vadd.f32 %v2660, %v2772
        %2774 = vmatmul.f32.gmra.mxu0 %v2215
        %v2775 = vpop.f32.mrf.mxu0
        %v2776 = vadd.f32 %v2663, %v2775
        %2777 = vmatmul.f32.gmra.mxu0 %v2216
        %v2778 = vpop.f32.mrf.mxu0
        %v2779 = vadd.f32 %v2666, %v2778
        %2780 = vmatmul.f32.gmra.mxu0 %v2217
        %v2781 = vpop.f32.mrf.mxu0
        %v2782 = vadd.f32 %v2669, %v2781
        %2783 = vmatmul.f32.gmra.mxu0 %v2218
        %v2784 = vpop.f32.mrf.mxu0
        %v2785 = vadd.f32 %v2672, %v2784
        %2786 = vmatmul.f32.gmra.mxu0 %v2219
        %v2787 = vpop.f32.mrf.mxu0
        %v2788 = vadd.f32 %v2675, %v2787
        %2789 = vmatmul.f32.gmra.mxu0 %v2220
        %v2790 = vpop.f32.mrf.mxu0
        %v2791 = vadd.f32 %v2678, %v2790
        %2792 = vmatmul.f32.gmra.mxu0 %v2221
        %v2793 = vpop.f32.mrf.mxu0
        %v2794 = vadd.f32 %v2681, %v2793
        %2795 = vmatmul.f32.gmra.mxu0 %v2222
        %v2796 = vpop.f32.mrf.mxu0
        %v2797 = vadd.f32 %v2684, %v2796
        %2798 = vmatmul.f32.gmra.mxu0 %v2223
        %v2799 = vpop.f32.mrf.mxu0
        %v2800 = vadd.f32 %v2687, %v2799
        %2801 = vmatmul.f32.gmra.mxu0 %v2224
        %v2802 = vpop.f32.mrf.mxu0
        %v2803 = vadd.f32 %v2690, %v2802
        %2804 = vmatmul.f32.gmra.mxu0 %v2225
        %v2805 = vpop.f32.mrf.mxu0
        %v2806 = vadd.f32 %v2693, %v2805
        %2807 = vmatmul.f32.gmra.mxu0 %v2226
        %v2808 = vpop.f32.mrf.mxu0
        %v2809 = vadd.f32 %v2696, %v2808
        %2810 = vmatmul.f32.gmra.mxu0 %v2227
        %v2811 = vpop.f32.mrf.mxu0
        %v2812 = vadd.f32 %v2699, %v2811
        %2813 = vmatmul.f32.gmra.mxu0 %v2228
        %v2814 = vpop.f32.mrf.mxu0
        %v2815 = vadd.f32 %v2702, %v2814
        %2816 = vmatmul.f32.gmra.mxu0 %v2229
        %v2817 = vpop.f32.mrf.mxu0
        %v2818 = vadd.f32 %v2705, %v2817
        %2819 = vmatmul.f32.gmra.mxu0 %v2230
        %v2820 = vpop.f32.mrf.mxu0
        %v2821 = vadd.f32 %v2708, %v2820
        %2822 = vmatmul.f32.gmra.mxu0 %v2231
        %v2823 = vpop.f32.mrf.mxu0
        %v2824 = vadd.f32 %v2711, %v2823
        %2825 = vmatmul.f32.gmra.mxu0 %v2232
        %v2826 = vpop.f32.mrf.mxu0
        %v2827 = vadd.f32 %v2714, %v2826
        %2828 = vmatmul.f32.gmra.mxu0 %v2233
        %v2829 = vpop.f32.mrf.mxu0
        %v2830 = vadd.f32 %v2717, %v2829
        %2831 = vmatmul.f32.gmra.mxu0 %v2234
        %v2832 = vpop.f32.mrf.mxu0
        %v2833 = vadd.f32 %v2720, %v2832
        %2834 = vmatmul.f32.gmra.mxu0 %v2235
        %v2835 = vpop.f32.mrf.mxu0
        %v2836 = vadd.f32 %v2723, %v2835
        %2837 = vmatmul.f32.gmra.mxu0 %v2236
        %v2838 = vpop.f32.mrf.mxu0
        %v2839 = vadd.f32 %v2726, %v2838
        %2840 = vmatmul.f32.gmra.mxu0 %v2237
        %v2841 = vpop.f32.mrf.mxu0
        %v2842 = vadd.f32 %v2729, %v2841
        %2843 = vmatmul.f32.gmra.mxu0 %v2238
        %v2844 = vpop.f32.mrf.mxu0
        %v2845 = vadd.f32 %v2732, %v2844
        %2846 = vmatmul.f32.gmra.mxu0 %v2239
        %v2847 = vpop.f32.mrf.mxu0
        %v2848 = vadd.f32 %v2735, %v2847
        %2849 = vmatmul.f32.gmra.mxu0 %v2240
        %v2850 = vpop.f32.mrf.mxu0
        %v2851 = vadd.f32 %v2738, %v2850
        %2852 = vmatmul.f32.gmra.mxu0 %v2241
        %v2853 = vpop.f32.mrf.mxu0
        %v2854 = vadd.f32 %v2741, %v2853
        %2855 = vmatmul.f32.gmra.mxu0 %v2242
        %v2856 = vpop.f32.mrf.mxu0
        %v2857 = vadd.f32 %v2744, %v2856
        %2858 = vdwg.mxu0
        %2859 = vmatpush.msra.mxu0 %v2049
        %2860 = vmatpush.msra.mxu0 %v2048
        %2861 = vmatpush.msra.mxu0 %v2047
        %2862 = vmatpush.msra.mxu0 %v2046
        %2863 = vmatpush.msra.mxu0 %v2045
        %2864 = vmatpush.msra.mxu0 %v2044
        %2865 = vmatpush.msra.mxu0 %v2043
        %2866 = vmatpush.msra.mxu0 %v2042
        %2867 = vmatpush.msra.mxu0 %v2041
        %2868 = vmatpush.msra.mxu0 %v2040
        %2869 = vmatpush.msra.mxu0 %v2039
        %2870 = vmatpush.msra.mxu0 %v2038
        %2871 = vmatpush.msra.mxu0 %v2037
        %2872 = vmatpush.msra.mxu0 %v2036
        %2873 = vmatpush.msra.mxu0 %v2035
        %2874 = vmatpush.msra.mxu0 %v2034
        %2875 = vmatmul.f32.gmra.mxu0 %v2243
        %v2876 = vpop.f32.mrf.mxu0
        %v2877 = vadd.f32 %v2764, %v2876
        %2878 = vmatmul.f32.gmra.mxu0 %v2244
        %v2879 = vpop.f32.mrf.mxu0
        %v2880 = vadd.f32 %v2767, %v2879
        %2881 = vmatmul.f32.gmra.mxu0 %v2245
        %v2882 = vpop.f32.mrf.mxu0
        %v2883 = vadd.f32 %v2770, %v2882
        %2884 = vmatmul.f32.gmra.mxu0 %v2246
        %v2885 = vpop.f32.mrf.mxu0
        %v2886 = vadd.f32 %v2773, %v2885
        %2887 = vmatmul.f32.gmra.mxu0 %v2247
        %v2888 = vpop.f32.mrf.mxu0
        %v2889 = vadd.f32 %v2776, %v2888
        %2890 = vmatmul.f32.gmra.mxu0 %v2248
        %v2891 = vpop.f32.mrf.mxu0
        %v2892 = vadd.f32 %v2779, %v2891
        %2893 = vmatmul.f32.gmra.mxu0 %v2249
        %v2894 = vpop.f32.mrf.mxu0
        %v2895 = vadd.f32 %v2782, %v2894
        %2896 = vmatmul.f32.gmra.mxu0 %v2250
        %v2897 = vpop.f32.mrf.mxu0
        %v2898 = vadd.f32 %v2785, %v2897
        %2899 = vmatmul.f32.gmra.mxu0 %v2251
        %v2900 = vpop.f32.mrf.mxu0
        %v2901 = vadd.f32 %v2788, %v2900
        %2902 = vmatmul.f32.gmra.mxu0 %v2252
        %v2903 = vpop.f32.mrf.mxu0
        %v2904 = vadd.f32 %v2791, %v2903
        %2905 = vmatmul.f32.gmra.mxu0 %v2253
        %v2906 = vpop.f32.mrf.mxu0
        %v2907 = vadd.f32 %v2794, %v2906
        %2908 = vmatmul.f32.gmra.mxu0 %v2254
        %v2909 = vpop.f32.mrf.mxu0
        %v2910 = vadd.f32 %v2797, %v2909
        %2911 = vmatmul.f32.gmra.mxu0 %v2255
        %v2912 = vpop.f32.mrf.mxu0
        %v2913 = vadd.f32 %v2800, %v2912
        %2914 = vmatmul.f32.gmra.mxu0 %v2256
        %v2915 = vpop.f32.mrf.mxu0
        %v2916 = vadd.f32 %v2803, %v2915
        %2917 = vmatmul.f32.gmra.mxu0 %v2257
        %v2918 = vpop.f32.mrf.mxu0
        %v2919 = vadd.f32 %v2806, %v2918
        %2920 = vmatmul.f32.gmra.mxu0 %v2258
        %v2921 = vpop.f32.mrf.mxu0
        %v2922 = vadd.f32 %v2809, %v2921
        %2923 = vmatmul.f32.gmra.mxu0 %v2259
        %v2924 = vpop.f32.mrf.mxu0
        %v2925 = vadd.f32 %v2812, %v2924
        %2926 = vmatmul.f32.gmra.mxu0 %v2260
        %v2927 = vpop.f32.mrf.mxu0
        %v2928 = vadd.f32 %v2815, %v2927
        %2929 = vmatmul.f32.gmra.mxu0 %v2261
        %v2930 = vpop.f32.mrf.mxu0
        %v2931 = vadd.f32 %v2818, %v2930
        %2932 = vmatmul.f32.gmra.mxu0 %v2262
        %v2933 = vpop.f32.mrf.mxu0
        %v2934 = vadd.f32 %v2821, %v2933
        %2935 = vmatmul.f32.gmra.mxu0 %v2263
        %v2936 = vpop.f32.mrf.mxu0
        %v2937 = vadd.f32 %v2824, %v2936
        %2938 = vmatmul.f32.gmra.mxu0 %v2264
        %v2939 = vpop.f32.mrf.mxu0
        %v2940 = vadd.f32 %v2827, %v2939
        %2941 = vmatmul.f32.gmra.mxu0 %v2265
        %v2942 = vpop.f32.mrf.mxu0
        %v2943 = vadd.f32 %v2830, %v2942
        %2944 = vmatmul.f32.gmra.mxu0 %v2266
        %v2945 = vpop.f32.mrf.mxu0
        %v2946 = vadd.f32 %v2833, %v2945
        %2947 = vmatmul.f32.gmra.mxu0 %v2267
        %v2948 = vpop.f32.mrf.mxu0
        %v2949 = vadd.f32 %v2836, %v2948
        %2950 = vmatmul.f32.gmra.mxu0 %v2268
        %v2951 = vpop.f32.mrf.mxu0
        %v2952 = vadd.f32 %v2839, %v2951
        %2953 = vmatmul.f32.gmra.mxu0 %v2269
        %v2954 = vpop.f32.mrf.mxu0
        %v2955 = vadd.f32 %v2842, %v2954
        %2956 = vmatmul.f32.gmra.mxu0 %v2270
        %v2957 = vpop.f32.mrf.mxu0
        %v2958 = vadd.f32 %v2845, %v2957
        %2959 = vmatmul.f32.gmra.mxu0 %v2271
        %v2960 = vpop.f32.mrf.mxu0
        %v2961 = vadd.f32 %v2848, %v2960
        %2962 = vmatmul.f32.gmra.mxu0 %v2272
        %v2963 = vpop.f32.mrf.mxu0
        %v2964 = vadd.f32 %v2851, %v2963
        %2965 = vmatmul.f32.gmra.mxu0 %v2273
        %v2966 = vpop.f32.mrf.mxu0
        %v2967 = vadd.f32 %v2854, %v2966
        %2968 = vmatmul.f32.gmra.mxu0 %v2274
        %v2969 = vpop.f32.mrf.mxu0
        %v2970 = vadd.f32 %v2857, %v2969
        %2971 = vdwg.mxu0
        %2972 = vmatpush.msra.mxu0 %v2065
        %2973 = vmatpush.msra.mxu0 %v2064
        %2974 = vmatpush.msra.mxu0 %v2063
        %2975 = vmatpush.msra.mxu0 %v2062
        %2976 = vmatpush.msra.mxu0 %v2061
        %2977 = vmatpush.msra.mxu0 %v2060
        %2978 = vmatpush.msra.mxu0 %v2059
        %2979 = vmatpush.msra.mxu0 %v2058
        %2980 = vmatpush.msra.mxu0 %v2057
        %2981 = vmatpush.msra.mxu0 %v2056
        %2982 = vmatpush.msra.mxu0 %v2055
        %2983 = vmatpush.msra.mxu0 %v2054
        %2984 = vmatpush.msra.mxu0 %v2053
        %2985 = vmatpush.msra.mxu0 %v2052
        %2986 = vmatpush.msra.mxu0 %v2051
        %2987 = vmatpush.msra.mxu0 %v2050
        %2988 = vmatmul.f32.gmra.mxu0 %v2275
        %v2989 = vpop.f32.mrf.mxu0
        %v2990 = vadd.f32 %v2877, %v2989
        %2991 = vmatmul.f32.gmra.mxu0 %v2276
        %v2992 = vpop.f32.mrf.mxu0
        %v2993 = vadd.f32 %v2880, %v2992
        %2994 = vmatmul.f32.gmra.mxu0 %v2277
        %v2995 = vpop.f32.mrf.mxu0
        %v2996 = vadd.f32 %v2883, %v2995
        %2997 = vmatmul.f32.gmra.mxu0 %v2278
        %v2998 = vpop.f32.mrf.mxu0
        %v2999 = vadd.f32 %v2886, %v2998
        %3000 = vmatmul.f32.gmra.mxu0 %v2279
        %v3001 = vpop.f32.mrf.mxu0
        %v3002 = vadd.f32 %v2889, %v3001
        %3003 = vmatmul.f32.gmra.mxu0 %v2280
        %v3004 = vpop.f32.mrf.mxu0
        %v3005 = vadd.f32 %v2892, %v3004
        %3006 = vmatmul.f32.gmra.mxu0 %v2281
        %v3007 = vpop.f32.mrf.mxu0
        %v3008 = vadd.f32 %v2895, %v3007
        %3009 = vmatmul.f32.gmra.mxu0 %v2282
        %v3010 = vpop.f32.mrf.mxu0
        %v3011 = vadd.f32 %v2898, %v3010
        %3012 = vmatmul.f32.gmra.mxu0 %v2283
        %v3013 = vpop.f32.mrf.mxu0
        %v3014 = vadd.f32 %v2901, %v3013
        %3015 = vmatmul.f32.gmra.mxu0 %v2284
        %v3016 = vpop.f32.mrf.mxu0
        %v3017 = vadd.f32 %v2904, %v3016
        %3018 = vmatmul.f32.gmra.mxu0 %v2285
        %v3019 = vpop.f32.mrf.mxu0
        %v3020 = vadd.f32 %v2907, %v3019
        %3021 = vmatmul.f32.gmra.mxu0 %v2286
        %v3022 = vpop.f32.mrf.mxu0
        %v3023 = vadd.f32 %v2910, %v3022
        %3024 = vmatmul.f32.gmra.mxu0 %v2287
        %v3025 = vpop.f32.mrf.mxu0
        %v3026 = vadd.f32 %v2913, %v3025
        %3027 = vmatmul.f32.gmra.mxu0 %v2288
        %v3028 = vpop.f32.mrf.mxu0
        %v3029 = vadd.f32 %v2916, %v3028
        %3030 = vmatmul.f32.gmra.mxu0 %v2289
        %v3031 = vpop.f32.mrf.mxu0
        %v3032 = vadd.f32 %v2919, %v3031
        %3033 = vmatmul.f32.gmra.mxu0 %v2290
        %v3034 = vpop.f32.mrf.mxu0
        %v3035 = vadd.f32 %v2922, %v3034
        %3036 = vmatmul.f32.gmra.mxu0 %v2291
        %v3037 = vpop.f32.mrf.mxu0
        %v3038 = vadd.f32 %v2925, %v3037
        %3039 = vmatmul.f32.gmra.mxu0 %v2292
        %v3040 = vpop.f32.mrf.mxu0
        %v3041 = vadd.f32 %v2928, %v3040
        %3042 = vmatmul.f32.gmra.mxu0 %v2293
        %v3043 = vpop.f32.mrf.mxu0
        %v3044 = vadd.f32 %v2931, %v3043
        %3045 = vmatmul.f32.gmra.mxu0 %v2294
        %v3046 = vpop.f32.mrf.mxu0
        %v3047 = vadd.f32 %v2934, %v3046
        %3048 = vmatmul.f32.gmra.mxu0 %v2295
        %v3049 = vpop.f32.mrf.mxu0
        %v3050 = vadd.f32 %v2937, %v3049
        %3051 = vmatmul.f32.gmra.mxu0 %v2296
        %v3052 = vpop.f32.mrf.mxu0
        %v3053 = vadd.f32 %v2940, %v3052
        %3054 = vmatmul.f32.gmra.mxu0 %v2297
        %v3055 = vpop.f32.mrf.mxu0
        %v3056 = vadd.f32 %v2943, %v3055
        %3057 = vmatmul.f32.gmra.mxu0 %v2298
        %v3058 = vpop.f32.mrf.mxu0
        %v3059 = vadd.f32 %v2946, %v3058
        %3060 = vmatmul.f32.gmra.mxu0 %v2299
        %v3061 = vpop.f32.mrf.mxu0
        %v3062 = vadd.f32 %v2949, %v3061
        %3063 = vmatmul.f32.gmra.mxu0 %v2300
        %v3064 = vpop.f32.mrf.mxu0
        %v3065 = vadd.f32 %v2952, %v3064
        %3066 = vmatmul.f32.gmra.mxu0 %v2301
        %v3067 = vpop.f32.mrf.mxu0
        %v3068 = vadd.f32 %v2955, %v3067
        %3069 = vmatmul.f32.gmra.mxu0 %v2302
        %v3070 = vpop.f32.mrf.mxu0
        %v3071 = vadd.f32 %v2958, %v3070
        %3072 = vmatmul.f32.gmra.mxu0 %v2303
        %v3073 = vpop.f32.mrf.mxu0
        %v3074 = vadd.f32 %v2961, %v3073
        %3075 = vmatmul.f32.gmra.mxu0 %v2304
        %v3076 = vpop.f32.mrf.mxu0
        %v3077 = vadd.f32 %v2964, %v3076
        %3078 = vmatmul.f32.gmra.mxu0 %v2305
        %v3079 = vpop.f32.mrf.mxu0
        %v3080 = vadd.f32 %v2967, %v3079
        %3081 = vmatmul.f32.gmra.mxu0 %v2306
        %v3082 = vpop.f32.mrf.mxu0
        %v3083 = vadd.f32 %v2970, %v3082
        %3084 = vdwg.mxu0
        %3085 = vmatpush.msra.mxu0 %v2081
        %3086 = vmatpush.msra.mxu0 %v2080
        %3087 = vmatpush.msra.mxu0 %v2079
        %3088 = vmatpush.msra.mxu0 %v2078
        %3089 = vmatpush.msra.mxu0 %v2077
        %3090 = vmatpush.msra.mxu0 %v2076
        %3091 = vmatpush.msra.mxu0 %v2075
        %3092 = vmatpush.msra.mxu0 %v2074
        %3093 = vmatpush.msra.mxu0 %v2073
        %3094 = vmatpush.msra.mxu0 %v2072
        %3095 = vmatpush.msra.mxu0 %v2071
        %3096 = vmatpush.msra.mxu0 %v2070
        %3097 = vmatpush.msra.mxu0 %v2069
        %3098 = vmatpush.msra.mxu0 %v2068
        %3099 = vmatpush.msra.mxu0 %v2067
        %3100 = vmatpush.msra.mxu0 %v2066
        %3101 = vmatmul.f32.gmra.mxu0 %v2308
        %v3102 = vpop.f32.mrf.mxu0
        %v3103 = vadd.f32 %v2990, %v3102
        %3104 = vmatmul.f32.gmra.mxu0 %v2309
        %v3105 = vpop.f32.mrf.mxu0
        %v3106 = vadd.f32 %v2993, %v3105
        %3107 = vmatmul.f32.gmra.mxu0 %v2310
        %v3108 = vpop.f32.mrf.mxu0
        %v3109 = vadd.f32 %v2996, %v3108
        %3110 = vmatmul.f32.gmra.mxu0 %v2311
        %v3111 = vpop.f32.mrf.mxu0
        %v3112 = vadd.f32 %v2999, %v3111
        %3113 = vmatmul.f32.gmra.mxu0 %v2312
        %v3114 = vpop.f32.mrf.mxu0
        %v3115 = vadd.f32 %v3002, %v3114
        %3116 = vmatmul.f32.gmra.mxu0 %v2313
        %v3117 = vpop.f32.mrf.mxu0
        %v3118 = vadd.f32 %v3005, %v3117
        %3119 = vmatmul.f32.gmra.mxu0 %v2314
        %v3120 = vpop.f32.mrf.mxu0
        %v3121 = vadd.f32 %v3008, %v3120
        %3122 = vmatmul.f32.gmra.mxu0 %v2315
        %v3123 = vpop.f32.mrf.mxu0
        %v3124 = vadd.f32 %v3011, %v3123
        %3125 = vmatmul.f32.gmra.mxu0 %v2316
        %v3126 = vpop.f32.mrf.mxu0
        %v3127 = vadd.f32 %v3014, %v3126
        %3128 = vmatmul.f32.gmra.mxu0 %v2317
        %v3129 = vpop.f32.mrf.mxu0
        %v3130 = vadd.f32 %v3017, %v3129
        %3131 = vmatmul.f32.gmra.mxu0 %v2318
        %v3132 = vpop.f32.mrf.mxu0
        %v3133 = vadd.f32 %v3020, %v3132
        %3134 = vmatmul.f32.gmra.mxu0 %v2319
        %v3135 = vpop.f32.mrf.mxu0
        %v3136 = vadd.f32 %v3023, %v3135
        %3137 = vmatmul.f32.gmra.mxu0 %v2320
        %v3138 = vpop.f32.mrf.mxu0
        %v3139 = vadd.f32 %v3026, %v3138
        %3140 = vmatmul.f32.gmra.mxu0 %v2321
        %v3141 = vpop.f32.mrf.mxu0
        %v3142 = vadd.f32 %v3029, %v3141
        %3143 = vmatmul.f32.gmra.mxu0 %v2322
        %v3144 = vpop.f32.mrf.mxu0
        %v3145 = vadd.f32 %v3032, %v3144
        %3146 = vmatmul.f32.gmra.mxu0 %v2323
        %v3147 = vpop.f32.mrf.mxu0
        %v3148 = vadd.f32 %v3035, %v3147
        %3149 = vmatmul.f32.gmra.mxu0 %v2324
        %v3150 = vpop.f32.mrf.mxu0
        %v3151 = vadd.f32 %v3038, %v3150
        %3152 = vmatmul.f32.gmra.mxu0 %v2325
        %v3153 = vpop.f32.mrf.mxu0
        %v3154 = vadd.f32 %v3041, %v3153
        %3155 = vmatmul.f32.gmra.mxu0 %v2326
        %v3156 = vpop.f32.mrf.mxu0
        %v3157 = vadd.f32 %v3044, %v3156
        %3158 = vmatmul.f32.gmra.mxu0 %v2327
        %v3159 = vpop.f32.mrf.mxu0
        %v3160 = vadd.f32 %v3047, %v3159
        %3161 = vmatmul.f32.gmra.mxu0 %v2328
        %v3162 = vpop.f32.mrf.mxu0
        %v3163 = vadd.f32 %v3050, %v3162
        %3164 = vmatmul.f32.gmra.mxu0 %v2329
        %v3165 = vpop.f32.mrf.mxu0
        %v3166 = vadd.f32 %v3053, %v3165
        %3167 = vmatmul.f32.gmra.mxu0 %v2330
        %v3168 = vpop.f32.mrf.mxu0
        %v3169 = vadd.f32 %v3056, %v3168
        %3170 = vmatmul.f32.gmra.mxu0 %v2331
        %v3171 = vpop.f32.mrf.mxu0
        %v3172 = vadd.f32 %v3059, %v3171
        %3173 = vmatmul.f32.gmra.mxu0 %v2332
        %v3174 = vpop.f32.mrf.mxu0
        %v3175 = vadd.f32 %v3062, %v3174
        %3176 = vmatmul.f32.gmra.mxu0 %v2333
        %v3177 = vpop.f32.mrf.mxu0
        %v3178 = vadd.f32 %v3065, %v3177
        %3179 = vmatmul.f32.gmra.mxu0 %v2334
        %v3180 = vpop.f32.mrf.mxu0
        %v3181 = vadd.f32 %v3068, %v3180
        %3182 = vmatmul.f32.gmra.mxu0 %v2335
        %v3183 = vpop.f32.mrf.mxu0
        %v3184 = vadd.f32 %v3071, %v3183
        %3185 = vmatmul.f32.gmra.mxu0 %v2336
        %v3186 = vpop.f32.mrf.mxu0
        %v3187 = vadd.f32 %v3074, %v3186
        %3188 = vmatmul.f32.gmra.mxu0 %v2337
        %v3189 = vpop.f32.mrf.mxu0
        %v3190 = vadd.f32 %v3077, %v3189
        %3191 = vmatmul.f32.gmra.mxu0 %v2338
        %v3192 = vpop.f32.mrf.mxu0
        %v3193 = vadd.f32 %v3080, %v3192
        %3194 = vmatmul.f32.gmra.mxu0 %v2339
        %v3195 = vpop.f32.mrf.mxu0
        %v3196 = vadd.f32 %v3083, %v3195
        %3197 = vdwg.mxu0
        %3198 = vmatpush.msra.mxu0 %v2097
        %3199 = vmatpush.msra.mxu0 %v2096
        %3200 = vmatpush.msra.mxu0 %v2095
        %3201 = vmatpush.msra.mxu0 %v2094
        %3202 = vmatpush.msra.mxu0 %v2093
        %3203 = vmatpush.msra.mxu0 %v2092
        %3204 = vmatpush.msra.mxu0 %v2091
        %3205 = vmatpush.msra.mxu0 %v2090
        %3206 = vmatpush.msra.mxu0 %v2089
        %3207 = vmatpush.msra.mxu0 %v2088
        %3208 = vmatpush.msra.mxu0 %v2087
        %3209 = vmatpush.msra.mxu0 %v2086
        %3210 = vmatpush.msra.mxu0 %v2085
        %3211 = vmatpush.msra.mxu0 %v2084
        %3212 = vmatpush.msra.mxu0 %v2083
        %3213 = vmatpush.msra.mxu0 %v2082
        %3214 = vmatmul.f32.gmra.mxu0 %v2340
        %v3215 = vpop.f32.mrf.mxu0
        %v3216 = vadd.f32 %v3103, %v3215
        %3217 = vmatmul.f32.gmra.mxu0 %v2341
        %v3218 = vpop.f32.mrf.mxu0
        %v3219 = vadd.f32 %v3106, %v3218
        %3220 = vmatmul.f32.gmra.mxu0 %v2342
        %v3221 = vpop.f32.mrf.mxu0
        %v3222 = vadd.f32 %v3109, %v3221
        %3223 = vmatmul.f32.gmra.mxu0 %v2343
        %v3224 = vpop.f32.mrf.mxu0
        %v3225 = vadd.f32 %v3112, %v3224
        %3226 = vmatmul.f32.gmra.mxu0 %v2344
        %v3227 = vpop.f32.mrf.mxu0
        %v3228 = vadd.f32 %v3115, %v3227
        %3229 = vmatmul.f32.gmra.mxu0 %v2345
        %v3230 = vpop.f32.mrf.mxu0
        %v3231 = vadd.f32 %v3118, %v3230
        %3232 = vmatmul.f32.gmra.mxu0 %v2346
        %v3233 = vpop.f32.mrf.mxu0
        %v3234 = vadd.f32 %v3121, %v3233
        %3235 = vmatmul.f32.gmra.mxu0 %v2347
        %v3236 = vpop.f32.mrf.mxu0
        %v3237 = vadd.f32 %v3124, %v3236
        %3238 = vmatmul.f32.gmra.mxu0 %v2348
        %v3239 = vpop.f32.mrf.mxu0
        %v3240 = vadd.f32 %v3127, %v3239
        %3241 = vmatmul.f32.gmra.mxu0 %v2349
        %v3242 = vpop.f32.mrf.mxu0
        %v3243 = vadd.f32 %v3130, %v3242
        %3244 = vmatmul.f32.gmra.mxu0 %v2350
        %v3245 = vpop.f32.mrf.mxu0
        %v3246 = vadd.f32 %v3133, %v3245
        %3247 = vmatmul.f32.gmra.mxu0 %v2351
        %v3248 = vpop.f32.mrf.mxu0
        %v3249 = vadd.f32 %v3136, %v3248
        %3250 = vmatmul.f32.gmra.mxu0 %v2352
        %v3251 = vpop.f32.mrf.mxu0
        %v3252 = vadd.f32 %v3139, %v3251
        %3253 = vmatmul.f32.gmra.mxu0 %v2353
        %v3254 = vpop.f32.mrf.mxu0
        %v3255 = vadd.f32 %v3142, %v3254
        %3256 = vmatmul.f32.gmra.mxu0 %v2354
        %v3257 = vpop.f32.mrf.mxu0
        %v3258 = vadd.f32 %v3145, %v3257
        %3259 = vmatmul.f32.gmra.mxu0 %v2355
        %v3260 = vpop.f32.mrf.mxu0
        %v3261 = vadd.f32 %v3148, %v3260
        %3262 = vmatmul.f32.gmra.mxu0 %v2356
        %v3263 = vpop.f32.mrf.mxu0
        %v3264 = vadd.f32 %v3151, %v3263
        %3265 = vmatmul.f32.gmra.mxu0 %v2357
        %v3266 = vpop.f32.mrf.mxu0
        %v3267 = vadd.f32 %v3154, %v3266
        %3268 = vmatmul.f32.gmra.mxu0 %v2358
        %v3269 = vpop.f32.mrf.mxu0
        %v3270 = vadd.f32 %v3157, %v3269
        %3271 = vmatmul.f32.gmra.mxu0 %v2359
        %v3272 = vpop.f32.mrf.mxu0
        %v3273 = vadd.f32 %v3160, %v3272
        %3274 = vmatmul.f32.gmra.mxu0 %v2360
        %v3275 = vpop.f32.mrf.mxu0
        %v3276 = vadd.f32 %v3163, %v3275
        %3277 = vmatmul.f32.gmra.mxu0 %v2361
        %v3278 = vpop.f32.mrf.mxu0
        %v3279 = vadd.f32 %v3166, %v3278
        %3280 = vmatmul.f32.gmra.mxu0 %v2362
        %v3281 = vpop.f32.mrf.mxu0
        %v3282 = vadd.f32 %v3169, %v3281
        %3283 = vmatmul.f32.gmra.mxu0 %v2363
        %v3284 = vpop.f32.mrf.mxu0
        %v3285 = vadd.f32 %v3172, %v3284
        %3286 = vmatmul.f32.gmra.mxu0 %v2364
        %v3287 = vpop.f32.mrf.mxu0
        %v3288 = vadd.f32 %v3175, %v3287
        %3289 = vmatmul.f32.gmra.mxu0 %v2365
        %v3290 = vpop.f32.mrf.mxu0
        %v3291 = vadd.f32 %v3178, %v3290
        %3292 = vmatmul.f32.gmra.mxu0 %v2366
        %v3293 = vpop.f32.mrf.mxu0
        %v3294 = vadd.f32 %v3181, %v3293
        %3295 = vmatmul.f32.gmra.mxu0 %v2367
        %v3296 = vpop.f32.mrf.mxu0
        %v3297 = vadd.f32 %v3184, %v3296
        %3298 = vmatmul.f32.gmra.mxu0 %v2368
        %v3299 = vpop.f32.mrf.mxu0
        %v3300 = vadd.f32 %v3187, %v3299
        %3301 = vmatmul.f32.gmra.mxu0 %v2369
        %v3302 = vpop.f32.mrf.mxu0
        %v3303 = vadd.f32 %v3190, %v3302
        %3304 = vmatmul.f32.gmra.mxu0 %v2370
        %v3305 = vpop.f32.mrf.mxu0
        %v3306 = vadd.f32 %v3193, %v3305
        %3307 = vmatmul.f32.gmra.mxu0 %v2371
        %v3308 = vpop.f32.mrf.mxu0
        %v3309 = vadd.f32 %v3196, %v3308
        %3310 = vdwg.mxu0
        %3311 = vmatpush.msra.mxu0 %v2113
        %3312 = vmatpush.msra.mxu0 %v2112
        %3313 = vmatpush.msra.mxu0 %v2111
        %3314 = vmatpush.msra.mxu0 %v2110
        %3315 = vmatpush.msra.mxu0 %v2109
        %3316 = vmatpush.msra.mxu0 %v2108
        %3317 = vmatpush.msra.mxu0 %v2107
        %3318 = vmatpush.msra.mxu0 %v2106
        %3319 = vmatpush.msra.mxu0 %v2105
        %3320 = vmatpush.msra.mxu0 %v2104
        %3321 = vmatpush.msra.mxu0 %v2103
        %3322 = vmatpush.msra.mxu0 %v2102
        %3323 = vmatpush.msra.mxu0 %v2101
        %3324 = vmatpush.msra.mxu0 %v2100
        %3325 = vmatpush.msra.mxu0 %v2099
        %3326 = vmatpush.msra.mxu0 %v2098
        %3327 = vmatmul.f32.gmra.mxu0 %v2372
        %v3328 = vpop.f32.mrf.mxu0
        %v3329 = vadd.f32 %v3216, %v3328
        %3330 = vmatmul.f32.gmra.mxu0 %v2373
        %v3331 = vpop.f32.mrf.mxu0
        %v3332 = vadd.f32 %v3219, %v3331
        %3333 = vmatmul.f32.gmra.mxu0 %v2374
        %v3334 = vpop.f32.mrf.mxu0
        %v3335 = vadd.f32 %v3222, %v3334
        %3336 = vmatmul.f32.gmra.mxu0 %v2375
        %v3337 = vpop.f32.mrf.mxu0
        %v3338 = vadd.f32 %v3225, %v3337
        %3339 = vmatmul.f32.gmra.mxu0 %v2376
        %v3340 = vpop.f32.mrf.mxu0
        %v3341 = vadd.f32 %v3228, %v3340
        %3342 = vmatmul.f32.gmra.mxu0 %v2377
        %v3343 = vpop.f32.mrf.mxu0
        %v3344 = vadd.f32 %v3231, %v3343
        %3345 = vmatmul.f32.gmra.mxu0 %v2378
        %v3346 = vpop.f32.mrf.mxu0
        %v3347 = vadd.f32 %v3234, %v3346
        %3348 = vmatmul.f32.gmra.mxu0 %v2379
        %v3349 = vpop.f32.mrf.mxu0
        %v3350 = vadd.f32 %v3237, %v3349
        %3351 = vmatmul.f32.gmra.mxu0 %v2380
        %v3352 = vpop.f32.mrf.mxu0
        %v3353 = vadd.f32 %v3240, %v3352
        %3354 = vmatmul.f32.gmra.mxu0 %v2381
        %v3355 = vpop.f32.mrf.mxu0
        %v3356 = vadd.f32 %v3243, %v3355
        %3357 = vmatmul.f32.gmra.mxu0 %v2382
        %v3358 = vpop.f32.mrf.mxu0
        %v3359 = vadd.f32 %v3246, %v3358
        %3360 = vmatmul.f32.gmra.mxu0 %v2383
        %v3361 = vpop.f32.mrf.mxu0
        %v3362 = vadd.f32 %v3249, %v3361
        %3363 = vmatmul.f32.gmra.mxu0 %v2384
        %v3364 = vpop.f32.mrf.mxu0
        %v3365 = vadd.f32 %v3252, %v3364
        %3366 = vmatmul.f32.gmra.mxu0 %v2385
        %v3367 = vpop.f32.mrf.mxu0
        %v3368 = vadd.f32 %v3255, %v3367
        %3369 = vmatmul.f32.gmra.mxu0 %v2386
        %v3370 = vpop.f32.mrf.mxu0
        %v3371 = vadd.f32 %v3258, %v3370
        %3372 = vmatmul.f32.gmra.mxu0 %v2387
        %v3373 = vpop.f32.mrf.mxu0
        %v3374 = vadd.f32 %v3261, %v3373
        %3375 = vmatmul.f32.gmra.mxu0 %v2388
        %v3376 = vpop.f32.mrf.mxu0
        %v3377 = vadd.f32 %v3264, %v3376
        %3378 = vmatmul.f32.gmra.mxu0 %v2389
        %v3379 = vpop.f32.mrf.mxu0
        %v3380 = vadd.f32 %v3267, %v3379
        %3381 = vmatmul.f32.gmra.mxu0 %v2390
        %v3382 = vpop.f32.mrf.mxu0
        %v3383 = vadd.f32 %v3270, %v3382
        %3384 = vmatmul.f32.gmra.mxu0 %v2391
        %v3385 = vpop.f32.mrf.mxu0
        %v3386 = vadd.f32 %v3273, %v3385
        %3387 = vmatmul.f32.gmra.mxu0 %v2392
        %v3388 = vpop.f32.mrf.mxu0
        %v3389 = vadd.f32 %v3276, %v3388
        %3390 = vmatmul.f32.gmra.mxu0 %v2393
        %v3391 = vpop.f32.mrf.mxu0
        %v3392 = vadd.f32 %v3279, %v3391
        %3393 = vmatmul.f32.gmra.mxu0 %v2394
        %v3394 = vpop.f32.mrf.mxu0
        %v3395 = vadd.f32 %v3282, %v3394
        %3396 = vmatmul.f32.gmra.mxu0 %v2395
        %v3397 = vpop.f32.mrf.mxu0
        %v3398 = vadd.f32 %v3285, %v3397
        %3399 = vmatmul.f32.gmra.mxu0 %v2396
        %v3400 = vpop.f32.mrf.mxu0
        %v3401 = vadd.f32 %v3288, %v3400
        %3402 = vmatmul.f32.gmra.mxu0 %v2397
        %v3403 = vpop.f32.mrf.mxu0
        %v3404 = vadd.f32 %v3291, %v3403
        %3405 = vmatmul.f32.gmra.mxu0 %v2398
        %v3406 = vpop.f32.mrf.mxu0
        %v3407 = vadd.f32 %v3294, %v3406
        %3408 = vmatmul.f32.gmra.mxu0 %v2399
        %v3409 = vpop.f32.mrf.mxu0
        %v3410 = vadd.f32 %v3297, %v3409
        %3411 = vmatmul.f32.gmra.mxu0 %v2400
        %v3412 = vpop.f32.mrf.mxu0
        %v3413 = vadd.f32 %v3300, %v3412
        %3414 = vmatmul.f32.gmra.mxu0 %v2401
        %v3415 = vpop.f32.mrf.mxu0
        %v3416 = vadd.f32 %v3303, %v3415
        %3417 = vmatmul.f32.gmra.mxu0 %v2402
        %v3418 = vpop.f32.mrf.mxu0
        %v3419 = vadd.f32 %v3306, %v3418
        %3420 = vmatmul.f32.gmra.mxu0 %v2403
        %v3421 = vpop.f32.mrf.mxu0
        %v3422 = vadd.f32 %v3309, %v3421
        %3423 = vdwg.mxu0
        %v3424 = vmax.f32 %v3329, 0.0
        %v3425 = vmax.f32 %v3332, 0.0
        %v3426 = vmax.f32 %v3335, 0.0
        %v3427 = vmax.f32 %v3338, 0.0
        %v3428 = vmax.f32 %v3341, 0.0
        %v3429 = vmax.f32 %v3344, 0.0
        %v3430 = vmax.f32 %v3347, 0.0
        %v3431 = vmax.f32 %v3350, 0.0
        %v3432 = vmax.f32 %v3353, 0.0
        %v3433 = vmax.f32 %v3356, 0.0
        %v3434 = vmax.f32 %v3359, 0.0
        %v3435 = vmax.f32 %v3362, 0.0
        %v3436 = vmax.f32 %v3365, 0.0
        %v3437 = vmax.f32 %v3368, 0.0
        %v3438 = vmax.f32 %v3371, 0.0
        %v3439 = vmax.f32 %v3374, 0.0
        %v3440 = vmax.f32 %v3377, 0.0
        %v3441 = vmax.f32 %v3380, 0.0
        %v3442 = vmax.f32 %v3383, 0.0
        %v3443 = vmax.f32 %v3386, 0.0
        %v3444 = vmax.f32 %v3389, 0.0
        %v3445 = vmax.f32 %v3392, 0.0
        %v3446 = vmax.f32 %v3395, 0.0
        %v3447 = vmax.f32 %v3398, 0.0
        %v3448 = vmax.f32 %v3401, 0.0
        %v3449 = vmax.f32 %v3404, 0.0
        %v3450 = vmax.f32 %v3407, 0.0
        %v3451 = vmax.f32 %v3410, 0.0
        %v3452 = vmax.f32 %v3413, 0.0
        %v3453 = vmax.f32 %v3416, 0.0
        %v3454 = vmax.f32 %v3419, 0.0
        %v3455 = vmax.f32 %v3422, 0.0
        %3456 = vst [vmem:[%s277] sm:$0xff] %v3424
        %3457 = vst [vmem:[%s277 + $0x8] sm:$0xff] %v3425
        %3458 = vst [vmem:[%s277 + $0x10] sm:$0xff] %v3426
        %3459 = vst [vmem:[%s277 + $0x18] sm:$0xff] %v3427
        %3460 = vst [vmem:[%s277 + $0x20] sm:$0xff] %v3428
        %3461 = vst [vmem:[%s277 + $0x28] sm:$0xff] %v3429
        %3462 = vst [vmem:[%s277 + $0x30] sm:$0xff] %v3430
        %3463 = vst [vmem:[%s277 + $0x38] sm:$0xff] %v3431
        %3464 = vst [vmem:[%s277 + $0x40] sm:$0xff] %v3432
        %3465 = vst [vmem:[%s277 + $0x48] sm:$0xff] %v3433
        %3466 = vst [vmem:[%s277 + $0x50] sm:$0xff] %v3434
        %3467 = vst [vmem:[%s277 + $0x58] sm:$0xff] %v3435
        %3468 = vst [vmem:[%s277 + $0x60] sm:$0xff] %v3436
        %3469 = vst [vmem:[%s277 + $0x68] sm:$0xff] %v3437
        %3470 = vst [vmem:[%s277 + $0x70] sm:$0xff] %v3438
        %3471 = vst [vmem:[%s277 + $0x78] sm:$0xff] %v3439
        %3472 = vst [vmem:[%s277 + $0x80] sm:$0xff] %v3440
        %3473 = vst [vmem:[%s277 + $0x88] sm:$0xff] %v3441
        %3474 = vst [vmem:[%s277 + $0x90] sm:$0xff] %v3442
        %3475 = vst [vmem:[%s277 + $0x98] sm:$0xff] %v3443
        %3476 = vst [vmem:[%s277 + $0xa0] sm:$0xff] %v3444
        %3477 = vst [vmem:[%s277 + $0xa8] sm:$0xff] %v3445
        %3478 = vst [vmem:[%s277 + $0xb0] sm:$0xff] %v3446
        %3479 = vst [vmem:[%s277 + $0xb8] sm:$0xff] %v3447
        %3480 = vst [vmem:[%s277 + $0xc0] sm:$0xff] %v3448
        %3481 = vst [vmem:[%s277 + $0xc8] sm:$0xff] %v3449
        %3482 = vst [vmem:[%s277 + $0xd0] sm:$0xff] %v3450
        %3483 = vst [vmem:[%s277 + $0xd8] sm:$0xff] %v3451
        %3484 = vst [vmem:[%s277 + $0xe0] sm:$0xff] %v3452
        %3485 = vst [vmem:[%s277 + $0xe8] sm:$0xff] %v3453
        %3486 = vst [vmem:[%s277 + $0xf0] sm:$0xff] %v3454
        %3487 = vst [vmem:[%s277 + $0xf8] sm:$0xff] %v3455
        %s3488 = sand.u32 %s141, 1
        %s3489 = scalar_lea.sflag [#allocation6], %s3488
        %s3490 = sand.u32 %s141, 1
        %s3491 = smul.addr %s3490, 256
        %s3492 = scalar_lea.vmem [#allocation10], %s3491
        // Predicated region
        $region53: #{tpu_custom_call.1} parent=39 // pred_check
          %p3493 = pneg %p151
        $region54: #{tpu_custom_call.1} parent=39 // pred_check_branch
          %3495 = sbr.rel (%p3493) target = $region56
        $region55: #{tpu_custom_call.1} parent=39 // pred_region
          %3497 = vsyncadd %s3489, 0
          %s3498 = smul.addr %s23, 32
          %s3499 = smul.addr %s3498, 8
          %s3500 = scalar_lea.hbm %s5, %s3499
          %s3501 = sshll.u32 %s3492, 4
          %s3502 = int_to_ptr.vmem [resolvable:$true] %s3501
          %s3503 = sshll.u32 %s3500, 4
          %s3504 = int_to_ptr.hbm [resolvable:$true] %s3503
          %3509 = dma.vmem_to_hbm [thread:$0]  %s3502, 4096, %s3504, %s3489, 128, 128, 8
        $region56: #{tpu_custom_call.1} parent=39 // pred_fallthru
          _
      $region40: #{tpu_custom_call.1} parent=5 // pred_fallthru
        _
      %p3510 = scmp.le.s32.totalorder 2, %s18
      // Predicated region
      $region57: #{tpu_custom_call.1} parent=5 // pred_check
        %p3511 = pneg %p3510
      $region58: #{tpu_custom_call.1} parent=5 // pred_check_branch
        %3513 = sbr.rel (%p3511) target = $region60
      $region59: #{tpu_custom_call.1} parent=5 // pred_region
        %s3514 = ssub.s32 %s18, 2
        // Predicated region
        $region61: #{tpu_custom_call.1} parent=59 // pred_check
          %p3515 = pneg %p157
        $region62: #{tpu_custom_call.1} parent=59 // pred_check_branch
          %3517 = sbr.rel (%p3515) target = $region64
        $region63: #{tpu_custom_call.1} parent=59 // pred_region
          %s3518 = sand.u32 %s142, 1
          %s3519 = scalar_lea.sflag [#allocation6], %s3518
          %s3520 = sand.u32 %s142, 1
          %s3521 = smul.addr %s3520, 256
          %s3522 = scalar_lea.vmem [#allocation10], %s3521
          %3524 = dma.done %s3519, 4096
        $region64: #{tpu_custom_call.1} parent=59 // pred_fallthru
          _
      $region60: #{tpu_custom_call.1} parent=5 // pred_fallthru
        _
    $region6: #{tpu_custom_call.1} parent=1 // loop_footer
      %s22 = sadd.s32 1, %s18
    $region7: #{tpu_custom_call.1} parent=1 // loop_footer_branch
      %17 = sbr.rel target = $region3
    $region8: #{tpu_custom_call.1} parent=1 // loop_exit
      _
    %3525 = vsyncpa [#allocation5], 1
    %s3526 = scalar_lea.sflag [#allocation5], 1
    %3527 = vsyncpa %s3526, 1
    %3528 = vsyncpa [#allocation8], 1
    %3529 = vsyncpa [#allocation6], 1
    %s3530 = scalar_lea.sflag [#allocation6], 1
    %3531 = vsyncpa %s3530, 1

</llo_original>
